<compile_context>
chip_gen: v7x
topology: tpu7x:2x2x1
jax: 0.10.0
libtpu: 0.0.40
codegen_flags: <defaults>
</compile_context>

<pallas_src>
import jax
import jax.numpy as jnp
from jax.experimental import pallas as pl
from jax.experimental.pallas import tpu as pltpu

_SUBLANE = 8     # f32 sublane tile
_LANE = 128      # lane tile


def _round_up(x, m):
    return (x + m - 1) // m * m


# ----------------------------------------------------------------------------
# Fused LSTM-AE forward kernel (wavefront over layers within each stage)
# ----------------------------------------------------------------------------
def _make_ae_kernel(T, B_pad, enc_hidden, dec_hidden, E, E_pad):
    n_enc, n_dec = len(enc_hidden), len(dec_hidden)

    def g_mask(H):
        # lane mask selecting the tanh ("g") gate block inside a (B, 4H) vreg
        lane = jax.lax.broadcasted_iota(jnp.int32, (B_pad, 4 * H), 1)
        return (lane >= 2 * H) & (lane < 3 * H)

    def lstm_cell(gates, c, h, H, mask):
        # Full-vreg EUP activations + lane-mask select (PyTorch order i,f,g,o).
        sg = jax.nn.sigmoid(gates)
        th = jnp.tanh(gates)
        acts = jnp.where(mask, th, sg)
        i = acts[:, 0 * H:1 * H]
        f = acts[:, 1 * H:2 * H]
        g = acts[:, 2 * H:3 * H]
        o = acts[:, 3 * H:4 * H]
        c = f * c + i * g
        h = o * jnp.tanh(c)
        return c, h

    def kernel(*refs):
        # ---- unpack refs: inputs, outputs, scratch (positional contract) ----
        it = iter(refs)
        x_ref = next(it)                                     # (T*B_pad, D_in) f32
        enc_params, dec_params = [], []
        for l in range(n_enc):
            enc_params.append(tuple(next(it) for _ in range(3 if l == 0 else 2)))
        for l in range(n_dec):
            dec_params.append(tuple(next(it) for _ in range(3 if l == 0 else 2)))
        dense_ref = next(it)                                 # (H_dec_last, N_pad) f32
        enc_out_ref = next(it)                               # (B_pad, E_pad)
        dec_out_ref = next(it)                               # (T*B_pad, N_pad)
        xp_ref = next(it)                                    # (T*B_pad, 4*H_enc0) f32 scratch

        def run_stage(hidden, params, layer0_gate_fn, emit_last_fn):
            """Wavefront over L layers x T time steps.

            layer0_gate_fn(t): (B_pad, 4*H0) f32 hoisted input gates for layer 0.
            emit_last_fn(t, h): consumes the last layer's per-step hidden state.
            Returns the last layer's final hidden state h_{T-1}.
            """
            L = len(hidden)
            # hoist all loop-invariant loads / masks out of the time loop
            whh0 = params[0][1][...]                                   # bf16 (H0, 4H0)
            combs = [params[l][0][...] for l in range(1, L)]           # bf16 (H_{l-1}+H_l, 4H_l)
            biases = [params[l][1][...] for l in range(1, L)]          # f32  (1, 4H_l)
            masks = [g_mask(H) for H in hidden]
            h = [jnp.zeros((B_pad, H), jnp.float32) for H in hidden]
            c = [jnp.zeros((B_pad, H), jnp.float32) for H in hidden]
            u = [None] * L                                             # act(h_l) for layer l+1

            # Static unroll: fine at demo sizes (see TODO for large T).
            for w in range(T + L - 1):
                # Reverse layer order: layer l must read u[l-1] as produced at
                # wavefront step w-1, i.e. before layer l-1 overwrites it.
                for l in range(L - 1, -1, -1):
                    t = w - l
                    if not (0 <= t < T):
                        continue
                    H = hidden[l]
                    if l == 0:
                        gates = layer0_gate_fn(t) + jnp.dot(
                            h[0].astype(jnp.bfloat16), whh0,
                            preferred_element_type=jnp.float32)
                    else:
                        # fused input+recurrent projection: [u, h] @ [Wih^T; Whh^T]
                        lhs = jnp.concatenate([u[l - 1], h[l]], axis=1).astype(jnp.bfloat16)
                        gates = jnp.dot(lhs, combs[l - 1],
                                        preferred_element_type=jnp.float32) + biases[l - 1]
                    c[l], h[l] = lstm_cell(gates, c[l], h[l], H, masks[l])
                    if l < L - 1:
                        u[l] = jax.nn.sigmoid(h[l])        # h_activ between layers
                    elif emit_last_fn is not None:
                        emit_last_fn(t, h[l])
            return h[L - 1]

        # ------------------------------ Encoder ------------------------------
        wih0e, _, b0e = enc_params[0]
        # Hoisted layer-0 input projection (one batched f32 matmul, off the
        # serial chain) -> VMEM scratch; per-step reads bound vreg pressure.
        xp_ref[...] = (jnp.dot(x_ref[...], wih0e[...],
                               preferred_element_type=jnp.float32) + b0e[...])
        enc_h = run_stage(
            enc_hidden, enc_params,
            layer0_gate_fn=lambda t: xp_ref[pl.ds(t * B_pad, B_pad), :],
            emit_last_fn=None)
        enc = jnp.tanh(enc_h)                      # out_activ(h_n) (final step only)
        if E_pad > E:
            enc_out_ref[...] = jnp.concatenate(
                [enc, jnp.zeros((B_pad, E_pad - E), jnp.float32)], axis=1)
        else:
            enc_out_ref[...] = enc

        # ------------------------------ Decoder ------------------------------
        wih0d, _, b0d = dec_params[0]
        # Input is enc repeated over time -> projection is time-invariant.
        gx0 = (jnp.dot(enc, wih0d[...], preferred_element_type=jnp.float32)
               + b0d[...])
        dense_v = dense_ref[...]                   # hoisted dense-head load

        def emit(t, h_last):
            # per-step dense projection + lane-dense (B_pad, N_pad) store
            dec_out_ref[pl.ds(t * B_pad, B_pad), :] = jnp.dot(
                h_last, dense_v, preferred_element_type=jnp.float32)

        run_stage(dec_hidden, dec_params,
                  layer0_gate_fn=lambda t: gx0,
                  emit_last_fn=emit)

    return kernel


# ----------------------------------------------------------------------------
# Wrapper: layout prep + pallas_call
# ----------------------------------------------------------------------------
def lstm_ae_forward(x, enc_layers, dec_layers, dense_matrix):
    """x: (B, T, input_dim). Returns (enc_out (B, E), dec_out (B, T, input_dim))."""
    x = x.astype(jnp.float32)
    B, T, D_in = x.shape
    B_pad = _round_up(B, _SUBLANE)
    out_dim = dense_matrix.shape[1]
    N_pad = _round_up(out_dim, _LANE)

    # One entry transpose + batch pad; everything downstream is time-major and
    # flattened to a 2-D (T*B_pad, D) slab (no reshape ever touches the lane dim).
    x_t = jnp.transpose(x, (1, 0, 2))                        # (T, B, D)
    x_t = jnp.pad(x_t, ((0, 0), (0, B_pad - B), (0, 0)))     # (T, B_pad, D)
    x_flat = x_t.reshape(T * B_pad, D_in)

    # Kernel-friendly parameter layout:
    #   layer 0 of each stage : W_ih^T (f32, hoisted proj), W_hh^T (bf16), bias (f32)
    #   layers l>0            : [W_ih^T ; W_hh^T] fused (bf16), bias (f32)
    def prep_stage(layers):
        params, hidden = [], []
        for idx, (w_ih, w_hh, b_ih, b_hh) in enumerate(layers):
            H = w_hh.shape[1]
            hidden.append(H)
            b = (b_ih + b_hh).reshape(1, 4 * H).astype(jnp.float32)
            if idx == 0:
                params += [jnp.transpose(w_ih).astype(jnp.float32),   # (D, 4H)
                           jnp.transpose(w_hh).astype(jnp.bfloat16),  # (H, 4H)
                           b]
            else:
                wcomb = jnp.concatenate([jnp.transpose(w_ih),
                                         jnp.transpose(w_hh)], axis=0)  # (D+H, 4H)
                params += [wcomb.astype(jnp.bfloat16), b]
        return params, hidden

    enc_params, enc_hidden = prep_stage(enc_layers)
    dec_params, dec_hidden = prep_stage(dec_layers)
    E = enc_hidden[-1]
    E_pad = _round_up(E, _LANE)

    # Lane-pad the dense head so every decoder output store is a full-width slab.
    dense_pad = jnp.zeros((dense_matrix.shape[0], N_pad), jnp.float32)
    dense_pad = dense_pad.at[:, :out_dim].set(dense_matrix.astype(jnp.float32))

    in_arrays = [x_flat] + enc_params + dec_params + [dense_pad]
    in_specs = [pl.BlockSpec(a.shape, lambda: (0, 0)) for a in in_arrays]

    kernel = _make_ae_kernel(T, B_pad, enc_hidden, dec_hidden, E, E_pad)

    enc_out_p, dec_out_p = pl.pallas_call(
        kernel,
        out_shape=(jax.ShapeDtypeStruct((B_pad, E_pad), jnp.float32),
                   jax.ShapeDtypeStruct((T * B_pad, N_pad), jnp.float32)),
        in_specs=in_specs,
        out_specs=(pl.BlockSpec((B_pad, E_pad), lambda: (0, 0)),
                   pl.BlockSpec((T * B_pad, N_pad), lambda: (0, 0))),
        scratch_shapes=[pltpu.VMEM((T * B_pad, 4 * enc_hidden[0]), jnp.float32)],
        compiler_params=pltpu.CompilerParams(vmem_limit_bytes=32 * 1024 * 1024),
    )(*in_arrays)

    enc_out = enc_out_p[:B, :E]
    dec_out = dec_out_p[:, :out_dim].reshape(T, B_pad, out_dim)[:, :B, :]
    dec_out = jnp.transpose(dec_out, (1, 0, 2))               # (B, T, out_dim)
    return enc_out, dec_out


# ----------------------------------------------------------------------------
# Deterministic parameter init (shapes match nn.LSTM / nn.Parameter in __init__)
# ----------------------------------------------------------------------------
def init_lstm_params(key, input_size, hidden_size):
    k = 1.0 / jnp.sqrt(jnp.float32(hidden_size))
    ks = jax.random.split(key, 4)
    w_ih = jax.random.uniform(ks[0], (4 * hidden_size, input_size),
                              jnp.float32, -k, k)
    w_hh = jax.random.uniform(ks[1], (4 * hidden_size, hidden_size),
                              jnp.float32, -k, k)
    b_ih = jax.random.uniform(ks[2], (4 * hidden_size,), jnp.float32, -k, k)
    b_hh = jax.random.uniform(ks[3], (4 * hidden_size,), jnp.float32, -k, k)
    return (w_ih, w_hh, b_ih, b_hh)


def init_lstm_ae(key, input_dim, encoding_dim, h_dims):
    enc_dims = [input_dim] + h_dims + [encoding_dim]
    dec_dims = [encoding_dim] + h_dims[::-1] + [encoding_dim]
    keys = jax.random.split(key, len(enc_dims) + len(dec_dims))
    ki = iter(keys)
    enc_layers = [init_lstm_params(next(ki), enc_dims[i], enc_dims[i + 1])
                  for i in range(len(enc_dims) - 1)]
    dec_layers = [init_lstm_params(next(ki), dec_dims[i], dec_dims[i + 1])
                  for i in range(len(dec_dims) - 1)]
    dense = jax.random.uniform(next(ki), (dec_dims[-1], input_dim),
                               jnp.float32, 0.0, 1.0)   # torch.rand
    return enc_layers, dec_layers, dense


# ----------------------------------------------------------------------------
# Pure-JAX f32 reference (lax.scan) for correctness check
# ----------------------------------------------------------------------------
def _ref_lstm_layer(x, params):
    w_ih, w_hh, b_ih, b_hh = params
    H = w_hh.shape[1]
    B = x.shape[0]

    def step(carry, x_t):
        h, c = carry
        gates = x_t @ w_ih.T + h @ w_hh.T + b_ih + b_hh
        i = jax.nn.sigmoid(gates[:, :H])
        f = jax.nn.sigmoid(gates[:, H:2 * H])
        g = jnp.tanh(gates[:, 2 * H:3 * H])
        o = jax.nn.sigmoid(gates[:, 3 * H:])
        c = f * c + i * g
        h = o * jnp.tanh(c)
        return (h, c), h

    init = (jnp.zeros((B, H), jnp.float32), jnp.zeros((B, H), jnp.float32))
    (h_n, _), ys = jax.lax.scan(step, init, jnp.transpose(x, (1, 0, 2)))
    return jnp.transpose(ys, (1, 0, 2)), h_n


def _ref_forward(x, enc_layers, dec_layers, dense):
    B, T, _ = x.shape
    h = x
    for idx, p in enumerate(enc_layers):
        h, h_n = _ref_lstm_layer(h, p)
        if idx < len(enc_layers) - 1:
            h = jax.nn.sigmoid(h)
    enc_out = jnp.tanh(h_n)
    d = jnp.broadcast_to(enc_out[:, None, :], (B, T, enc_out.shape[-1]))
    for idx, p in enumerate(dec_layers):
        d, _ = _ref_lstm_layer(d, p)
        if idx < len(dec_layers) - 1:
            d = jax.nn.sigmoid(d)
    return enc_out, d @ dense


# ----------------------------------------------------------------------------
if __name__ == "__main__":
    B, T = 2, 8
    input_dim, encoding_dim, h_dims = 8, 32, [32]

    key = jax.random.PRNGKey(0)
    kx, kp = jax.random.split(key)
    x = jax.random.normal(kx, (B, T, input_dim), jnp.float32)
    enc_layers, dec_layers, dense = init_lstm_ae(kp, input_dim, encoding_dim, h_dims)

    enc_out, dec_out = jax.block_until_ready(
        lstm_ae_forward(x, enc_layers, dec_layers, dense))

    # Correctness check against pure-f32 reference.  Tolerance is loosened
    # (as flagged in the perf review) because the per-step recurrent matmuls
    # use bf16 weights/operands with f32 accumulation.
    ref_enc, ref_dec = _ref_forward(x, enc_layers, dec_layers, dense)
    assert enc_out.shape == (B, encoding_dim)
    assert dec_out.shape == (B, T, input_dim)
    assert jnp.allclose(enc_out, ref_enc, atol=3e-2, rtol=3e-2)
    assert jnp.allclose(dec_out, ref_dec, atol=3e-2, rtol=3e-2)

    print("KERNEL_OK")
</pallas_src>

<mosaic_0001>
module attributes {stable_mosaic.version = 11 : i64} {
  func.func @kernel(%arg0: memref<64x8xf32, #tpu.memory_space<vmem>>, %arg1: memref<8x128xf32, #tpu.memory_space<vmem>>, %arg2: memref<32x128xbf16, #tpu.memory_space<vmem>>, %arg3: memref<1x128xf32, #tpu.memory_space<vmem>>, %arg4: memref<64x128xbf16, #tpu.memory_space<vmem>>, %arg5: memref<1x128xf32, #tpu.memory_space<vmem>>, %arg6: memref<32x128xf32, #tpu.memory_space<vmem>>, %arg7: memref<32x128xbf16, #tpu.memory_space<vmem>>, %arg8: memref<1x128xf32, #tpu.memory_space<vmem>>, %arg9: memref<64x128xbf16, #tpu.memory_space<vmem>>, %arg10: memref<1x128xf32, #tpu.memory_space<vmem>>, %arg11: memref<32x128xf32, #tpu.memory_space<vmem>>, %arg12: memref<8x128xf32, #tpu.memory_space<vmem>>, %arg13: memref<64x128xf32, #tpu.memory_space<vmem>>, %arg14: memref<64x128xf32, #tpu.memory_space<vmem>>) attributes {dimension_semantics = [], scalar_prefetch = 0 : i64, scratch_operands = 1 : i64, tpu.core_type = #tpu.core_type<tc>} {
    %c0 = arith.constant 0 : index
    %c0_0 = arith.constant 0 : index
    %0 = vector.load %arg0[%c0, %c0_0] : memref<64x8xf32, #tpu.memory_space<vmem>>, vector<64x8xf32>
    %c0_1 = arith.constant 0 : index
    %c0_2 = arith.constant 0 : index
    %1 = vector.load %arg1[%c0_1, %c0_2] : memref<8x128xf32, #tpu.memory_space<vmem>>, vector<8x128xf32>
    %cst = arith.constant dense<0.000000e+00> : vector<64x128xf32>
    %2 = tpu.matmul %0, %1, %cst {dimension_numbers = #tpu.dot_dimension_numbers<[1], [0], [0], [1], [0, 0, 1, 1], [], []>} : vector<64x8xf32>, vector<8x128xf32>, vector<64x128xf32> -> vector<64x128xf32>
    %c0_3 = arith.constant 0 : index
    %c0_4 = arith.constant 0 : index
    %3 = vector.load %arg3[%c0_3, %c0_4] : memref<1x128xf32, #tpu.memory_space<vmem>>, vector<1x128xf32>
    %4 = vector.broadcast %3 : vector<1x128xf32> to vector<64x128xf32>
    %5 = arith.addf %2, %4 : vector<64x128xf32>
    %c0_5 = arith.constant 0 : index
    %c0_6 = arith.constant 0 : index
    %6 = vector.load %arg14[%c0_5, %c0_6] : memref<64x128xf32, #tpu.memory_space<vmem>>, vector<64x128xf32>
    tpu.vector_store %arg14[%c0_5, %c0_6], %5 {strides = array<i32>} : memref<64x128xf32, #tpu.memory_space<vmem>>, vector<64x128xf32>,
    %c0_7 = arith.constant 0 : index
    %c0_8 = arith.constant 0 : index
    %7 = vector.load %arg2[%c0_7, %c0_8] : memref<32x128xbf16, #tpu.memory_space<vmem>>, vector<32x128xbf16>
    %c0_9 = arith.constant 0 : index
    %c0_10 = arith.constant 0 : index
    %8 = vector.load %arg4[%c0_9, %c0_10] : memref<64x128xbf16, #tpu.memory_space<vmem>>, vector<64x128xbf16>
    %c0_11 = arith.constant 0 : index
    %c0_12 = arith.constant 0 : index
    %9 = vector.load %arg5[%c0_11, %c0_12] : memref<1x128xf32, #tpu.memory_space<vmem>>, vector<1x128xf32>
    %10 = tpu.iota {dimensions = array<i32: 1>} : vector<8x128xi32>
    %c64_i32 = arith.constant 64 : i32
    %11 = vector.broadcast %c64_i32 : i32 to vector<8x128xi32>
    %12 = arith.cmpi sge, %10, %11 : vector<8x128xi32>
    %c96_i32 = arith.constant 96 : i32
    %13 = vector.broadcast %c96_i32 : i32 to vector<8x128xi32>
    %14 = arith.cmpi slt, %10, %13 : vector<8x128xi32>
    %15 = arith.andi %12, %14 : vector<8x128xi1>
    %16 = tpu.iota {dimensions = array<i32: 1>} : vector<8x128xi32>
    %c64_i32_13 = arith.constant 64 : i32
    %17 = vector.broadcast %c64_i32_13 : i32 to vector<8x128xi32>
    %18 = arith.cmpi sge, %16, %17 : vector<8x128xi32>
    %c96_i32_14 = arith.constant 96 : i32
    %19 = vector.broadcast %c96_i32_14 : i32 to vector<8x128xi32>
    %20 = arith.cmpi slt, %16, %19 : vector<8x128xi32>
    %21 = arith.andi %18, %20 : vector<8x128xi1>
    %cst_15 = arith.constant 0.000000e+00 : f32
    %22 = vector.broadcast %cst_15 : f32 to vector<8x32xf32>
    %cst_16 = arith.constant 0.000000e+00 : f32
    %23 = vector.broadcast %cst_16 : f32 to vector<8x32xf32>
    %cst_17 = arith.constant 0.000000e+00 : f32
    %24 = vector.broadcast %cst_17 : f32 to vector<8x32xf32>
    %cst_18 = arith.constant 0.000000e+00 : f32
    %25 = vector.broadcast %cst_18 : f32 to vector<8x32xf32>
    %c0_19 = arith.constant 0 : index
    %c0_20 = arith.constant 0 : index
    %26 = vector.load %arg14[%c0_19, %c0_20] : memref<64x128xf32, #tpu.memory_space<vmem>>, vector<8x128xf32>
    %27 = arith.truncf %22 : vector<8x32xf32> to vector<8x32xbf16>
    %cst_21 = arith.constant dense<0.000000e+00> : vector<8x128xf32>
    %28 = tpu.matmul %27, %7, %cst_21 {dimension_numbers = #tpu.dot_dimension_numbers<[1], [0], [0], [1], [0, 0, 1, 1], [], []>} : vector<8x32xbf16>, vector<32x128xbf16>, vector<8x128xf32> -> vector<8x128xf32>
    %29 = arith.addf %26, %28 : vector<8x128xf32>
    %30 = arith.negf %29 : vector<8x128xf32>
    %31 = math.exp %30 : vector<8x128xf32>
    %cst_22 = arith.constant 1.000000e+00 : f32
    %32 = vector.broadcast %cst_22 : f32 to vector<8x128xf32>
    %33 = arith.addf %32, %31 : vector<8x128xf32>
    %34 = arith.divf %32, %33 : vector<8x128xf32>
    %35 = math.tanh %29 : vector<8x128xf32>
    %36 = arith.select %15, %35, %34 : vector<8x128xi1>, vector<8x128xf32>
    %37 = vector.extract_strided_slice %36 {offsets = [0, 0], sizes = [8, 32], strides = [1, 1]} : vector<8x128xf32> to vector<8x32xf32>
    %38 = vector.extract_strided_slice %36 {offsets = [0, 32], sizes = [8, 32], strides = [1, 1]} : vector<8x128xf32> to vector<8x32xf32>
    %39 = vector.extract_strided_slice %36 {offsets = [0, 64], sizes = [8, 32], strides = [1, 1]} : vector<8x128xf32> to vector<8x32xf32>
    %40 = vector.extract_strided_slice %36 {offsets = [0, 96], sizes = [8, 32], strides = [1, 1]} : vector<8x128xf32> to vector<8x32xf32>
    %41 = arith.mulf %38, %24 : vector<8x32xf32>
    %42 = arith.mulf %37, %39 : vector<8x32xf32>
    %43 = arith.addf %41, %42 : vector<8x32xf32>
    %44 = math.tanh %43 : vector<8x32xf32>
    %45 = arith.mulf %40, %44 : vector<8x32xf32>
    %46 = arith.negf %45 : vector<8x32xf32>
    %47 = math.exp %46 : vector<8x32xf32>
    %cst_23 = arith.constant 1.000000e+00 : f32
    %48 = vector.broadcast %cst_23 : f32 to vector<8x32xf32>
    %49 = arith.addf %48, %47 : vector<8x32xf32>
    %50 = arith.divf %48, %49 : vector<8x32xf32>
    %51 = tpu.concatenate %50, %23 in 1 : vector<8x32xf32>, vector<8x32xf32> -> vector<8x64xf32>
    %52 = arith.truncf %51 : vector<8x64xf32> to vector<8x64xbf16>
    %cst_24 = arith.constant dense<0.000000e+00> : vector<8x128xf32>
    %53 = tpu.matmul %52, %8, %cst_24 {dimension_numbers = #tpu.dot_dimension_numbers<[1], [0], [0], [1], [0, 0, 1, 1], [], []>} : vector<8x64xbf16>, vector<64x128xbf16>, vector<8x128xf32> -> vector<8x128xf32>
    %54 = vector.broadcast %9 : vector<1x128xf32> to vector<8x128xf32>
    %55 = arith.addf %53, %54 : vector<8x128xf32>
    %56 = arith.negf %55 : vector<8x128xf32>
    %57 = math.exp %56 : vector<8x128xf32>
    %cst_25 = arith.constant 1.000000e+00 : f32
    %58 = vector.broadcast %cst_25 : f32 to vector<8x128xf32>
    %59 = arith.addf %58, %57 : vector<8x128xf32>
    %60 = arith.divf %58, %59 : vector<8x128xf32>
    %61 = math.tanh %55 : vector<8x128xf32>
    %62 = arith.select %21, %61, %60 : vector<8x128xi1>, vector<8x128xf32>
    %63 = vector.extract_strided_slice %62 {offsets = [0, 0], sizes = [8, 32], strides = [1, 1]} : vector<8x128xf32> to vector<8x32xf32>
    %64 = vector.extract_strided_slice %62 {offsets = [0, 32], sizes = [8, 32], strides = [1, 1]} : vector<8x128xf32> to vector<8x32xf32>
    %65 = vector.extract_strided_slice %62 {offsets = [0, 64], sizes = [8, 32], strides = [1, 1]} : vector<8x128xf32> to vector<8x32xf32>
    %66 = vector.extract_strided_slice %62 {offsets = [0, 96], sizes = [8, 32], strides = [1, 1]} : vector<8x128xf32> to vector<8x32xf32>
    %67 = arith.mulf %64, %25 : vector<8x32xf32>
    %68 = arith.mulf %63, %65 : vector<8x32xf32>
    %69 = arith.addf %67, %68 : vector<8x32xf32>
    %70 = math.tanh %69 : vector<8x32xf32>
    %71 = arith.mulf %66, %70 : vector<8x32xf32>
    %c8 = arith.constant 8 : index
    %c0_26 = arith.constant 0 : index
    %72 = vector.load %arg14[%c8, %c0_26] : memref<64x128xf32, #tpu.memory_space<vmem>>, vector<8x128xf32>
    %73 = arith.truncf %45 : vector<8x32xf32> to vector<8x32xbf16>
    %cst_27 = arith.constant dense<0.000000e+00> : vector<8x128xf32>
    %74 = tpu.matmul %73, %7, %cst_27 {dimension_numbers = #tpu.dot_dimension_numbers<[1], [0], [0], [1], [0, 0, 1, 1], [], []>} : vector<8x32xbf16>, vector<32x128xbf16>, vector<8x128xf32> -> vector<8x128xf32>
    %75 = arith.addf %72, %74 : vector<8x128xf32>
    %76 = arith.negf %75 : vector<8x128xf32>
    %77 = math.exp %76 : vector<8x128xf32>
    %cst_28 = arith.constant 1.000000e+00 : f32
    %78 = vector.broadcast %cst_28 : f32 to vector<8x128xf32>
    %79 = arith.addf %78, %77 : vector<8x128xf32>
    %80 = arith.divf %78, %79 : vector<8x128xf32>
    %81 = math.tanh %75 : vector<8x128xf32>
    %82 = arith.select %15, %81, %80 : vector<8x128xi1>, vector<8x128xf32>
    %83 = vector.extract_strided_slice %82 {offsets = [0, 0], sizes = [8, 32], strides = [1, 1]} : vector<8x128xf32> to vector<8x32xf32>
    %84 = vector.extract_strided_slice %82 {offsets = [0, 32], sizes = [8, 32], strides = [1, 1]} : vector<8x128xf32> to vector<8x32xf32>
    %85 = vector.extract_strided_slice %82 {offsets = [0, 64], sizes = [8, 32], strides = [1, 1]} : vector<8x128xf32> to vector<8x32xf32>
    %86 = vector.extract_strided_slice %82 {offsets = [0, 96], sizes = [8, 32], strides = [1, 1]} : vector<8x128xf32> to vector<8x32xf32>
    %87 = arith.mulf %84, %43 : vector<8x32xf32>
    %88 = arith.mulf %83, %85 : vector<8x32xf32>
    %89 = arith.addf %87, %88 : vector<8x32xf32>
    %90 = math.tanh %89 : vector<8x32xf32>
    %91 = arith.mulf %86, %90 : vector<8x32xf32>
    %92 = arith.negf %91 : vector<8x32xf32>
    %93 = math.exp %92 : vector<8x32xf32>
    %cst_29 = arith.constant 1.000000e+00 : f32
    %94 = vector.broadcast %cst_29 : f32 to vector<8x32xf32>
    %95 = arith.addf %94, %93 : vector<8x32xf32>
    %96 = arith.divf %94, %95 : vector<8x32xf32>
    %97 = tpu.concatenate %96, %71 in 1 : vector<8x32xf32>, vector<8x32xf32> -> vector<8x64xf32>
    %98 = arith.truncf %97 : vector<8x64xf32> to vector<8x64xbf16>
    %cst_30 = arith.constant dense<0.000000e+00> : vector<8x128xf32>
    %99 = tpu.matmul %98, %8, %cst_30 {dimension_numbers = #tpu.dot_dimension_numbers<[1], [0], [0], [1], [0, 0, 1, 1], [], []>} : vector<8x64xbf16>, vector<64x128xbf16>, vector<8x128xf32> -> vector<8x128xf32>
    %100 = vector.broadcast %9 : vector<1x128xf32> to vector<8x128xf32>
    %101 = arith.addf %99, %100 : vector<8x128xf32>
    %102 = arith.negf %101 : vector<8x128xf32>
    %103 = math.exp %102 : vector<8x128xf32>
    %cst_31 = arith.constant 1.000000e+00 : f32
    %104 = vector.broadcast %cst_31 : f32 to vector<8x128xf32>
    %105 = arith.addf %104, %103 : vector<8x128xf32>
    %106 = arith.divf %104, %105 : vector<8x128xf32>
    %107 = math.tanh %101 : vector<8x128xf32>
    %108 = arith.select %21, %107, %106 : vector<8x128xi1>, vector<8x128xf32>
    %109 = vector.extract_strided_slice %108 {offsets = [0, 0], sizes = [8, 32], strides = [1, 1]} : vector<8x128xf32> to vector<8x32xf32>
    %110 = vector.extract_strided_slice %108 {offsets = [0, 32], sizes = [8, 32], strides = [1, 1]} : vector<8x128xf32> to vector<8x32xf32>
    %111 = vector.extract_strided_slice %108 {offsets = [0, 64], sizes = [8, 32], strides = [1, 1]} : vector<8x128xf32> to vector<8x32xf32>
    %112 = vector.extract_strided_slice %108 {offsets = [0, 96], sizes = [8, 32], strides = [1, 1]} : vector<8x128xf32> to vector<8x32xf32>
    %113 = arith.mulf %110, %69 : vector<8x32xf32>
    %114 = arith.mulf %109, %111 : vector<8x32xf32>
    %115 = arith.addf %113, %114 : vector<8x32xf32>
    %116 = math.tanh %115 : vector<8x32xf32>
    %117 = arith.mulf %112, %116 : vector<8x32xf32>
    %c16 = arith.constant 16 : index
    %c0_32 = arith.constant 0 : index
    %118 = vector.load %arg14[%c16, %c0_32] : memref<64x128xf32, #tpu.memory_space<vmem>>, vector<8x128xf32>
    %119 = arith.truncf %91 : vector<8x32xf32> to vector<8x32xbf16>
    %cst_33 = arith.constant dense<0.000000e+00> : vector<8x128xf32>
    %120 = tpu.matmul %119, %7, %cst_33 {dimension_numbers = #tpu.dot_dimension_numbers<[1], [0], [0], [1], [0, 0, 1, 1], [], []>} : vector<8x32xbf16>, vector<32x128xbf16>, vector<8x128xf32> -> vector<8x128xf32>
    %121 = arith.addf %118, %120 : vector<8x128xf32>
    %122 = arith.negf %121 : vector<8x128xf32>
    %123 = math.exp %122 : vector<8x128xf32>
    %cst_34 = arith.constant 1.000000e+00 : f32
    %124 = vector.broadcast %cst_34 : f32 to vector<8x128xf32>
    %125 = arith.addf %124, %123 : vector<8x128xf32>
    %126 = arith.divf %124, %125 : vector<8x128xf32>
    %127 = math.tanh %121 : vector<8x128xf32>
    %128 = arith.select %15, %127, %126 : vector<8x128xi1>, vector<8x128xf32>
    %129 = vector.extract_strided_slice %128 {offsets = [0, 0], sizes = [8, 32], strides = [1, 1]} : vector<8x128xf32> to vector<8x32xf32>
    %130 = vector.extract_strided_slice %128 {offsets = [0, 32], sizes = [8, 32], strides = [1, 1]} : vector<8x128xf32> to vector<8x32xf32>
    %131 = vector.extract_strided_slice %128 {offsets = [0, 64], sizes = [8, 32], strides = [1, 1]} : vector<8x128xf32> to vector<8x32xf32>
    %132 = vector.extract_strided_slice %128 {offsets = [0, 96], sizes = [8, 32], strides = [1, 1]} : vector<8x128xf32> to vector<8x32xf32>
    %133 = arith.mulf %130, %89 : vector<8x32xf32>
    %134 = arith.mulf %129, %131 : vector<8x32xf32>
    %135 = arith.addf %133, %134 : vector<8x32xf32>
    %136 = math.tanh %135 : vector<8x32xf32>
    %137 = arith.mulf %132, %136 : vector<8x32xf32>
    %138 = arith.negf %137 : vector<8x32xf32>
    %139 = math.exp %138 : vector<8x32xf32>
    %cst_35 = arith.constant 1.000000e+00 : f32
    %140 = vector.broadcast %cst_35 : f32 to vector<8x32xf32>
    %141 = arith.addf %140, %139 : vector<8x32xf32>
    %142 = arith.divf %140, %141 : vector<8x32xf32>
    %143 = tpu.concatenate %142, %117 in 1 : vector<8x32xf32>, vector<8x32xf32> -> vector<8x64xf32>
    %144 = arith.truncf %143 : vector<8x64xf32> to vector<8x64xbf16>
    %cst_36 = arith.constant dense<0.000000e+00> : vector<8x128xf32>
    %145 = tpu.matmul %144, %8, %cst_36 {dimension_numbers = #tpu.dot_dimension_numbers<[1], [0], [0], [1], [0, 0, 1, 1], [], []>} : vector<8x64xbf16>, vector<64x128xbf16>, vector<8x128xf32> -> vector<8x128xf32>
    %146 = vector.broadcast %9 : vector<1x128xf32> to vector<8x128xf32>
    %147 = arith.addf %145, %146 : vector<8x128xf32>
    %148 = arith.negf %147 : vector<8x128xf32>
    %149 = math.exp %148 : vector<8x128xf32>
    %cst_37 = arith.constant 1.000000e+00 : f32
    %150 = vector.broadcast %cst_37 : f32 to vector<8x128xf32>
    %151 = arith.addf %150, %149 : vector<8x128xf32>
    %152 = arith.divf %150, %151 : vector<8x128xf32>
    %153 = math.tanh %147 : vector<8x128xf32>
    %154 = arith.select %21, %153, %152 : vector<8x128xi1>, vector<8x128xf32>
    %155 = vector.extract_strided_slice %154 {offsets = [0, 0], sizes = [8, 32], strides = [1, 1]} : vector<8x128xf32> to vector<8x32xf32>
    %156 = vector.extract_strided_slice %154 {offsets = [0, 32], sizes = [8, 32], strides = [1, 1]} : vector<8x128xf32> to vector<8x32xf32>
    %157 = vector.extract_strided_slice %154 {offsets = [0, 64], sizes = [8, 32], strides = [1, 1]} : vector<8x128xf32> to vector<8x32xf32>
    %158 = vector.extract_strided_slice %154 {offsets = [0, 96], sizes = [8, 32], strides = [1, 1]} : vector<8x128xf32> to vector<8x32xf32>
    %159 = arith.mulf %156, %115 : vector<8x32xf32>
    %160 = arith.mulf %155, %157 : vector<8x32xf32>
    %161 = arith.addf %159, %160 : vector<8x32xf32>
    %162 = math.tanh %161 : vector<8x32xf32>
    %163 = arith.mulf %158, %162 : vector<8x32xf32>
    %c24 = arith.constant 24 : index
    %c0_38 = arith.constant 0 : index
    %164 = vector.load %arg14[%c24, %c0_38] : memref<64x128xf32, #tpu.memory_space<vmem>>, vector<8x128xf32>
    %165 = arith.truncf %137 : vector<8x32xf32> to vector<8x32xbf16>
    %cst_39 = arith.constant dense<0.000000e+00> : vector<8x128xf32>
    %166 = tpu.matmul %165, %7, %cst_39 {dimension_numbers = #tpu.dot_dimension_numbers<[1], [0], [0], [1], [0, 0, 1, 1], [], []>} : vector<8x32xbf16>, vector<32x128xbf16>, vector<8x128xf32> -> vector<8x128xf32>
    %167 = arith.addf %164, %166 : vector<8x128xf32>
    %168 = arith.negf %167 : vector<8x128xf32>
    %169 = math.exp %168 : vector<8x128xf32>
    %cst_40 = arith.constant 1.000000e+00 : f32
    %170 = vector.broadcast %cst_40 : f32 to vector<8x128xf32>
    %171 = arith.addf %170, %169 : vector<8x128xf32>
    %172 = arith.divf %170, %171 : vector<8x128xf32>
    %173 = math.tanh %167 : vector<8x128xf32>
    %174 = arith.select %15, %173, %172 : vector<8x128xi1>, vector<8x128xf32>
    %175 = vector.extract_strided_slice %174 {offsets = [0, 0], sizes = [8, 32], strides = [1, 1]} : vector<8x128xf32> to vector<8x32xf32>
    %176 = vector.extract_strided_slice %174 {offsets = [0, 32], sizes = [8, 32], strides = [1, 1]} : vector<8x128xf32> to vector<8x32xf32>
    %177 = vector.extract_strided_slice %174 {offsets = [0, 64], sizes = [8, 32], strides = [1, 1]} : vector<8x128xf32> to vector<8x32xf32>
    %178 = vector.extract_strided_slice %174 {offsets = [0, 96], sizes = [8, 32], strides = [1, 1]} : vector<8x128xf32> to vector<8x32xf32>
    %179 = arith.mulf %176, %135 : vector<8x32xf32>
    %180 = arith.mulf %175, %177 : vector<8x32xf32>
    %181 = arith.addf %179, %180 : vector<8x32xf32>
    %182 = math.tanh %181 : vector<8x32xf32>
    %183 = arith.mulf %178, %182 : vector<8x32xf32>
    %184 = arith.negf %183 : vector<8x32xf32>
    %185 = math.exp %184 : vector<8x32xf32>
    %cst_41 = arith.constant 1.000000e+00 : f32
    %186 = vector.broadcast %cst_41 : f32 to vector<8x32xf32>
    %187 = arith.addf %186, %185 : vector<8x32xf32>
    %188 = arith.divf %186, %187 : vector<8x32xf32>
    %189 = tpu.concatenate %188, %163 in 1 : vector<8x32xf32>, vector<8x32xf32> -> vector<8x64xf32>
    %190 = arith.truncf %189 : vector<8x64xf32> to vector<8x64xbf16>
    %cst_42 = arith.constant dense<0.000000e+00> : vector<8x128xf32>
    %191 = tpu.matmul %190, %8, %cst_42 {dimension_numbers = #tpu.dot_dimension_numbers<[1], [0], [0], [1], [0, 0, 1, 1], [], []>} : vector<8x64xbf16>, vector<64x128xbf16>, vector<8x128xf32> -> vector<8x128xf32>
    %192 = vector.broadcast %9 : vector<1x128xf32> to vector<8x128xf32>
    %193 = arith.addf %191, %192 : vector<8x128xf32>
    %194 = arith.negf %193 : vector<8x128xf32>
    %195 = math.exp %194 : vector<8x128xf32>
    %cst_43 = arith.constant 1.000000e+00 : f32
    %196 = vector.broadcast %cst_43 : f32 to vector<8x128xf32>
    %197 = arith.addf %196, %195 : vector<8x128xf32>
    %198 = arith.divf %196, %197 : vector<8x128xf32>
    %199 = math.tanh %193 : vector<8x128xf32>
    %200 = arith.select %21, %199, %198 : vector<8x128xi1>, vector<8x128xf32>
    %201 = vector.extract_strided_slice %200 {offsets = [0, 0], sizes = [8, 32], strides = [1, 1]} : vector<8x128xf32> to vector<8x32xf32>
    %202 = vector.extract_strided_slice %200 {offsets = [0, 32], sizes = [8, 32], strides = [1, 1]} : vector<8x128xf32> to vector<8x32xf32>
    %203 = vector.extract_strided_slice %200 {offsets = [0, 64], sizes = [8, 32], strides = [1, 1]} : vector<8x128xf32> to vector<8x32xf32>
    %204 = vector.extract_strided_slice %200 {offsets = [0, 96], sizes = [8, 32], strides = [1, 1]} : vector<8x128xf32> to vector<8x32xf32>
    %205 = arith.mulf %202, %161 : vector<8x32xf32>
    %206 = arith.mulf %201, %203 : vector<8x32xf32>
    %207 = arith.addf %205, %206 : vector<8x32xf32>
    %208 = math.tanh %207 : vector<8x32xf32>
    %209 = arith.mulf %204, %208 : vector<8x32xf32>
    %c32 = arith.constant 32 : index
    %c0_44 = arith.constant 0 : index
    %210 = vector.load %arg14[%c32, %c0_44] : memref<64x128xf32, #tpu.memory_space<vmem>>, vector<8x128xf32>
    %211 = arith.truncf %183 : vector<8x32xf32> to vector<8x32xbf16>
    %cst_45 = arith.constant dense<0.000000e+00> : vector<8x128xf32>
    %212 = tpu.matmul %211, %7, %cst_45 {dimension_numbers = #tpu.dot_dimension_numbers<[1], [0], [0], [1], [0, 0, 1, 1], [], []>} : vector<8x32xbf16>, vector<32x128xbf16>, vector<8x128xf32> -> vector<8x128xf32>
    %213 = arith.addf %210, %212 : vector<8x128xf32>
    %214 = arith.negf %213 : vector<8x128xf32>
    %215 = math.exp %214 : vector<8x128xf32>
    %cst_46 = arith.constant 1.000000e+00 : f32
    %216 = vector.broadcast %cst_46 : f32 to vector<8x128xf32>
    %217 = arith.addf %216, %215 : vector<8x128xf32>
    %218 = arith.divf %216, %217 : vector<8x128xf32>
    %219 = math.tanh %213 : vector<8x128xf32>
    %220 = arith.select %15, %219, %218 : vector<8x128xi1>, vector<8x128xf32>
    %221 = vector.extract_strided_slice %220 {offsets = [0, 0], sizes = [8, 32], strides = [1, 1]} : vector<8x128xf32> to vector<8x32xf32>
    %222 = vector.extract_strided_slice %220 {offsets = [0, 32], sizes = [8, 32], strides = [1, 1]} : vector<8x128xf32> to vector<8x32xf32>
    %223 = vector.extract_strided_slice %220 {offsets = [0, 64], sizes = [8, 32], strides = [1, 1]} : vector<8x128xf32> to vector<8x32xf32>
    %224 = vector.extract_strided_slice %220 {offsets = [0, 96], sizes = [8, 32], strides = [1, 1]} : vector<8x128xf32> to vector<8x32xf32>
    %225 = arith.mulf %222, %181 : vector<8x32xf32>
    %226 = arith.mulf %221, %223 : vector<8x32xf32>
    %227 = arith.addf %225, %226 : vector<8x32xf32>
    %228 = math.tanh %227 : vector<8x32xf32>
    %229 = arith.mulf %224, %228 : vector<8x32xf32>
    %230 = arith.negf %229 : vector<8x32xf32>
    %231 = math.exp %230 : vector<8x32xf32>
    %cst_47 = arith.constant 1.000000e+00 : f32
    %232 = vector.broadcast %cst_47 : f32 to vector<8x32xf32>
    %233 = arith.addf %232, %231 : vector<8x32xf32>
    %234 = arith.divf %232, %233 : vector<8x32xf32>
    %235 = tpu.concatenate %234, %209 in 1 : vector<8x32xf32>, vector<8x32xf32> -> vector<8x64xf32>
    %236 = arith.truncf %235 : vector<8x64xf32> to vector<8x64xbf16>
    %cst_48 = arith.constant dense<0.000000e+00> : vector<8x128xf32>
    %237 = tpu.matmul %236, %8, %cst_48 {dimension_numbers = #tpu.dot_dimension_numbers<[1], [0], [0], [1], [0, 0, 1, 1], [], []>} : vector<8x64xbf16>, vector<64x128xbf16>, vector<8x128xf32> -> vector<8x128xf32>
    %238 = vector.broadcast %9 : vector<1x128xf32> to vector<8x128xf32>
    %239 = arith.addf %237, %238 : vector<8x128xf32>
    %240 = arith.negf %239 : vector<8x128xf32>
    %241 = math.exp %240 : vector<8x128xf32>
    %cst_49 = arith.constant 1.000000e+00 : f32
    %242 = vector.broadcast %cst_49 : f32 to vector<8x128xf32>
    %243 = arith.addf %242, %241 : vector<8x128xf32>
    %244 = arith.divf %242, %243 : vector<8x128xf32>
    %245 = math.tanh %239 : vector<8x128xf32>
    %246 = arith.select %21, %245, %244 : vector<8x128xi1>, vector<8x128xf32>
    %247 = vector.extract_strided_slice %246 {offsets = [0, 0], sizes = [8, 32], strides = [1, 1]} : vector<8x128xf32> to vector<8x32xf32>
    %248 = vector.extract_strided_slice %246 {offsets = [0, 32], sizes = [8, 32], strides = [1, 1]} : vector<8x128xf32> to vector<8x32xf32>
    %249 = vector.extract_strided_slice %246 {offsets = [0, 64], sizes = [8, 32], strides = [1, 1]} : vector<8x128xf32> to vector<8x32xf32>
    %250 = vector.extract_strided_slice %246 {offsets = [0, 96], sizes = [8, 32], strides = [1, 1]} : vector<8x128xf32> to vector<8x32xf32>
    %251 = arith.mulf %248, %207 : vector<8x32xf32>
    %252 = arith.mulf %247, %249 : vector<8x32xf32>
    %253 = arith.addf %251, %252 : vector<8x32xf32>
    %254 = math.tanh %253 : vector<8x32xf32>
    %255 = arith.mulf %250, %254 : vector<8x32xf32>
    %c40 = arith.constant 40 : index
    %c0_50 = arith.constant 0 : index
    %256 = vector.load %arg14[%c40, %c0_50] : memref<64x128xf32, #tpu.memory_space<vmem>>, vector<8x128xf32>
    %257 = arith.truncf %229 : vector<8x32xf32> to vector<8x32xbf16>
    %cst_51 = arith.constant dense<0.000000e+00> : vector<8x128xf32>
    %258 = tpu.matmul %257, %7, %cst_51 {dimension_numbers = #tpu.dot_dimension_numbers<[1], [0], [0], [1], [0, 0, 1, 1], [], []>} : vector<8x32xbf16>, vector<32x128xbf16>, vector<8x128xf32> -> vector<8x128xf32>
    %259 = arith.addf %256, %258 : vector<8x128xf32>
    %260 = arith.negf %259 : vector<8x128xf32>
    %261 = math.exp %260 : vector<8x128xf32>
    %cst_52 = arith.constant 1.000000e+00 : f32
    %262 = vector.broadcast %cst_52 : f32 to vector<8x128xf32>
    %263 = arith.addf %262, %261 : vector<8x128xf32>
    %264 = arith.divf %262, %263 : vector<8x128xf32>
    %265 = math.tanh %259 : vector<8x128xf32>
    %266 = arith.select %15, %265, %264 : vector<8x128xi1>, vector<8x128xf32>
    %267 = vector.extract_strided_slice %266 {offsets = [0, 0], sizes = [8, 32], strides = [1, 1]} : vector<8x128xf32> to vector<8x32xf32>
    %268 = vector.extract_strided_slice %266 {offsets = [0, 32], sizes = [8, 32], strides = [1, 1]} : vector<8x128xf32> to vector<8x32xf32>
    %269 = vector.extract_strided_slice %266 {offsets = [0, 64], sizes = [8, 32], strides = [1, 1]} : vector<8x128xf32> to vector<8x32xf32>
    %270 = vector.extract_strided_slice %266 {offsets = [0, 96], sizes = [8, 32], strides = [1, 1]} : vector<8x128xf32> to vector<8x32xf32>
    %271 = arith.mulf %268, %227 : vector<8x32xf32>
    %272 = arith.mulf %267, %269 : vector<8x32xf32>
    %273 = arith.addf %271, %272 : vector<8x32xf32>
    %274 = math.tanh %273 : vector<8x32xf32>
    %275 = arith.mulf %270, %274 : vector<8x32xf32>
    %276 = arith.negf %275 : vector<8x32xf32>
    %277 = math.exp %276 : vector<8x32xf32>
    %cst_53 = arith.constant 1.000000e+00 : f32
    %278 = vector.broadcast %cst_53 : f32 to vector<8x32xf32>
    %279 = arith.addf %278, %277 : vector<8x32xf32>
    %280 = arith.divf %278, %279 : vector<8x32xf32>
    %281 = tpu.concatenate %280, %255 in 1 : vector<8x32xf32>, vector<8x32xf32> -> vector<8x64xf32>
    %282 = arith.truncf %281 : vector<8x64xf32> to vector<8x64xbf16>
    %cst_54 = arith.constant dense<0.000000e+00> : vector<8x128xf32>
    %283 = tpu.matmul %282, %8, %cst_54 {dimension_numbers = #tpu.dot_dimension_numbers<[1], [0], [0], [1], [0, 0, 1, 1], [], []>} : vector<8x64xbf16>, vector<64x128xbf16>, vector<8x128xf32> -> vector<8x128xf32>
    %284 = vector.broadcast %9 : vector<1x128xf32> to vector<8x128xf32>
    %285 = arith.addf %283, %284 : vector<8x128xf32>
    %286 = arith.negf %285 : vector<8x128xf32>
    %287 = math.exp %286 : vector<8x128xf32>
    %cst_55 = arith.constant 1.000000e+00 : f32
    %288 = vector.broadcast %cst_55 : f32 to vector<8x128xf32>
    %289 = arith.addf %288, %287 : vector<8x128xf32>
    %290 = arith.divf %288, %289 : vector<8x128xf32>
    %291 = math.tanh %285 : vector<8x128xf32>
    %292 = arith.select %21, %291, %290 : vector<8x128xi1>, vector<8x128xf32>
    %293 = vector.extract_strided_slice %292 {offsets = [0, 0], sizes = [8, 32], strides = [1, 1]} : vector<8x128xf32> to vector<8x32xf32>
    %294 = vector.extract_strided_slice %292 {offsets = [0, 32], sizes = [8, 32], strides = [1, 1]} : vector<8x128xf32> to vector<8x32xf32>
    %295 = vector.extract_strided_slice %292 {offsets = [0, 64], sizes = [8, 32], strides = [1, 1]} : vector<8x128xf32> to vector<8x32xf32>
    %296 = vector.extract_strided_slice %292 {offsets = [0, 96], sizes = [8, 32], strides = [1, 1]} : vector<8x128xf32> to vector<8x32xf32>
    %297 = arith.mulf %294, %253 : vector<8x32xf32>
    %298 = arith.mulf %293, %295 : vector<8x32xf32>
    %299 = arith.addf %297, %298 : vector<8x32xf32>
    %300 = math.tanh %299 : vector<8x32xf32>
    %301 = arith.mulf %296, %300 : vector<8x32xf32>
    %c48 = arith.constant 48 : index
    %c0_56 = arith.constant 0 : index
    %302 = vector.load %arg14[%c48, %c0_56] : memref<64x128xf32, #tpu.memory_space<vmem>>, vector<8x128xf32>
    %303 = arith.truncf %275 : vector<8x32xf32> to vector<8x32xbf16>
    %cst_57 = arith.constant dense<0.000000e+00> : vector<8x128xf32>
    %304 = tpu.matmul %303, %7, %cst_57 {dimension_numbers = #tpu.dot_dimension_numbers<[1], [0], [0], [1], [0, 0, 1, 1], [], []>} : vector<8x32xbf16>, vector<32x128xbf16>, vector<8x128xf32> -> vector<8x128xf32>
    %305 = arith.addf %302, %304 : vector<8x128xf32>
    %306 = arith.negf %305 : vector<8x128xf32>
    %307 = math.exp %306 : vector<8x128xf32>
    %cst_58 = arith.constant 1.000000e+00 : f32
    %308 = vector.broadcast %cst_58 : f32 to vector<8x128xf32>
    %309 = arith.addf %308, %307 : vector<8x128xf32>
    %310 = arith.divf %308, %309 : vector<8x128xf32>
    %311 = math.tanh %305 : vector<8x128xf32>
    %312 = arith.select %15, %311, %310 : vector<8x128xi1>, vector<8x128xf32>
    %313 = vector.extract_strided_slice %312 {offsets = [0, 0], sizes = [8, 32], strides = [1, 1]} : vector<8x128xf32> to vector<8x32xf32>
    %314 = vector.extract_strided_slice %312 {offsets = [0, 32], sizes = [8, 32], strides = [1, 1]} : vector<8x128xf32> to vector<8x32xf32>
    %315 = vector.extract_strided_slice %312 {offsets = [0, 64], sizes = [8, 32], strides = [1, 1]} : vector<8x128xf32> to vector<8x32xf32>
    %316 = vector.extract_strided_slice %312 {offsets = [0, 96], sizes = [8, 32], strides = [1, 1]} : vector<8x128xf32> to vector<8x32xf32>
    %317 = arith.mulf %314, %273 : vector<8x32xf32>
    %318 = arith.mulf %313, %315 : vector<8x32xf32>
    %319 = arith.addf %317, %318 : vector<8x32xf32>
    %320 = math.tanh %319 : vector<8x32xf32>
    %321 = arith.mulf %316, %320 : vector<8x32xf32>
    %322 = arith.negf %321 : vector<8x32xf32>
    %323 = math.exp %322 : vector<8x32xf32>
    %cst_59 = arith.constant 1.000000e+00 : f32
    %324 = vector.broadcast %cst_59 : f32 to vector<8x32xf32>
    %325 = arith.addf %324, %323 : vector<8x32xf32>
    %326 = arith.divf %324, %325 : vector<8x32xf32>
    %327 = tpu.concatenate %326, %301 in 1 : vector<8x32xf32>, vector<8x32xf32> -> vector<8x64xf32>
    %328 = arith.truncf %327 : vector<8x64xf32> to vector<8x64xbf16>
    %cst_60 = arith.constant dense<0.000000e+00> : vector<8x128xf32>
    %329 = tpu.matmul %328, %8, %cst_60 {dimension_numbers = #tpu.dot_dimension_numbers<[1], [0], [0], [1], [0, 0, 1, 1], [], []>} : vector<8x64xbf16>, vector<64x128xbf16>, vector<8x128xf32> -> vector<8x128xf32>
    %330 = vector.broadcast %9 : vector<1x128xf32> to vector<8x128xf32>
    %331 = arith.addf %329, %330 : vector<8x128xf32>
    %332 = arith.negf %331 : vector<8x128xf32>
    %333 = math.exp %332 : vector<8x128xf32>
    %cst_61 = arith.constant 1.000000e+00 : f32
    %334 = vector.broadcast %cst_61 : f32 to vector<8x128xf32>
    %335 = arith.addf %334, %333 : vector<8x128xf32>
    %336 = arith.divf %334, %335 : vector<8x128xf32>
    %337 = math.tanh %331 : vector<8x128xf32>
    %338 = arith.select %21, %337, %336 : vector<8x128xi1>, vector<8x128xf32>
    %339 = vector.extract_strided_slice %338 {offsets = [0, 0], sizes = [8, 32], strides = [1, 1]} : vector<8x128xf32> to vector<8x32xf32>
    %340 = vector.extract_strided_slice %338 {offsets = [0, 32], sizes = [8, 32], strides = [1, 1]} : vector<8x128xf32> to vector<8x32xf32>
    %341 = vector.extract_strided_slice %338 {offsets = [0, 64], sizes = [8, 32], strides = [1, 1]} : vector<8x128xf32> to vector<8x32xf32>
    %342 = vector.extract_strided_slice %338 {offsets = [0, 96], sizes = [8, 32], strides = [1, 1]} : vector<8x128xf32> to vector<8x32xf32>
    %343 = arith.mulf %340, %299 : vector<8x32xf32>
    %344 = arith.mulf %339, %341 : vector<8x32xf32>
    %345 = arith.addf %343, %344 : vector<8x32xf32>
    %346 = math.tanh %345 : vector<8x32xf32>
    %347 = arith.mulf %342, %346 : vector<8x32xf32>
    %c56 = arith.constant 56 : index
    %c0_62 = arith.constant 0 : index
    %348 = vector.load %arg14[%c56, %c0_62] : memref<64x128xf32, #tpu.memory_space<vmem>>, vector<8x128xf32>
    %349 = arith.truncf %321 : vector<8x32xf32> to vector<8x32xbf16>
    %cst_63 = arith.constant dense<0.000000e+00> : vector<8x128xf32>
    %350 = tpu.matmul %349, %7, %cst_63 {dimension_numbers = #tpu.dot_dimension_numbers<[1], [0], [0], [1], [0, 0, 1, 1], [], []>} : vector<8x32xbf16>, vector<32x128xbf16>, vector<8x128xf32> -> vector<8x128xf32>
    %351 = arith.addf %348, %350 : vector<8x128xf32>
    %352 = arith.negf %351 : vector<8x128xf32>
    %353 = math.exp %352 : vector<8x128xf32>
    %cst_64 = arith.constant 1.000000e+00 : f32
    %354 = vector.broadcast %cst_64 : f32 to vector<8x128xf32>
    %355 = arith.addf %354, %353 : vector<8x128xf32>
    %356 = arith.divf %354, %355 : vector<8x128xf32>
    %357 = math.tanh %351 : vector<8x128xf32>
    %358 = arith.select %15, %357, %356 : vector<8x128xi1>, vector<8x128xf32>
    %359 = vector.extract_strided_slice %358 {offsets = [0, 0], sizes = [8, 32], strides = [1, 1]} : vector<8x128xf32> to vector<8x32xf32>
    %360 = vector.extract_strided_slice %358 {offsets = [0, 32], sizes = [8, 32], strides = [1, 1]} : vector<8x128xf32> to vector<8x32xf32>
    %361 = vector.extract_strided_slice %358 {offsets = [0, 64], sizes = [8, 32], strides = [1, 1]} : vector<8x128xf32> to vector<8x32xf32>
    %362 = vector.extract_strided_slice %358 {offsets = [0, 96], sizes = [8, 32], strides = [1, 1]} : vector<8x128xf32> to vector<8x32xf32>
    %363 = arith.mulf %360, %319 : vector<8x32xf32>
    %364 = arith.mulf %359, %361 : vector<8x32xf32>
    %365 = arith.addf %363, %364 : vector<8x32xf32>
    %366 = math.tanh %365 : vector<8x32xf32>
    %367 = arith.mulf %362, %366 : vector<8x32xf32>
    %368 = arith.negf %367 : vector<8x32xf32>
    %369 = math.exp %368 : vector<8x32xf32>
    %cst_65 = arith.constant 1.000000e+00 : f32
    %370 = vector.broadcast %cst_65 : f32 to vector<8x32xf32>
    %371 = arith.addf %370, %369 : vector<8x32xf32>
    %372 = arith.divf %370, %371 : vector<8x32xf32>
    %373 = tpu.concatenate %372, %347 in 1 : vector<8x32xf32>, vector<8x32xf32> -> vector<8x64xf32>
    %374 = arith.truncf %373 : vector<8x64xf32> to vector<8x64xbf16>
    %cst_66 = arith.constant dense<0.000000e+00> : vector<8x128xf32>
    %375 = tpu.matmul %374, %8, %cst_66 {dimension_numbers = #tpu.dot_dimension_numbers<[1], [0], [0], [1], [0, 0, 1, 1], [], []>} : vector<8x64xbf16>, vector<64x128xbf16>, vector<8x128xf32> -> vector<8x128xf32>
    %376 = vector.broadcast %9 : vector<1x128xf32> to vector<8x128xf32>
    %377 = arith.addf %375, %376 : vector<8x128xf32>
    %378 = arith.negf %377 : vector<8x128xf32>
    %379 = math.exp %378 : vector<8x128xf32>
    %cst_67 = arith.constant 1.000000e+00 : f32
    %380 = vector.broadcast %cst_67 : f32 to vector<8x128xf32>
    %381 = arith.addf %380, %379 : vector<8x128xf32>
    %382 = arith.divf %380, %381 : vector<8x128xf32>
    %383 = math.tanh %377 : vector<8x128xf32>
    %384 = arith.select %21, %383, %382 : vector<8x128xi1>, vector<8x128xf32>
    %385 = vector.extract_strided_slice %384 {offsets = [0, 0], sizes = [8, 32], strides = [1, 1]} : vector<8x128xf32> to vector<8x32xf32>
    %386 = vector.extract_strided_slice %384 {offsets = [0, 32], sizes = [8, 32], strides = [1, 1]} : vector<8x128xf32> to vector<8x32xf32>
    %387 = vector.extract_strided_slice %384 {offsets = [0, 64], sizes = [8, 32], strides = [1, 1]} : vector<8x128xf32> to vector<8x32xf32>
    %388 = vector.extract_strided_slice %384 {offsets = [0, 96], sizes = [8, 32], strides = [1, 1]} : vector<8x128xf32> to vector<8x32xf32>
    %389 = arith.mulf %386, %345 : vector<8x32xf32>
    %390 = arith.mulf %385, %387 : vector<8x32xf32>
    %391 = arith.addf %389, %390 : vector<8x32xf32>
    %392 = math.tanh %391 : vector<8x32xf32>
    %393 = arith.mulf %388, %392 : vector<8x32xf32>
    %394 = math.tanh %393 : vector<8x32xf32>
    %cst_68 = arith.constant 0.000000e+00 : f32
    %395 = vector.broadcast %cst_68 : f32 to vector<8x96xf32>
    %396 = tpu.concatenate %394, %395 in 1 : vector<8x32xf32>, vector<8x96xf32> -> vector<8x128xf32>
    %c0_69 = arith.constant 0 : index
    %c0_70 = arith.constant 0 : index
    %397 = vector.load %arg12[%c0_69, %c0_70] : memref<8x128xf32, #tpu.memory_space<vmem>>, vector<8x128xf32>
    tpu.vector_store %arg12[%c0_69, %c0_70], %396 {strides = array<i32>} : memref<8x128xf32, #tpu.memory_space<vmem>>, vector<8x128xf32>,
    %c0_71 = arith.constant 0 : index
    %c0_72 = arith.constant 0 : index
    %398 = vector.load %arg6[%c0_71, %c0_72] : memref<32x128xf32, #tpu.memory_space<vmem>>, vector<32x128xf32>
    %cst_73 = arith.constant dense<0.000000e+00> : vector<8x128xf32>
    %399 = tpu.matmul %394, %398, %cst_73 {dimension_numbers = #tpu.dot_dimension_numbers<[1], [0], [0], [1], [0, 0, 1, 1], [], []>} : vector<8x32xf32>, vector<32x128xf32>, vector<8x128xf32> -> vector<8x128xf32>
    %c0_74 = arith.constant 0 : index
    %c0_75 = arith.constant 0 : index
    %400 = vector.load %arg8[%c0_74, %c0_75] : memref<1x128xf32, #tpu.memory_space<vmem>>, vector<1x128xf32>
    %401 = vector.broadcast %400 : vector<1x128xf32> to vector<8x128xf32>
    %402 = arith.addf %399, %401 : vector<8x128xf32>
    %c0_76 = arith.constant 0 : index
    %c0_77 = arith.constant 0 : index
    %403 = vector.load %arg11[%c0_76, %c0_77] : memref<32x128xf32, #tpu.memory_space<vmem>>, vector<32x128xf32>
    %c0_78 = arith.constant 0 : index
    %c0_79 = arith.constant 0 : index
    %404 = vector.load %arg7[%c0_78, %c0_79] : memref<32x128xbf16, #tpu.memory_space<vmem>>, vector<32x128xbf16>
    %c0_80 = arith.constant 0 : index
    %c0_81 = arith.constant 0 : index
    %405 = vector.load %arg9[%c0_80, %c0_81] : memref<64x128xbf16, #tpu.memory_space<vmem>>, vector<64x128xbf16>
    %c0_82 = arith.constant 0 : index
    %c0_83 = arith.constant 0 : index
    %406 = vector.load %arg10[%c0_82, %c0_83] : memref<1x128xf32, #tpu.memory_space<vmem>>, vector<1x128xf32>
    %407 = tpu.iota {dimensions = array<i32: 1>} : vector<8x128xi32>
    %c64_i32_84 = arith.constant 64 : i32
    %408 = vector.broadcast %c64_i32_84 : i32 to vector<8x128xi32>
    %409 = arith.cmpi sge, %407, %408 : vector<8x128xi32>
    %c96_i32_85 = arith.constant 96 : i32
    %410 = vector.broadcast %c96_i32_85 : i32 to vector<8x128xi32>
    %411 = arith.cmpi slt, %407, %410 : vector<8x128xi32>
    %412 = arith.andi %409, %411 : vector<8x128xi1>
    %413 = tpu.iota {dimensions = array<i32: 1>} : vector<8x128xi32>
    %c64_i32_86 = arith.constant 64 : i32
    %414 = vector.broadcast %c64_i32_86 : i32 to vector<8x128xi32>
    %415 = arith.cmpi sge, %413, %414 : vector<8x128xi32>
    %c96_i32_87 = arith.constant 96 : i32
    %416 = vector.broadcast %c96_i32_87 : i32 to vector<8x128xi32>
    %417 = arith.cmpi slt, %413, %416 : vector<8x128xi32>
    %418 = arith.andi %415, %417 : vector<8x128xi1>
    %cst_88 = arith.constant 0.000000e+00 : f32
    %419 = vector.broadcast %cst_88 : f32 to vector<8x32xf32>
    %cst_89 = arith.constant 0.000000e+00 : f32
    %420 = vector.broadcast %cst_89 : f32 to vector<8x32xf32>
    %cst_90 = arith.constant 0.000000e+00 : f32
    %421 = vector.broadcast %cst_90 : f32 to vector<8x32xf32>
    %cst_91 = arith.constant 0.000000e+00 : f32
    %422 = vector.broadcast %cst_91 : f32 to vector<8x32xf32>
    %423 = arith.truncf %419 : vector<8x32xf32> to vector<8x32xbf16>
    %cst_92 = arith.constant dense<0.000000e+00> : vector<8x128xf32>
    %424 = tpu.matmul %423, %404, %cst_92 {dimension_numbers = #tpu.dot_dimension_numbers<[1], [0], [0], [1], [0, 0, 1, 1], [], []>} : vector<8x32xbf16>, vector<32x128xbf16>, vector<8x128xf32> -> vector<8x128xf32>
    %425 = arith.addf %402, %424 : vector<8x128xf32>
    %426 = arith.negf %425 : vector<8x128xf32>
    %427 = math.exp %426 : vector<8x128xf32>
    %cst_93 = arith.constant 1.000000e+00 : f32
    %428 = vector.broadcast %cst_93 : f32 to vector<8x128xf32>
    %429 = arith.addf %428, %427 : vector<8x128xf32>
    %430 = arith.divf %428, %429 : vector<8x128xf32>
    %431 = math.tanh %425 : vector<8x128xf32>
    %432 = arith.select %412, %431, %430 : vector<8x128xi1>, vector<8x128xf32>
    %433 = vector.extract_strided_slice %432 {offsets = [0, 0], sizes = [8, 32], strides = [1, 1]} : vector<8x128xf32> to vector<8x32xf32>
    %434 = vector.extract_strided_slice %432 {offsets = [0, 32], sizes = [8, 32], strides = [1, 1]} : vector<8x128xf32> to vector<8x32xf32>
    %435 = vector.extract_strided_slice %432 {offsets = [0, 64], sizes = [8, 32], strides = [1, 1]} : vector<8x128xf32> to vector<8x32xf32>
    %436 = vector.extract_strided_slice %432 {offsets = [0, 96], sizes = [8, 32], strides = [1, 1]} : vector<8x128xf32> to vector<8x32xf32>
    %437 = arith.mulf %434, %421 : vector<8x32xf32>
    %438 = arith.mulf %433, %435 : vector<8x32xf32>
    %439 = arith.addf %437, %438 : vector<8x32xf32>
    %440 = math.tanh %439 : vector<8x32xf32>
    %441 = arith.mulf %436, %440 : vector<8x32xf32>
    %442 = arith.negf %441 : vector<8x32xf32>
    %443 = math.exp %442 : vector<8x32xf32>
    %cst_94 = arith.constant 1.000000e+00 : f32
    %444 = vector.broadcast %cst_94 : f32 to vector<8x32xf32>
    %445 = arith.addf %444, %443 : vector<8x32xf32>
    %446 = arith.divf %444, %445 : vector<8x32xf32>
    %447 = tpu.concatenate %446, %420 in 1 : vector<8x32xf32>, vector<8x32xf32> -> vector<8x64xf32>
    %448 = arith.truncf %447 : vector<8x64xf32> to vector<8x64xbf16>
    %cst_95 = arith.constant dense<0.000000e+00> : vector<8x128xf32>
    %449 = tpu.matmul %448, %405, %cst_95 {dimension_numbers = #tpu.dot_dimension_numbers<[1], [0], [0], [1], [0, 0, 1, 1], [], []>} : vector<8x64xbf16>, vector<64x128xbf16>, vector<8x128xf32> -> vector<8x128xf32>
    %450 = vector.broadcast %406 : vector<1x128xf32> to vector<8x128xf32>
    %451 = arith.addf %449, %450 : vector<8x128xf32>
    %452 = arith.negf %451 : vector<8x128xf32>
    %453 = math.exp %452 : vector<8x128xf32>
    %cst_96 = arith.constant 1.000000e+00 : f32
    %454 = vector.broadcast %cst_96 : f32 to vector<8x128xf32>
    %455 = arith.addf %454, %453 : vector<8x128xf32>
    %456 = arith.divf %454, %455 : vector<8x128xf32>
    %457 = math.tanh %451 : vector<8x128xf32>
    %458 = arith.select %418, %457, %456 : vector<8x128xi1>, vector<8x128xf32>
    %459 = vector.extract_strided_slice %458 {offsets = [0, 0], sizes = [8, 32], strides = [1, 1]} : vector<8x128xf32> to vector<8x32xf32>
    %460 = vector.extract_strided_slice %458 {offsets = [0, 32], sizes = [8, 32], strides = [1, 1]} : vector<8x128xf32> to vector<8x32xf32>
    %461 = vector.extract_strided_slice %458 {offsets = [0, 64], sizes = [8, 32], strides = [1, 1]} : vector<8x128xf32> to vector<8x32xf32>
    %462 = vector.extract_strided_slice %458 {offsets = [0, 96], sizes = [8, 32], strides = [1, 1]} : vector<8x128xf32> to vector<8x32xf32>
    %463 = arith.mulf %460, %422 : vector<8x32xf32>
    %464 = arith.mulf %459, %461 : vector<8x32xf32>
    %465 = arith.addf %463, %464 : vector<8x32xf32>
    %466 = math.tanh %465 : vector<8x32xf32>
    %467 = arith.mulf %462, %466 : vector<8x32xf32>
    %cst_97 = arith.constant dense<0.000000e+00> : vector<8x128xf32>
    %468 = tpu.matmul %467, %403, %cst_97 {dimension_numbers = #tpu.dot_dimension_numbers<[1], [0], [0], [1], [0, 0, 1, 1], [], []>} : vector<8x32xf32>, vector<32x128xf32>, vector<8x128xf32> -> vector<8x128xf32>
    %c0_98 = arith.constant 0 : index
    %c0_99 = arith.constant 0 : index
    %469 = vector.load %arg13[%c0_98, %c0_99] : memref<64x128xf32, #tpu.memory_space<vmem>>, vector<8x128xf32>
    tpu.vector_store %arg13[%c0_98, %c0_99], %468 {strides = array<i32>} : memref<64x128xf32, #tpu.memory_space<vmem>>, vector<8x128xf32>,
    %470 = arith.truncf %441 : vector<8x32xf32> to vector<8x32xbf16>
    %cst_100 = arith.constant dense<0.000000e+00> : vector<8x128xf32>
    %471 = tpu.matmul %470, %404, %cst_100 {dimension_numbers = #tpu.dot_dimension_numbers<[1], [0], [0], [1], [0, 0, 1, 1], [], []>} : vector<8x32xbf16>, vector<32x128xbf16>, vector<8x128xf32> -> vector<8x128xf32>
    %472 = arith.addf %402, %471 : vector<8x128xf32>
    %473 = arith.negf %472 : vector<8x128xf32>
    %474 = math.exp %473 : vector<8x128xf32>
    %cst_101 = arith.constant 1.000000e+00 : f32
    %475 = vector.broadcast %cst_101 : f32 to vector<8x128xf32>
    %476 = arith.addf %475, %474 : vector<8x128xf32>
    %477 = arith.divf %475, %476 : vector<8x128xf32>
    %478 = math.tanh %472 : vector<8x128xf32>
    %479 = arith.select %412, %478, %477 : vector<8x128xi1>, vector<8x128xf32>
    %480 = vector.extract_strided_slice %479 {offsets = [0, 0], sizes = [8, 32], strides = [1, 1]} : vector<8x128xf32> to vector<8x32xf32>
    %481 = vector.extract_strided_slice %479 {offsets = [0, 32], sizes = [8, 32], strides = [1, 1]} : vector<8x128xf32> to vector<8x32xf32>
    %482 = vector.extract_strided_slice %479 {offsets = [0, 64], sizes = [8, 32], strides = [1, 1]} : vector<8x128xf32> to vector<8x32xf32>
    %483 = vector.extract_strided_slice %479 {offsets = [0, 96], sizes = [8, 32], strides = [1, 1]} : vector<8x128xf32> to vector<8x32xf32>
    %484 = arith.mulf %481, %439 : vector<8x32xf32>
    %485 = arith.mulf %480, %482 : vector<8x32xf32>
    %486 = arith.addf %484, %485 : vector<8x32xf32>
    %487 = math.tanh %486 : vector<8x32xf32>
    %488 = arith.mulf %483, %487 : vector<8x32xf32>
    %489 = arith.negf %488 : vector<8x32xf32>
    %490 = math.exp %489 : vector<8x32xf32>
    %cst_102 = arith.constant 1.000000e+00 : f32
    %491 = vector.broadcast %cst_102 : f32 to vector<8x32xf32>
    %492 = arith.addf %491, %490 : vector<8x32xf32>
    %493 = arith.divf %491, %492 : vector<8x32xf32>
    %494 = tpu.concatenate %493, %467 in 1 : vector<8x32xf32>, vector<8x32xf32> -> vector<8x64xf32>
    %495 = arith.truncf %494 : vector<8x64xf32> to vector<8x64xbf16>
    %cst_103 = arith.constant dense<0.000000e+00> : vector<8x128xf32>
    %496 = tpu.matmul %495, %405, %cst_103 {dimension_numbers = #tpu.dot_dimension_numbers<[1], [0], [0], [1], [0, 0, 1, 1], [], []>} : vector<8x64xbf16>, vector<64x128xbf16>, vector<8x128xf32> -> vector<8x128xf32>
    %497 = vector.broadcast %406 : vector<1x128xf32> to vector<8x128xf32>
    %498 = arith.addf %496, %497 : vector<8x128xf32>
    %499 = arith.negf %498 : vector<8x128xf32>
    %500 = math.exp %499 : vector<8x128xf32>
    %cst_104 = arith.constant 1.000000e+00 : f32
    %501 = vector.broadcast %cst_104 : f32 to vector<8x128xf32>
    %502 = arith.addf %501, %500 : vector<8x128xf32>
    %503 = arith.divf %501, %502 : vector<8x128xf32>
    %504 = math.tanh %498 : vector<8x128xf32>
    %505 = arith.select %418, %504, %503 : vector<8x128xi1>, vector<8x128xf32>
    %506 = vector.extract_strided_slice %505 {offsets = [0, 0], sizes = [8, 32], strides = [1, 1]} : vector<8x128xf32> to vector<8x32xf32>
    %507 = vector.extract_strided_slice %505 {offsets = [0, 32], sizes = [8, 32], strides = [1, 1]} : vector<8x128xf32> to vector<8x32xf32>
    %508 = vector.extract_strided_slice %505 {offsets = [0, 64], sizes = [8, 32], strides = [1, 1]} : vector<8x128xf32> to vector<8x32xf32>
    %509 = vector.extract_strided_slice %505 {offsets = [0, 96], sizes = [8, 32], strides = [1, 1]} : vector<8x128xf32> to vector<8x32xf32>
    %510 = arith.mulf %507, %465 : vector<8x32xf32>
    %511 = arith.mulf %506, %508 : vector<8x32xf32>
    %512 = arith.addf %510, %511 : vector<8x32xf32>
    %513 = math.tanh %512 : vector<8x32xf32>
    %514 = arith.mulf %509, %513 : vector<8x32xf32>
    %cst_105 = arith.constant dense<0.000000e+00> : vector<8x128xf32>
    %515 = tpu.matmul %514, %403, %cst_105 {dimension_numbers = #tpu.dot_dimension_numbers<[1], [0], [0], [1], [0, 0, 1, 1], [], []>} : vector<8x32xf32>, vector<32x128xf32>, vector<8x128xf32> -> vector<8x128xf32>
    %c8_106 = arith.constant 8 : index
    %c0_107 = arith.constant 0 : index
    %516 = vector.load %arg13[%c8_106, %c0_107] : memref<64x128xf32, #tpu.memory_space<vmem>>, vector<8x128xf32>
    tpu.vector_store %arg13[%c8_106, %c0_107], %515 {strides = array<i32>} : memref<64x128xf32, #tpu.memory_space<vmem>>, vector<8x128xf32>,
    %517 = arith.truncf %488 : vector<8x32xf32> to vector<8x32xbf16>
    %cst_108 = arith.constant dense<0.000000e+00> : vector<8x128xf32>
    %518 = tpu.matmul %517, %404, %cst_108 {dimension_numbers = #tpu.dot_dimension_numbers<[1], [0], [0], [1], [0, 0, 1, 1], [], []>} : vector<8x32xbf16>, vector<32x128xbf16>, vector<8x128xf32> -> vector<8x128xf32>
    %519 = arith.addf %402, %518 : vector<8x128xf32>
    %520 = arith.negf %519 : vector<8x128xf32>
    %521 = math.exp %520 : vector<8x128xf32>
    %cst_109 = arith.constant 1.000000e+00 : f32
    %522 = vector.broadcast %cst_109 : f32 to vector<8x128xf32>
    %523 = arith.addf %522, %521 : vector<8x128xf32>
    %524 = arith.divf %522, %523 : vector<8x128xf32>
    %525 = math.tanh %519 : vector<8x128xf32>
    %526 = arith.select %412, %525, %524 : vector<8x128xi1>, vector<8x128xf32>
    %527 = vector.extract_strided_slice %526 {offsets = [0, 0], sizes = [8, 32], strides = [1, 1]} : vector<8x128xf32> to vector<8x32xf32>
    %528 = vector.extract_strided_slice %526 {offsets = [0, 32], sizes = [8, 32], strides = [1, 1]} : vector<8x128xf32> to vector<8x32xf32>
    %529 = vector.extract_strided_slice %526 {offsets = [0, 64], sizes = [8, 32], strides = [1, 1]} : vector<8x128xf32> to vector<8x32xf32>
    %530 = vector.extract_strided_slice %526 {offsets = [0, 96], sizes = [8, 32], strides = [1, 1]} : vector<8x128xf32> to vector<8x32xf32>
    %531 = arith.mulf %528, %486 : vector<8x32xf32>
    %532 = arith.mulf %527, %529 : vector<8x32xf32>
    %533 = arith.addf %531, %532 : vector<8x32xf32>
    %534 = math.tanh %533 : vector<8x32xf32>
    %535 = arith.mulf %530, %534 : vector<8x32xf32>
    %536 = arith.negf %535 : vector<8x32xf32>
    %537 = math.exp %536 : vector<8x32xf32>
    %cst_110 = arith.constant 1.000000e+00 : f32
    %538 = vector.broadcast %cst_110 : f32 to vector<8x32xf32>
    %539 = arith.addf %538, %537 : vector<8x32xf32>
    %540 = arith.divf %538, %539 : vector<8x32xf32>
    %541 = tpu.concatenate %540, %514 in 1 : vector<8x32xf32>, vector<8x32xf32> -> vector<8x64xf32>
    %542 = arith.truncf %541 : vector<8x64xf32> to vector<8x64xbf16>
    %cst_111 = arith.constant dense<0.000000e+00> : vector<8x128xf32>
    %543 = tpu.matmul %542, %405, %cst_111 {dimension_numbers = #tpu.dot_dimension_numbers<[1], [0], [0], [1], [0, 0, 1, 1], [], []>} : vector<8x64xbf16>, vector<64x128xbf16>, vector<8x128xf32> -> vector<8x128xf32>
    %544 = vector.broadcast %406 : vector<1x128xf32> to vector<8x128xf32>
    %545 = arith.addf %543, %544 : vector<8x128xf32>
    %546 = arith.negf %545 : vector<8x128xf32>
    %547 = math.exp %546 : vector<8x128xf32>
    %cst_112 = arith.constant 1.000000e+00 : f32
    %548 = vector.broadcast %cst_112 : f32 to vector<8x128xf32>
    %549 = arith.addf %548, %547 : vector<8x128xf32>
    %550 = arith.divf %548, %549 : vector<8x128xf32>
    %551 = math.tanh %545 : vector<8x128xf32>
    %552 = arith.select %418, %551, %550 : vector<8x128xi1>, vector<8x128xf32>
    %553 = vector.extract_strided_slice %552 {offsets = [0, 0], sizes = [8, 32], strides = [1, 1]} : vector<8x128xf32> to vector<8x32xf32>
    %554 = vector.extract_strided_slice %552 {offsets = [0, 32], sizes = [8, 32], strides = [1, 1]} : vector<8x128xf32> to vector<8x32xf32>
    %555 = vector.extract_strided_slice %552 {offsets = [0, 64], sizes = [8, 32], strides = [1, 1]} : vector<8x128xf32> to vector<8x32xf32>
    %556 = vector.extract_strided_slice %552 {offsets = [0, 96], sizes = [8, 32], strides = [1, 1]} : vector<8x128xf32> to vector<8x32xf32>
    %557 = arith.mulf %554, %512 : vector<8x32xf32>
    %558 = arith.mulf %553, %555 : vector<8x32xf32>
    %559 = arith.addf %557, %558 : vector<8x32xf32>
    %560 = math.tanh %559 : vector<8x32xf32>
    %561 = arith.mulf %556, %560 : vector<8x32xf32>
    %cst_113 = arith.constant dense<0.000000e+00> : vector<8x128xf32>
    %562 = tpu.matmul %561, %403, %cst_113 {dimension_numbers = #tpu.dot_dimension_numbers<[1], [0], [0], [1], [0, 0, 1, 1], [], []>} : vector<8x32xf32>, vector<32x128xf32>, vector<8x128xf32> -> vector<8x128xf32>
    %c16_114 = arith.constant 16 : index
    %c0_115 = arith.constant 0 : index
    %563 = vector.load %arg13[%c16_114, %c0_115] : memref<64x128xf32, #tpu.memory_space<vmem>>, vector<8x128xf32>
    tpu.vector_store %arg13[%c16_114, %c0_115], %562 {strides = array<i32>} : memref<64x128xf32, #tpu.memory_space<vmem>>, vector<8x128xf32>,
    %564 = arith.truncf %535 : vector<8x32xf32> to vector<8x32xbf16>
    %cst_116 = arith.constant dense<0.000000e+00> : vector<8x128xf32>
    %565 = tpu.matmul %564, %404, %cst_116 {dimension_numbers = #tpu.dot_dimension_numbers<[1], [0], [0], [1], [0, 0, 1, 1], [], []>} : vector<8x32xbf16>, vector<32x128xbf16>, vector<8x128xf32> -> vector<8x128xf32>
    %566 = arith.addf %402, %565 : vector<8x128xf32>
    %567 = arith.negf %566 : vector<8x128xf32>
    %568 = math.exp %567 : vector<8x128xf32>
    %cst_117 = arith.constant 1.000000e+00 : f32
    %569 = vector.broadcast %cst_117 : f32 to vector<8x128xf32>
    %570 = arith.addf %569, %568 : vector<8x128xf32>
    %571 = arith.divf %569, %570 : vector<8x128xf32>
    %572 = math.tanh %566 : vector<8x128xf32>
    %573 = arith.select %412, %572, %571 : vector<8x128xi1>, vector<8x128xf32>
    %574 = vector.extract_strided_slice %573 {offsets = [0, 0], sizes = [8, 32], strides = [1, 1]} : vector<8x128xf32> to vector<8x32xf32>
    %575 = vector.extract_strided_slice %573 {offsets = [0, 32], sizes = [8, 32], strides = [1, 1]} : vector<8x128xf32> to vector<8x32xf32>
    %576 = vector.extract_strided_slice %573 {offsets = [0, 64], sizes = [8, 32], strides = [1, 1]} : vector<8x128xf32> to vector<8x32xf32>
    %577 = vector.extract_strided_slice %573 {offsets = [0, 96], sizes = [8, 32], strides = [1, 1]} : vector<8x128xf32> to vector<8x32xf32>
    %578 = arith.mulf %575, %533 : vector<8x32xf32>
    %579 = arith.mulf %574, %576 : vector<8x32xf32>
    %580 = arith.addf %578, %579 : vector<8x32xf32>
    %581 = math.tanh %580 : vector<8x32xf32>
    %582 = arith.mulf %577, %581 : vector<8x32xf32>
    %583 = arith.negf %582 : vector<8x32xf32>
    %584 = math.exp %583 : vector<8x32xf32>
    %cst_118 = arith.constant 1.000000e+00 : f32
    %585 = vector.broadcast %cst_118 : f32 to vector<8x32xf32>
    %586 = arith.addf %585, %584 : vector<8x32xf32>
    %587 = arith.divf %585, %586 : vector<8x32xf32>
    %588 = tpu.concatenate %587, %561 in 1 : vector<8x32xf32>, vector<8x32xf32> -> vector<8x64xf32>
    %589 = arith.truncf %588 : vector<8x64xf32> to vector<8x64xbf16>
    %cst_119 = arith.constant dense<0.000000e+00> : vector<8x128xf32>
    %590 = tpu.matmul %589, %405, %cst_119 {dimension_numbers = #tpu.dot_dimension_numbers<[1], [0], [0], [1], [0, 0, 1, 1], [], []>} : vector<8x64xbf16>, vector<64x128xbf16>, vector<8x128xf32> -> vector<8x128xf32>
    %591 = vector.broadcast %406 : vector<1x128xf32> to vector<8x128xf32>
    %592 = arith.addf %590, %591 : vector<8x128xf32>
    %593 = arith.negf %592 : vector<8x128xf32>
    %594 = math.exp %593 : vector<8x128xf32>
    %cst_120 = arith.constant 1.000000e+00 : f32
    %595 = vector.broadcast %cst_120 : f32 to vector<8x128xf32>
    %596 = arith.addf %595, %594 : vector<8x128xf32>
    %597 = arith.divf %595, %596 : vector<8x128xf32>
    %598 = math.tanh %592 : vector<8x128xf32>
    %599 = arith.select %418, %598, %597 : vector<8x128xi1>, vector<8x128xf32>
    %600 = vector.extract_strided_slice %599 {offsets = [0, 0], sizes = [8, 32], strides = [1, 1]} : vector<8x128xf32> to vector<8x32xf32>
    %601 = vector.extract_strided_slice %599 {offsets = [0, 32], sizes = [8, 32], strides = [1, 1]} : vector<8x128xf32> to vector<8x32xf32>
    %602 = vector.extract_strided_slice %599 {offsets = [0, 64], sizes = [8, 32], strides = [1, 1]} : vector<8x128xf32> to vector<8x32xf32>
    %603 = vector.extract_strided_slice %599 {offsets = [0, 96], sizes = [8, 32], strides = [1, 1]} : vector<8x128xf32> to vector<8x32xf32>
    %604 = arith.mulf %601, %559 : vector<8x32xf32>
    %605 = arith.mulf %600, %602 : vector<8x32xf32>
    %606 = arith.addf %604, %605 : vector<8x32xf32>
    %607 = math.tanh %606 : vector<8x32xf32>
    %608 = arith.mulf %603, %607 : vector<8x32xf32>
    %cst_121 = arith.constant dense<0.000000e+00> : vector<8x128xf32>
    %609 = tpu.matmul %608, %403, %cst_121 {dimension_numbers = #tpu.dot_dimension_numbers<[1], [0], [0], [1], [0, 0, 1, 1], [], []>} : vector<8x32xf32>, vector<32x128xf32>, vector<8x128xf32> -> vector<8x128xf32>
    %c24_122 = arith.constant 24 : index
    %c0_123 = arith.constant 0 : index
    %610 = vector.load %arg13[%c24_122, %c0_123] : memref<64x128xf32, #tpu.memory_space<vmem>>, vector<8x128xf32>
    tpu.vector_store %arg13[%c24_122, %c0_123], %609 {strides = array<i32>} : memref<64x128xf32, #tpu.memory_space<vmem>>, vector<8x128xf32>,
    %611 = arith.truncf %582 : vector<8x32xf32> to vector<8x32xbf16>
    %cst_124 = arith.constant dense<0.000000e+00> : vector<8x128xf32>
    %612 = tpu.matmul %611, %404, %cst_124 {dimension_numbers = #tpu.dot_dimension_numbers<[1], [0], [0], [1], [0, 0, 1, 1], [], []>} : vector<8x32xbf16>, vector<32x128xbf16>, vector<8x128xf32> -> vector<8x128xf32>
    %613 = arith.addf %402, %612 : vector<8x128xf32>
    %614 = arith.negf %613 : vector<8x128xf32>
    %615 = math.exp %614 : vector<8x128xf32>
    %cst_125 = arith.constant 1.000000e+00 : f32
    %616 = vector.broadcast %cst_125 : f32 to vector<8x128xf32>
    %617 = arith.addf %616, %615 : vector<8x128xf32>
    %618 = arith.divf %616, %617 : vector<8x128xf32>
    %619 = math.tanh %613 : vector<8x128xf32>
    %620 = arith.select %412, %619, %618 : vector<8x128xi1>, vector<8x128xf32>
    %621 = vector.extract_strided_slice %620 {offsets = [0, 0], sizes = [8, 32], strides = [1, 1]} : vector<8x128xf32> to vector<8x32xf32>
    %622 = vector.extract_strided_slice %620 {offsets = [0, 32], sizes = [8, 32], strides = [1, 1]} : vector<8x128xf32> to vector<8x32xf32>
    %623 = vector.extract_strided_slice %620 {offsets = [0, 64], sizes = [8, 32], strides = [1, 1]} : vector<8x128xf32> to vector<8x32xf32>
    %624 = vector.extract_strided_slice %620 {offsets = [0, 96], sizes = [8, 32], strides = [1, 1]} : vector<8x128xf32> to vector<8x32xf32>
    %625 = arith.mulf %622, %580 : vector<8x32xf32>
    %626 = arith.mulf %621, %623 : vector<8x32xf32>
    %627 = arith.addf %625, %626 : vector<8x32xf32>
    %628 = math.tanh %627 : vector<8x32xf32>
    %629 = arith.mulf %624, %628 : vector<8x32xf32>
    %630 = arith.negf %629 : vector<8x32xf32>
    %631 = math.exp %630 : vector<8x32xf32>
    %cst_126 = arith.constant 1.000000e+00 : f32
    %632 = vector.broadcast %cst_126 : f32 to vector<8x32xf32>
    %633 = arith.addf %632, %631 : vector<8x32xf32>
    %634 = arith.divf %632, %633 : vector<8x32xf32>
    %635 = tpu.concatenate %634, %608 in 1 : vector<8x32xf32>, vector<8x32xf32> -> vector<8x64xf32>
    %636 = arith.truncf %635 : vector<8x64xf32> to vector<8x64xbf16>
    %cst_127 = arith.constant dense<0.000000e+00> : vector<8x128xf32>
    %637 = tpu.matmul %636, %405, %cst_127 {dimension_numbers = #tpu.dot_dimension_numbers<[1], [0], [0], [1], [0, 0, 1, 1], [], []>} : vector<8x64xbf16>, vector<64x128xbf16>, vector<8x128xf32> -> vector<8x128xf32>
    %638 = vector.broadcast %406 : vector<1x128xf32> to vector<8x128xf32>
    %639 = arith.addf %637, %638 : vector<8x128xf32>
    %640 = arith.negf %639 : vector<8x128xf32>
    %641 = math.exp %640 : vector<8x128xf32>
    %cst_128 = arith.constant 1.000000e+00 : f32
    %642 = vector.broadcast %cst_128 : f32 to vector<8x128xf32>
    %643 = arith.addf %642, %641 : vector<8x128xf32>
    %644 = arith.divf %642, %643 : vector<8x128xf32>
    %645 = math.tanh %639 : vector<8x128xf32>
    %646 = arith.select %418, %645, %644 : vector<8x128xi1>, vector<8x128xf32>
    %647 = vector.extract_strided_slice %646 {offsets = [0, 0], sizes = [8, 32], strides = [1, 1]} : vector<8x128xf32> to vector<8x32xf32>
    %648 = vector.extract_strided_slice %646 {offsets = [0, 32], sizes = [8, 32], strides = [1, 1]} : vector<8x128xf32> to vector<8x32xf32>
    %649 = vector.extract_strided_slice %646 {offsets = [0, 64], sizes = [8, 32], strides = [1, 1]} : vector<8x128xf32> to vector<8x32xf32>
    %650 = vector.extract_strided_slice %646 {offsets = [0, 96], sizes = [8, 32], strides = [1, 1]} : vector<8x128xf32> to vector<8x32xf32>
    %651 = arith.mulf %648, %606 : vector<8x32xf32>
    %652 = arith.mulf %647, %649 : vector<8x32xf32>
    %653 = arith.addf %651, %652 : vector<8x32xf32>
    %654 = math.tanh %653 : vector<8x32xf32>
    %655 = arith.mulf %650, %654 : vector<8x32xf32>
    %cst_129 = arith.constant dense<0.000000e+00> : vector<8x128xf32>
    %656 = tpu.matmul %655, %403, %cst_129 {dimension_numbers = #tpu.dot_dimension_numbers<[1], [0], [0], [1], [0, 0, 1, 1], [], []>} : vector<8x32xf32>, vector<32x128xf32>, vector<8x128xf32> -> vector<8x128xf32>
    %c32_130 = arith.constant 32 : index
    %c0_131 = arith.constant 0 : index
    %657 = vector.load %arg13[%c32_130, %c0_131] : memref<64x128xf32, #tpu.memory_space<vmem>>, vector<8x128xf32>
    tpu.vector_store %arg13[%c32_130, %c0_131], %656 {strides = array<i32>} : memref<64x128xf32, #tpu.memory_space<vmem>>, vector<8x128xf32>,
    %658 = arith.truncf %629 : vector<8x32xf32> to vector<8x32xbf16>
    %cst_132 = arith.constant dense<0.000000e+00> : vector<8x128xf32>
    %659 = tpu.matmul %658, %404, %cst_132 {dimension_numbers = #tpu.dot_dimension_numbers<[1], [0], [0], [1], [0, 0, 1, 1], [], []>} : vector<8x32xbf16>, vector<32x128xbf16>, vector<8x128xf32> -> vector<8x128xf32>
    %660 = arith.addf %402, %659 : vector<8x128xf32>
    %661 = arith.negf %660 : vector<8x128xf32>
    %662 = math.exp %661 : vector<8x128xf32>
    %cst_133 = arith.constant 1.000000e+00 : f32
    %663 = vector.broadcast %cst_133 : f32 to vector<8x128xf32>
    %664 = arith.addf %663, %662 : vector<8x128xf32>
    %665 = arith.divf %663, %664 : vector<8x128xf32>
    %666 = math.tanh %660 : vector<8x128xf32>
    %667 = arith.select %412, %666, %665 : vector<8x128xi1>, vector<8x128xf32>
    %668 = vector.extract_strided_slice %667 {offsets = [0, 0], sizes = [8, 32], strides = [1, 1]} : vector<8x128xf32> to vector<8x32xf32>
    %669 = vector.extract_strided_slice %667 {offsets = [0, 32], sizes = [8, 32], strides = [1, 1]} : vector<8x128xf32> to vector<8x32xf32>
    %670 = vector.extract_strided_slice %667 {offsets = [0, 64], sizes = [8, 32], strides = [1, 1]} : vector<8x128xf32> to vector<8x32xf32>
    %671 = vector.extract_strided_slice %667 {offsets = [0, 96], sizes = [8, 32], strides = [1, 1]} : vector<8x128xf32> to vector<8x32xf32>
    %672 = arith.mulf %669, %627 : vector<8x32xf32>
    %673 = arith.mulf %668, %670 : vector<8x32xf32>
    %674 = arith.addf %672, %673 : vector<8x32xf32>
    %675 = math.tanh %674 : vector<8x32xf32>
    %676 = arith.mulf %671, %675 : vector<8x32xf32>
    %677 = arith.negf %676 : vector<8x32xf32>
    %678 = math.exp %677 : vector<8x32xf32>
    %cst_134 = arith.constant 1.000000e+00 : f32
    %679 = vector.broadcast %cst_134 : f32 to vector<8x32xf32>
    %680 = arith.addf %679, %678 : vector<8x32xf32>
    %681 = arith.divf %679, %680 : vector<8x32xf32>
    %682 = tpu.concatenate %681, %655 in 1 : vector<8x32xf32>, vector<8x32xf32> -> vector<8x64xf32>
    %683 = arith.truncf %682 : vector<8x64xf32> to vector<8x64xbf16>
    %cst_135 = arith.constant dense<0.000000e+00> : vector<8x128xf32>
    %684 = tpu.matmul %683, %405, %cst_135 {dimension_numbers = #tpu.dot_dimension_numbers<[1], [0], [0], [1], [0, 0, 1, 1], [], []>} : vector<8x64xbf16>, vector<64x128xbf16>, vector<8x128xf32> -> vector<8x128xf32>
    %685 = vector.broadcast %406 : vector<1x128xf32> to vector<8x128xf32>
    %686 = arith.addf %684, %685 : vector<8x128xf32>
    %687 = arith.negf %686 : vector<8x128xf32>
    %688 = math.exp %687 : vector<8x128xf32>
    %cst_136 = arith.constant 1.000000e+00 : f32
    %689 = vector.broadcast %cst_136 : f32 to vector<8x128xf32>
    %690 = arith.addf %689, %688 : vector<8x128xf32>
    %691 = arith.divf %689, %690 : vector<8x128xf32>
    %692 = math.tanh %686 : vector<8x128xf32>
    %693 = arith.select %418, %692, %691 : vector<8x128xi1>, vector<8x128xf32>
    %694 = vector.extract_strided_slice %693 {offsets = [0, 0], sizes = [8, 32], strides = [1, 1]} : vector<8x128xf32> to vector<8x32xf32>
    %695 = vector.extract_strided_slice %693 {offsets = [0, 32], sizes = [8, 32], strides = [1, 1]} : vector<8x128xf32> to vector<8x32xf32>
    %696 = vector.extract_strided_slice %693 {offsets = [0, 64], sizes = [8, 32], strides = [1, 1]} : vector<8x128xf32> to vector<8x32xf32>
    %697 = vector.extract_strided_slice %693 {offsets = [0, 96], sizes = [8, 32], strides = [1, 1]} : vector<8x128xf32> to vector<8x32xf32>
    %698 = arith.mulf %695, %653 : vector<8x32xf32>
    %699 = arith.mulf %694, %696 : vector<8x32xf32>
    %700 = arith.addf %698, %699 : vector<8x32xf32>
    %701 = math.tanh %700 : vector<8x32xf32>
    %702 = arith.mulf %697, %701 : vector<8x32xf32>
    %cst_137 = arith.constant dense<0.000000e+00> : vector<8x128xf32>
    %703 = tpu.matmul %702, %403, %cst_137 {dimension_numbers = #tpu.dot_dimension_numbers<[1], [0], [0], [1], [0, 0, 1, 1], [], []>} : vector<8x32xf32>, vector<32x128xf32>, vector<8x128xf32> -> vector<8x128xf32>
    %c40_138 = arith.constant 40 : index
    %c0_139 = arith.constant 0 : index
    %704 = vector.load %arg13[%c40_138, %c0_139] : memref<64x128xf32, #tpu.memory_space<vmem>>, vector<8x128xf32>
    tpu.vector_store %arg13[%c40_138, %c0_139], %703 {strides = array<i32>} : memref<64x128xf32, #tpu.memory_space<vmem>>, vector<8x128xf32>,
    %705 = arith.truncf %676 : vector<8x32xf32> to vector<8x32xbf16>
    %cst_140 = arith.constant dense<0.000000e+00> : vector<8x128xf32>
    %706 = tpu.matmul %705, %404, %cst_140 {dimension_numbers = #tpu.dot_dimension_numbers<[1], [0], [0], [1], [0, 0, 1, 1], [], []>} : vector<8x32xbf16>, vector<32x128xbf16>, vector<8x128xf32> -> vector<8x128xf32>
    %707 = arith.addf %402, %706 : vector<8x128xf32>
    %708 = arith.negf %707 : vector<8x128xf32>
    %709 = math.exp %708 : vector<8x128xf32>
    %cst_141 = arith.constant 1.000000e+00 : f32
    %710 = vector.broadcast %cst_141 : f32 to vector<8x128xf32>
    %711 = arith.addf %710, %709 : vector<8x128xf32>
    %712 = arith.divf %710, %711 : vector<8x128xf32>
    %713 = math.tanh %707 : vector<8x128xf32>
    %714 = arith.select %412, %713, %712 : vector<8x128xi1>, vector<8x128xf32>
    %715 = vector.extract_strided_slice %714 {offsets = [0, 0], sizes = [8, 32], strides = [1, 1]} : vector<8x128xf32> to vector<8x32xf32>
    %716 = vector.extract_strided_slice %714 {offsets = [0, 32], sizes = [8, 32], strides = [1, 1]} : vector<8x128xf32> to vector<8x32xf32>
    %717 = vector.extract_strided_slice %714 {offsets = [0, 64], sizes = [8, 32], strides = [1, 1]} : vector<8x128xf32> to vector<8x32xf32>
    %718 = vector.extract_strided_slice %714 {offsets = [0, 96], sizes = [8, 32], strides = [1, 1]} : vector<8x128xf32> to vector<8x32xf32>
    %719 = arith.mulf %716, %674 : vector<8x32xf32>
    %720 = arith.mulf %715, %717 : vector<8x32xf32>
    %721 = arith.addf %719, %720 : vector<8x32xf32>
    %722 = math.tanh %721 : vector<8x32xf32>
    %723 = arith.mulf %718, %722 : vector<8x32xf32>
    %724 = arith.negf %723 : vector<8x32xf32>
    %725 = math.exp %724 : vector<8x32xf32>
    %cst_142 = arith.constant 1.000000e+00 : f32
    %726 = vector.broadcast %cst_142 : f32 to vector<8x32xf32>
    %727 = arith.addf %726, %725 : vector<8x32xf32>
    %728 = arith.divf %726, %727 : vector<8x32xf32>
    %729 = tpu.concatenate %728, %702 in 1 : vector<8x32xf32>, vector<8x32xf32> -> vector<8x64xf32>
    %730 = arith.truncf %729 : vector<8x64xf32> to vector<8x64xbf16>
    %cst_143 = arith.constant dense<0.000000e+00> : vector<8x128xf32>
    %731 = tpu.matmul %730, %405, %cst_143 {dimension_numbers = #tpu.dot_dimension_numbers<[1], [0], [0], [1], [0, 0, 1, 1], [], []>} : vector<8x64xbf16>, vector<64x128xbf16>, vector<8x128xf32> -> vector<8x128xf32>
    %732 = vector.broadcast %406 : vector<1x128xf32> to vector<8x128xf32>
    %733 = arith.addf %731, %732 : vector<8x128xf32>
    %734 = arith.negf %733 : vector<8x128xf32>
    %735 = math.exp %734 : vector<8x128xf32>
    %cst_144 = arith.constant 1.000000e+00 : f32
    %736 = vector.broadcast %cst_144 : f32 to vector<8x128xf32>
    %737 = arith.addf %736, %735 : vector<8x128xf32>
    %738 = arith.divf %736, %737 : vector<8x128xf32>
    %739 = math.tanh %733 : vector<8x128xf32>
    %740 = arith.select %418, %739, %738 : vector<8x128xi1>, vector<8x128xf32>
    %741 = vector.extract_strided_slice %740 {offsets = [0, 0], sizes = [8, 32], strides = [1, 1]} : vector<8x128xf32> to vector<8x32xf32>
    %742 = vector.extract_strided_slice %740 {offsets = [0, 32], sizes = [8, 32], strides = [1, 1]} : vector<8x128xf32> to vector<8x32xf32>
    %743 = vector.extract_strided_slice %740 {offsets = [0, 64], sizes = [8, 32], strides = [1, 1]} : vector<8x128xf32> to vector<8x32xf32>
    %744 = vector.extract_strided_slice %740 {offsets = [0, 96], sizes = [8, 32], strides = [1, 1]} : vector<8x128xf32> to vector<8x32xf32>
    %745 = arith.mulf %742, %700 : vector<8x32xf32>
    %746 = arith.mulf %741, %743 : vector<8x32xf32>
    %747 = arith.addf %745, %746 : vector<8x32xf32>
    %748 = math.tanh %747 : vector<8x32xf32>
    %749 = arith.mulf %744, %748 : vector<8x32xf32>
    %cst_145 = arith.constant dense<0.000000e+00> : vector<8x128xf32>
    %750 = tpu.matmul %749, %403, %cst_145 {dimension_numbers = #tpu.dot_dimension_numbers<[1], [0], [0], [1], [0, 0, 1, 1], [], []>} : vector<8x32xf32>, vector<32x128xf32>, vector<8x128xf32> -> vector<8x128xf32>
    %c48_146 = arith.constant 48 : index
    %c0_147 = arith.constant 0 : index
    %751 = vector.load %arg13[%c48_146, %c0_147] : memref<64x128xf32, #tpu.memory_space<vmem>>, vector<8x128xf32>
    tpu.vector_store %arg13[%c48_146, %c0_147], %750 {strides = array<i32>} : memref<64x128xf32, #tpu.memory_space<vmem>>, vector<8x128xf32>,
    %752 = arith.truncf %723 : vector<8x32xf32> to vector<8x32xbf16>
    %cst_148 = arith.constant dense<0.000000e+00> : vector<8x128xf32>
    %753 = tpu.matmul %752, %404, %cst_148 {dimension_numbers = #tpu.dot_dimension_numbers<[1], [0], [0], [1], [0, 0, 1, 1], [], []>} : vector<8x32xbf16>, vector<32x128xbf16>, vector<8x128xf32> -> vector<8x128xf32>
    %754 = arith.addf %402, %753 : vector<8x128xf32>
    %755 = arith.negf %754 : vector<8x128xf32>
    %756 = math.exp %755 : vector<8x128xf32>
    %cst_149 = arith.constant 1.000000e+00 : f32
    %757 = vector.broadcast %cst_149 : f32 to vector<8x128xf32>
    %758 = arith.addf %757, %756 : vector<8x128xf32>
    %759 = arith.divf %757, %758 : vector<8x128xf32>
    %760 = math.tanh %754 : vector<8x128xf32>
    %761 = arith.select %412, %760, %759 : vector<8x128xi1>, vector<8x128xf32>
    %762 = vector.extract_strided_slice %761 {offsets = [0, 0], sizes = [8, 32], strides = [1, 1]} : vector<8x128xf32> to vector<8x32xf32>
    %763 = vector.extract_strided_slice %761 {offsets = [0, 32], sizes = [8, 32], strides = [1, 1]} : vector<8x128xf32> to vector<8x32xf32>
    %764 = vector.extract_strided_slice %761 {offsets = [0, 64], sizes = [8, 32], strides = [1, 1]} : vector<8x128xf32> to vector<8x32xf32>
    %765 = vector.extract_strided_slice %761 {offsets = [0, 96], sizes = [8, 32], strides = [1, 1]} : vector<8x128xf32> to vector<8x32xf32>
    %766 = arith.mulf %763, %721 : vector<8x32xf32>
    %767 = arith.mulf %762, %764 : vector<8x32xf32>
    %768 = arith.addf %766, %767 : vector<8x32xf32>
    %769 = math.tanh %768 : vector<8x32xf32>
    %770 = arith.mulf %765, %769 : vector<8x32xf32>
    %771 = arith.negf %770 : vector<8x32xf32>
    %772 = math.exp %771 : vector<8x32xf32>
    %cst_150 = arith.constant 1.000000e+00 : f32
    %773 = vector.broadcast %cst_150 : f32 to vector<8x32xf32>
    %774 = arith.addf %773, %772 : vector<8x32xf32>
    %775 = arith.divf %773, %774 : vector<8x32xf32>
    %776 = tpu.concatenate %775, %749 in 1 : vector<8x32xf32>, vector<8x32xf32> -> vector<8x64xf32>
    %777 = arith.truncf %776 : vector<8x64xf32> to vector<8x64xbf16>
    %cst_151 = arith.constant dense<0.000000e+00> : vector<8x128xf32>
    %778 = tpu.matmul %777, %405, %cst_151 {dimension_numbers = #tpu.dot_dimension_numbers<[1], [0], [0], [1], [0, 0, 1, 1], [], []>} : vector<8x64xbf16>, vector<64x128xbf16>, vector<8x128xf32> -> vector<8x128xf32>
    %779 = vector.broadcast %406 : vector<1x128xf32> to vector<8x128xf32>
    %780 = arith.addf %778, %779 : vector<8x128xf32>
    %781 = arith.negf %780 : vector<8x128xf32>
    %782 = math.exp %781 : vector<8x128xf32>
    %cst_152 = arith.constant 1.000000e+00 : f32
    %783 = vector.broadcast %cst_152 : f32 to vector<8x128xf32>
    %784 = arith.addf %783, %782 : vector<8x128xf32>
    %785 = arith.divf %783, %784 : vector<8x128xf32>
    %786 = math.tanh %780 : vector<8x128xf32>
    %787 = arith.select %418, %786, %785 : vector<8x128xi1>, vector<8x128xf32>
    %788 = vector.extract_strided_slice %787 {offsets = [0, 0], sizes = [8, 32], strides = [1, 1]} : vector<8x128xf32> to vector<8x32xf32>
    %789 = vector.extract_strided_slice %787 {offsets = [0, 32], sizes = [8, 32], strides = [1, 1]} : vector<8x128xf32> to vector<8x32xf32>
    %790 = vector.extract_strided_slice %787 {offsets = [0, 64], sizes = [8, 32], strides = [1, 1]} : vector<8x128xf32> to vector<8x32xf32>
    %791 = vector.extract_strided_slice %787 {offsets = [0, 96], sizes = [8, 32], strides = [1, 1]} : vector<8x128xf32> to vector<8x32xf32>
    %792 = arith.mulf %789, %747 : vector<8x32xf32>
    %793 = arith.mulf %788, %790 : vector<8x32xf32>
    %794 = arith.addf %792, %793 : vector<8x32xf32>
    %795 = math.tanh %794 : vector<8x32xf32>
    %796 = arith.mulf %791, %795 : vector<8x32xf32>
    %cst_153 = arith.constant dense<0.000000e+00> : vector<8x128xf32>
    %797 = tpu.matmul %796, %403, %cst_153 {dimension_numbers = #tpu.dot_dimension_numbers<[1], [0], [0], [1], [0, 0, 1, 1], [], []>} : vector<8x32xf32>, vector<32x128xf32>, vector<8x128xf32> -> vector<8x128xf32>
    %c56_154 = arith.constant 56 : index
    %c0_155 = arith.constant 0 : index
    %798 = vector.load %arg13[%c56_154, %c0_155] : memref<64x128xf32, #tpu.memory_space<vmem>>, vector<8x128xf32>
    tpu.vector_store %arg13[%c56_154, %c0_155], %797 {strides = array<i32>} : memref<64x128xf32, #tpu.memory_space<vmem>>, vector<8x128xf32>,
    return
  }
}

</mosaic_0001>

<llo_original>
// kernel: tpu_custom_call.1
$region0: #{tpu_custom_call.1}
  #allocation0 [shape = 'u32[]', space=smem, size = 0x4, offset = 0x4, fixed_abs, tag = 'smem constant byte address 0x4 - core index']
  #allocation1 [shape = 'u32[144,128]{1,0:T(1,128)}', space=vmem, size = 0x12000, scoped, tag = 'internal scratch']
  #allocation2 [shape = 'f32[64,128]{1,0:T(8,128)}', space=vmem, size = 0x8000, scoped, tag = 'scratch operand']
  %s0 = inlined_call_operand.vmem [shape: f32[64,8], index: 0, kind: input, shape index: {}]
  %s1 = inlined_call_operand.hbm [shape: f32[8,128], index: 1, kind: input, shape index: {}]
  %s2 = inlined_call_operand.hbm [shape: bf16[32,128], index: 2, kind: input, shape index: {}]
  %s3 = inlined_call_operand.vmem [shape: f32[1,128], index: 3, kind: input, shape index: {}]
  %s4 = inlined_call_operand.vmem [shape: bf16[64,128], index: 4, kind: input, shape index: {}]
  %s5 = inlined_call_operand.vmem [shape: f32[1,128], index: 5, kind: input, shape index: {}]
  %s6 = inlined_call_operand.vmem [shape: f32[32,128], index: 6, kind: input, shape index: {}]
  %s7 = inlined_call_operand.hbm [shape: bf16[32,128], index: 7, kind: input, shape index: {}]
  %s8 = inlined_call_operand.vmem [shape: f32[1,128], index: 8, kind: input, shape index: {}]
  %s9 = inlined_call_operand.vmem [shape: bf16[64,128], index: 9, kind: input, shape index: {}]
  %s10 = inlined_call_operand.vmem [shape: f32[1,128], index: 10, kind: input, shape index: {}]
  %s11 = inlined_call_operand.hbm [shape: f32[32,128], index: 11, kind: input, shape index: {}]
  %s12 = inlined_call_operand.hbm [shape: f32[8,128], index: 12, kind: output, shape index: {0}]
  %s13 = inlined_call_operand.hbm [shape: f32[64,128], index: 13, kind: output, shape index: {1}]
  %14 = xla_tuple %s12, %s13
  %s15 = sld [smem:[#allocation0]]
  $region82: #{tpu_custom_call.1} parent=0
    _
  %s17 = ssub.s32 1, %s15
  %s18 = scalar_select 0, %s17, %s15
  $region1: #{tpu_custom_call.1} parent=0
    #allocation3 [shape = 'u8[4096]{0}', space=vmem, size = 0x1000, scoped, tag = 'input window, operand 1, single buffered']
    #allocation4 [shape = 's32[1]{0}', space=sflag, size = 0x4, scoped, tag = 'scoped memory for tpu_custom_call.1']
    #allocation5 [shape = 's32[1]{0}', space=sflag, size = 0x4, scoped, tag = 'scoped memory for tpu_custom_call.1']
    #allocation6 [shape = 'u8[8192]{0}', space=vmem, size = 0x2000, scoped, tag = 'input window, operand 2, single buffered']
    #allocation7 [shape = 's32[1]{0}', space=sflag, size = 0x4, scoped, tag = 'scoped memory for tpu_custom_call.1']
    #allocation8 [shape = 'u8[8192]{0}', space=vmem, size = 0x2000, scoped, tag = 'input window, operand 7, single buffered']
    #allocation9 [shape = 'u8[16384]{0}', space=vmem, size = 0x4000, scoped, tag = 'input window, operand 11, single buffered']
    #allocation10 [shape = 's32[1]{0}', space=sflag, size = 0x4, scoped, tag = 'scoped memory for tpu_custom_call.1']
    #allocation11 [shape = 'u8[4096]{0}', space=vmem, size = 0x1000, scoped, tag = 'output window, operand 0, single buffered']
    #allocation12 [shape = 'u8[32768]{0}', space=vmem, size = 0x8000, scoped, tag = 'output window, operand 1, single buffered']
    #allocation13 [shape = 's32[1]{0}', space=sflag, size = 0x4, scoped, tag = 'scoped memory for tpu_custom_call.1']
    %19 = vsyncpa [#allocation4], 0
    %20 = vsyncpa [#allocation7], 0
    %21 = vsyncpa [#allocation10], 0
    %22 = vsyncpa [#allocation5], 0
    %23 = vsyncpa [#allocation13], 0
    // Predicated region
    $region2: #{tpu_custom_call.1} parent=1 // pred_check
      _
    $region3: #{tpu_custom_call.1} parent=1 // pred_check_branch
      %25 = sbr.rel (0) target = $region5
    $region4: #{tpu_custom_call.1} parent=1 // pred_region
      _
    $region5: #{tpu_custom_call.1} parent=1 // pred_fallthru
      _
    // Predicated region
    $region6: #{tpu_custom_call.1} parent=1 // pred_check
      _
    $region7: #{tpu_custom_call.1} parent=1 // pred_check_branch
      %27 = sbr.rel (0) target = $region9
    $region8: #{tpu_custom_call.1} parent=1 // pred_region
      %s29 = ssub.s32 128, 128
      %30 = vsyncadd [#allocation4], %s29
      %s32 = sshll.u32 [#allocation3], 4
      %s33 = int_to_ptr.vmem [resolvable:$true] %s32
      %35 = dma.hbm_to_vmem [thread:$0]  %s1, 128, %s33, [#allocation4]
    $region9: #{tpu_custom_call.1} parent=1 // pred_fallthru
      _
    // Predicated region
    $region10: #{tpu_custom_call.1} parent=1 // pred_check
      _
    $region11: #{tpu_custom_call.1} parent=1 // pred_check_branch
      %37 = sbr.rel (0) target = $region13
    $region12: #{tpu_custom_call.1} parent=1 // pred_region
      %s39 = ssub.s32 256, 256
      %40 = vsyncadd [#allocation7], %s39
      %s41 = sshll.u32 [#allocation6], 4
      %s42 = int_to_ptr.vmem [resolvable:$true] %s41
      %47 = dma.hbm_to_vmem [thread:$0]  %s2, 256, %s42, [#allocation7], 64, 64, 4
    $region13: #{tpu_custom_call.1} parent=1 // pred_fallthru
      _
    // Predicated region
    $region14: #{tpu_custom_call.1} parent=1 // pred_check
      _
    $region15: #{tpu_custom_call.1} parent=1 // pred_check_branch
      %49 = sbr.rel (0) target = $region17
    $region16: #{tpu_custom_call.1} parent=1 // pred_region
      _
    $region17: #{tpu_custom_call.1} parent=1 // pred_fallthru
      _
    // Predicated region
    $region18: #{tpu_custom_call.1} parent=1 // pred_check
      _
    $region19: #{tpu_custom_call.1} parent=1 // pred_check_branch
      %51 = sbr.rel (0) target = $region21
    $region20: #{tpu_custom_call.1} parent=1 // pred_region
      _
    $region21: #{tpu_custom_call.1} parent=1 // pred_fallthru
      _
    // Predicated region
    $region22: #{tpu_custom_call.1} parent=1 // pred_check
      _
    $region23: #{tpu_custom_call.1} parent=1 // pred_check_branch
      %53 = sbr.rel (0) target = $region25
    $region24: #{tpu_custom_call.1} parent=1 // pred_region
      _
    $region25: #{tpu_custom_call.1} parent=1 // pred_fallthru
      _
    // Predicated region
    $region26: #{tpu_custom_call.1} parent=1 // pred_check
      _
    $region27: #{tpu_custom_call.1} parent=1 // pred_check_branch
      %55 = sbr.rel (0) target = $region29
    $region28: #{tpu_custom_call.1} parent=1 // pred_region
      _
    $region29: #{tpu_custom_call.1} parent=1 // pred_fallthru
      _
    // Predicated region
    $region30: #{tpu_custom_call.1} parent=1 // pred_check
      _
    $region31: #{tpu_custom_call.1} parent=1 // pred_check_branch
      %57 = sbr.rel (0) target = $region33
    $region32: #{tpu_custom_call.1} parent=1 // pred_region
      %s59 = ssub.s32 256, 256
      %60 = vsyncadd [#allocation7], %s59
      %s61 = sshll.u32 [#allocation8], 4
      %s62 = int_to_ptr.vmem [resolvable:$true] %s61
      %67 = dma.hbm_to_vmem [thread:$0]  %s7, 256, %s62, [#allocation7], 64, 64, 4
    $region33: #{tpu_custom_call.1} parent=1 // pred_fallthru
      _
    // Predicated region
    $region34: #{tpu_custom_call.1} parent=1 // pred_check
      _
    $region35: #{tpu_custom_call.1} parent=1 // pred_check_branch
      %69 = sbr.rel (0) target = $region37
    $region36: #{tpu_custom_call.1} parent=1 // pred_region
      _
    $region37: #{tpu_custom_call.1} parent=1 // pred_fallthru
      _
    // Predicated region
    $region38: #{tpu_custom_call.1} parent=1 // pred_check
      _
    $region39: #{tpu_custom_call.1} parent=1 // pred_check_branch
      %71 = sbr.rel (0) target = $region41
    $region40: #{tpu_custom_call.1} parent=1 // pred_region
      _
    $region41: #{tpu_custom_call.1} parent=1 // pred_fallthru
      _
    // Predicated region
    $region42: #{tpu_custom_call.1} parent=1 // pred_check
      _
    $region43: #{tpu_custom_call.1} parent=1 // pred_check_branch
      %73 = sbr.rel (0) target = $region45
    $region44: #{tpu_custom_call.1} parent=1 // pred_region
      _
    $region45: #{tpu_custom_call.1} parent=1 // pred_fallthru
      _
    // Predicated region
    $region46: #{tpu_custom_call.1} parent=1 // pred_check
      _
    $region47: #{tpu_custom_call.1} parent=1 // pred_check_branch
      %75 = sbr.rel (0) target = $region49
    $region48: #{tpu_custom_call.1} parent=1 // pred_region
      %s77 = ssub.s32 512, 512
      %78 = vsyncadd [#allocation10], %s77
      %s79 = sshll.u32 [#allocation9], 4
      %s80 = int_to_ptr.vmem [resolvable:$true] %s79
      %85 = dma.hbm_to_vmem [thread:$0]  %s11, 512, %s80, [#allocation10], 128, 128, 8
    $region49: #{tpu_custom_call.1} parent=1 // pred_fallthru
      _
    // Predicated region
    $region50: #{tpu_custom_call.1} parent=1 // pred_check
      _
    $region51: #{tpu_custom_call.1} parent=1 // pred_check_branch
      %87 = sbr.rel (0) target = $region53
    $region52: #{tpu_custom_call.1} parent=1 // pred_region
      %88 = dma.done [#allocation4], 128
    $region53: #{tpu_custom_call.1} parent=1 // pred_fallthru
      _
    // Predicated region
    $region54: #{tpu_custom_call.1} parent=1 // pred_check
      _
    $region55: #{tpu_custom_call.1} parent=1 // pred_check_branch
      %90 = sbr.rel (0) target = $region57
    $region56: #{tpu_custom_call.1} parent=1 // pred_region
      %91 = dma.done [#allocation7], 256
    $region57: #{tpu_custom_call.1} parent=1 // pred_fallthru
      _
    // Predicated region
    $region58: #{tpu_custom_call.1} parent=1 // pred_check
      _
    $region59: #{tpu_custom_call.1} parent=1 // pred_check_branch
      %93 = sbr.rel (0) target = $region61
    $region60: #{tpu_custom_call.1} parent=1 // pred_region
      %94 = dma.done [#allocation7], 256
    $region61: #{tpu_custom_call.1} parent=1 // pred_fallthru
      _
    // Predicated region
    $region62: #{tpu_custom_call.1} parent=1 // pred_check
      _
    $region63: #{tpu_custom_call.1} parent=1 // pred_check_branch
      %96 = sbr.rel (0) target = $region65
    $region64: #{tpu_custom_call.1} parent=1 // pred_region
      %97 = dma.done [#allocation10], 512
    $region65: #{tpu_custom_call.1} parent=1 // pred_fallthru
      _
    %v99 = vld [vmem:[%s0] sm:$0xff]
    %v100 = vld [vmem:[%s0 + $0x8] sm:$0xff]
    %v101 = vld [vmem:[%s0 + $0x10] sm:$0xff]
    %v102 = vld [vmem:[%s0 + $0x18] sm:$0xff]
    %v103 = vld [vmem:[%s0 + $0x20] sm:$0xff]
    %v104 = vld [vmem:[%s0 + $0x28] sm:$0xff]
    %v105 = vld [vmem:[%s0 + $0x30] sm:$0xff]
    %v106 = vld [vmem:[%s0 + $0x38] sm:$0xff]
    %v107 = vld [vmem:[#allocation3] sm:$0xff]
    %v108 = vld [vmem:[%s3] sm:$0x1]
    %v110 = vlaneseq
    %v111 = vshrl.u32 %v110, 7
    %v112 = vsub.s32 0, %v111
    %v113 = vrot.slane %v108, %v112
    %vm115 = vcmask 64512
    %v117 = vsel %vm115, %v99, 0
    %v120 = vsel %vm115, %v100, 0
    %v123 = vsel %vm115, %v101, 0
    %v126 = vsel %vm115, %v102, 0
    %v129 = vsel %vm115, %v103, 0
    %v132 = vsel %vm115, %v104, 0
    %v135 = vsel %vm115, %v105, 0
    %v138 = vsel %vm115, %v106, 0
    %140 = vmatprep.subr.mxu0 0.0
    %141 = vmatpush1.msra.mxu0 %v107
    %142 = vmatprep.subr.mxu0 0.0
    %143 = vmatpush1.msra.mxu0 0.0
    %144 = vmatprep.subr.mxu0 0.0
    %145 = vmatpush1.msra.mxu0 0.0
    %146 = vmatprep.subr.mxu0 0.0
    %147 = vmatpush1.msra.mxu0 0.0
    %148 = vmatprep.subr.mxu0 0.0
    %149 = vmatpush1.msra.mxu0 0.0
    %150 = vmatprep.subr.mxu0 0.0
    %151 = vmatpush1.msra.mxu0 0.0
    %152 = vmatprep.subr.mxu0 0.0
    %153 = vmatpush1.msra.mxu0 0.0
    %154 = vmatprep.subr.mxu0 0.0
    %155 = vmatpush1.msra.mxu0 0.0
    %156 = vmatprep.subr.mxu0 0.0
    %157 = vmatpush1.msra.mxu0 0.0
    %158 = vmatprep.subr.mxu0 0.0
    %159 = vmatpush1.msra.mxu0 0.0
    %160 = vmatprep.subr.mxu0 0.0
    %161 = vmatpush1.msra.mxu0 0.0
    %162 = vmatprep.subr.mxu0 0.0
    %163 = vmatpush1.msra.mxu0 0.0
    %164 = vmatprep.subr.mxu0 0.0
    %165 = vmatpush1.msra.mxu0 0.0
    %166 = vmatprep.subr.mxu0 0.0
    %167 = vmatpush1.msra.mxu0 0.0
    %168 = vmatprep.subr.mxu0 0.0
    %169 = vmatpush1.msra.mxu0 0.0
    %170 = vmatprep.subr.mxu0 0.0
    %171 = vmatpush1.msra.mxu0 0.0
    %172 = vmatprep.subr.mxu0 0.0
    %173 = vmatpush1.msra.mxu0 0.0
    %174 = vmatprep.subr.mxu0 0.0
    %175 = vmatpush1.msra.mxu0 0.0
    %176 = vmatprep.subr.mxu0 0.0
    %177 = vmatpush1.msra.mxu0 0.0
    %178 = vmatprep.subr.mxu0 0.0
    %179 = vmatpush1.msra.mxu0 0.0
    %180 = vmatprep.subr.mxu0 0.0
    %181 = vmatpush1.msra.mxu0 0.0
    %182 = vmatprep.subr.mxu0 0.0
    %183 = vmatpush1.msra.mxu0 0.0
    %184 = vmatprep.subr.mxu0 0.0
    %185 = vmatpush1.msra.mxu0 0.0
    %186 = vmatprep.subr.mxu0 0.0
    %187 = vmatpush1.msra.mxu0 0.0
    %188 = vmatprep.subr.mxu0 0.0
    %189 = vmatpush1.msra.mxu0 0.0
    %190 = vmatprep.subr.mxu0 0.0
    %191 = vmatpush1.msra.mxu0 0.0
    %192 = vmatprep.subr.mxu0 0.0
    %193 = vmatpush1.msra.mxu0 0.0
    %194 = vmatprep.subr.mxu0 0.0
    %195 = vmatpush1.msra.mxu0 0.0
    %196 = vmatprep.subr.mxu0 0.0
    %197 = vmatpush1.msra.mxu0 0.0
    %198 = vmatprep.subr.mxu0 0.0
    %199 = vmatpush1.msra.mxu0 0.0
    %200 = vmatprep.subr.mxu0 0.0
    %201 = vmatpush1.msra.mxu0 0.0
    %202 = vmatprep.subr.mxu0 0.0
    %203 = vmatpush1.msra.mxu0 0.0
    %204 = vmatprep.mubr.f32.mxu0 0.0
    %205 = vmatmul.mubr.f32.gmra.mrb[0].mxu0 %v117
    %v206 = vpop.f32.mrb[0].mxu0
    %v207 = vadd.f32 %v113, %v206
    %v208 = vpop.f32.mrb[0].mxu0
    %209 = vmatprep.mubr.f32.mxu0 0.0
    %210 = vmatmul.mubr.f32.gmra.mrb[0].mxu0 %v120
    %v211 = vpop.f32.mrb[0].mxu0
    %v212 = vadd.f32 %v113, %v211
    %v213 = vpop.f32.mrb[0].mxu0
    %214 = vmatprep.mubr.f32.mxu0 0.0
    %215 = vmatmul.mubr.f32.gmra.mrb[0].mxu0 %v123
    %v216 = vpop.f32.mrb[0].mxu0
    %v217 = vadd.f32 %v113, %v216
    %v218 = vpop.f32.mrb[0].mxu0
    %219 = vmatprep.mubr.f32.mxu0 0.0
    %220 = vmatmul.mubr.f32.gmra.mrb[0].mxu0 %v126
    %v221 = vpop.f32.mrb[0].mxu0
    %v222 = vadd.f32 %v113, %v221
    %v223 = vpop.f32.mrb[0].mxu0
    %224 = vmatprep.mubr.f32.mxu0 0.0
    %225 = vmatmul.mubr.f32.gmra.mrb[0].mxu0 %v129
    %v226 = vpop.f32.mrb[0].mxu0
    %v227 = vadd.f32 %v113, %v226
    %v228 = vpop.f32.mrb[0].mxu0
    %229 = vmatprep.mubr.f32.mxu0 0.0
    %230 = vmatmul.mubr.f32.gmra.mrb[0].mxu0 %v132
    %v231 = vpop.f32.mrb[0].mxu0
    %v232 = vadd.f32 %v113, %v231
    %v233 = vpop.f32.mrb[0].mxu0
    %234 = vmatprep.mubr.f32.mxu0 0.0
    %235 = vmatmul.mubr.f32.gmra.mrb[0].mxu0 %v135
    %v236 = vpop.f32.mrb[0].mxu0
    %v237 = vadd.f32 %v113, %v236
    %v238 = vpop.f32.mrb[0].mxu0
    %239 = vmatprep.mubr.f32.mxu0 0.0
    %240 = vmatmul.mubr.f32.gmra.mrb[0].mxu0 %v138
    %v241 = vpop.f32.mrb[0].mxu0
    %v242 = vadd.f32 %v113, %v241
    %v243 = vpop.f32.mrb[0].mxu0
    %244 = vdwg.mxu0
    %245 = vst [vmem:[#allocation2] sm:$0xff] %v207
    %246 = vst [vmem:[#allocation2 + $0x8] sm:$0xff] %v212
    %247 = vst [vmem:[#allocation2 + $0x10] sm:$0xff] %v217
    %248 = vst [vmem:[#allocation2 + $0x18] sm:$0xff] %v222
    %249 = vst [vmem:[#allocation2 + $0x20] sm:$0xff] %v227
    %250 = vst [vmem:[#allocation2 + $0x28] sm:$0xff] %v232
    %251 = vst [vmem:[#allocation2 + $0x30] sm:$0xff] %v237
    %252 = vst [vmem:[#allocation2 + $0x38] sm:$0xff] %v242
    %v253 = vld [vmem:[#allocation6] sm:$0xf]
    %v254 = vld [vmem:[#allocation6 + $0x4] sm:$0xf]
    %v255 = vld [vmem:[#allocation6 + $0x8] sm:$0xf]
    %v256 = vld [vmem:[#allocation6 + $0xc] sm:$0xf]
    %v257 = vld [vmem:[%s4] sm:$0xf]
    %v258 = vld [vmem:[%s4 + $0x4] sm:$0xf]
    %v259 = vld [vmem:[%s4 + $0x8] sm:$0xf]
    %v260 = vld [vmem:[%s4 + $0xc] sm:$0xf]
    %v261 = vld [vmem:[%s4 + $0x10] sm:$0xf]
    %v262 = vld [vmem:[%s4 + $0x14] sm:$0xf]
    %v263 = vld [vmem:[%s4 + $0x18] sm:$0xf]
    %v264 = vld [vmem:[%s4 + $0x1c] sm:$0xf]
    %v265 = vld [vmem:[%s5] sm:$0x1]
    %v266 = vlaneseq
    %v267 = vand.u32 %v266, 127
    %vm268 = vcmp.ge.s32.totalorder %v267, 64
    %vm269 = vcmp.lt.s32.totalorder %v267, 96
    %vm270 = vmand %vm268, %vm269
    %v271 = vld [vmem:[#allocation2] sm:$0xff]
    %v276 = vunpack.c.l.b16 %v253
    %v277 = vunpack.c.l.b16 %v254
    %v278 = vunpack.c.l.b16 %v255
    %v279 = vunpack.c.l.b16 %v256
    %v280 = vpack.c.b16 %v277, %v276
    %v281 = vpack.c.b16 %v279, %v278
    %vm284 = vcmask 261120
    %v286 = vsel %vm284, 0, 0
    %288 = vmatprep.subr.bf16.mxu0 0
    %289 = vmatpush1.bf16.msra.mxu0 %v280
    %290 = vmatprep.subr.bf16.mxu0 0
    %291 = vmatpush1.bf16.msra.mxu0 %v281
    %292 = vmatprep.subr.bf16.mxu0 0
    %293 = vmatpush1.bf16.msra.mxu0 0
    %294 = vmatprep.subr.bf16.mxu0 0
    %295 = vmatpush1.bf16.msra.mxu0 0
    %296 = vmatprep.subr.bf16.mxu0 0
    %297 = vmatpush1.bf16.msra.mxu0 0
    %298 = vmatprep.subr.bf16.mxu0 0
    %299 = vmatpush1.bf16.msra.mxu0 0
    %300 = vmatprep.subr.bf16.mxu0 0
    %301 = vmatpush1.bf16.msra.mxu0 0
    %302 = vmatprep.subr.bf16.mxu0 0
    %303 = vmatpush1.bf16.msra.mxu0 0
    %304 = vmatprep.subr.bf16.mxu0 0
    %305 = vmatpush1.bf16.msra.mxu0 0
    %306 = vmatprep.subr.bf16.mxu0 0
    %307 = vmatpush1.bf16.msra.mxu0 0
    %308 = vmatprep.subr.bf16.mxu0 0
    %309 = vmatpush1.bf16.msra.mxu0 0
    %310 = vmatprep.subr.bf16.mxu0 0
    %311 = vmatpush1.bf16.msra.mxu0 0
    %312 = vmatprep.subr.bf16.mxu0 0
    %313 = vmatpush1.bf16.msra.mxu0 0
    %314 = vmatprep.subr.bf16.mxu0 0
    %315 = vmatpush1.bf16.msra.mxu0 0
    %316 = vmatprep.subr.bf16.mxu0 0
    %317 = vmatpush1.bf16.msra.mxu0 0
    %318 = vmatprep.subr.bf16.mxu0 0
    %319 = vmatpush1.bf16.msra.mxu0 0
    %320 = vmatprep.mubr.bf16.mxu0 0
    %321 = vmatmul.mubr.bf16.gmra.mrb[0].mxu0 %v286
    %v322 = vpop.f32.mrb[0].mxu0
    %v323 = vadd.f32 0.0, %v322
    %v324 = vpop.f32.mrb[0].mxu0
    %v325 = vpop.f32.mrb[0].mxu0
    %v326 = vpop.f32.mrb[0].mxu0
    %327 = vdwg.mxu0
    %v328 = vadd.f32 %v271, %v323
    %v329 = vxor.u32 %v328, 2147483648
    %v330 = vmul.f32 %v329, 1.442695
    %v331 = vpow.pop %v330
    %v332 = vadd.f32 %v331, 1.0
    %v333 = vrcp.pop %v332
    %v334 = vmul.f32 1.0, %v333
    %v335 = vtanh.pop %v328
    %v336 = vsel %vm270, %v335, %v334
    %v337 = vmul.f32 %v336, 0.0
    %339 = vrot.lane.b32.xlu0 %v336, 64
    %v340 = vpop.permute.xlu0 %339
    %v342 = vmul.f32 %v336, %v340
    %344 = vrot.lane.b32.xlu0 %v342, 32
    %v345 = vpop.permute.xlu0 %344
    %v347 = vadd.f32 %v337, %v345
    %v348 = vtanh.pop %v347
    %350 = vrot.lane.b32.xlu0 %v348, 64
    %v351 = vpop.permute.xlu0 %350
    %v353 = vmul.f32 %v336, %v351
    %v354 = vxor.u32 %v353, 2147483648
    %v355 = vmul.f32 %v354, 1.442695
    %v356 = vpow.pop %v355
    %v357 = vadd.f32 %v356, 1.0
    %v358 = vrcp.pop %v357
    %v359 = vmul.f32 1.0, %v358
    %361 = vrot.lane.b32.xlu0 %v359, 32
    %v362 = vpop.permute.xlu0 %361
    %v364 = vsel %vm284, %v362, 0.0
    %v365 = vpack.c.bf16 %v364, %v364
    %v367 = vlaneseq
    %v368 = vshrl.u32 %v367, 7
    %v369 = vsub.s32 0, %v368
    %v370 = vrot.slane %v265, %v369
    %v380 = vunpack.c.l.b16 %v257
    %v381 = vunpack.c.l.b16 %v258
    %v382 = vunpack.c.l.b16 %v259
    %v383 = vunpack.c.l.b16 %v260
    %v384 = vunpack.c.l.b16 %v261
    %v385 = vunpack.c.l.b16 %v262
    %v386 = vunpack.c.l.b16 %v263
    %v387 = vunpack.c.l.b16 %v264
    %v388 = vpack.c.b16 %v381, %v380
    %v389 = vpack.c.b16 %v383, %v382
    %v390 = vpack.c.b16 %v385, %v384
    %v391 = vpack.c.b16 %v387, %v386
    %vm396 = vcmask 523264
    %v398 = vsel %vm396, %v365, 0
    %400 = vmatprep.subr.bf16.mxu0 0
    %401 = vmatpush1.bf16.msra.mxu0 %v388
    %402 = vmatprep.subr.bf16.mxu0 0
    %403 = vmatpush1.bf16.msra.mxu0 %v389
    %404 = vmatprep.subr.bf16.mxu0 0
    %405 = vmatpush1.bf16.msra.mxu0 %v390
    %406 = vmatprep.subr.bf16.mxu0 0
    %407 = vmatpush1.bf16.msra.mxu0 %v391
    %408 = vmatprep.subr.bf16.mxu0 0
    %409 = vmatpush1.bf16.msra.mxu0 0
    %410 = vmatprep.subr.bf16.mxu0 0
    %411 = vmatpush1.bf16.msra.mxu0 0
    %412 = vmatprep.subr.bf16.mxu0 0
    %413 = vmatpush1.bf16.msra.mxu0 0
    %414 = vmatprep.subr.bf16.mxu0 0
    %415 = vmatpush1.bf16.msra.mxu0 0
    %416 = vmatprep.subr.bf16.mxu0 0
    %417 = vmatpush1.bf16.msra.mxu0 0
    %418 = vmatprep.subr.bf16.mxu0 0
    %419 = vmatpush1.bf16.msra.mxu0 0
    %420 = vmatprep.subr.bf16.mxu0 0
    %421 = vmatpush1.bf16.msra.mxu0 0
    %422 = vmatprep.subr.bf16.mxu0 0
    %423 = vmatpush1.bf16.msra.mxu0 0
    %424 = vmatprep.subr.bf16.mxu0 0
    %425 = vmatpush1.bf16.msra.mxu0 0
    %426 = vmatprep.subr.bf16.mxu0 0
    %427 = vmatpush1.bf16.msra.mxu0 0
    %428 = vmatprep.subr.bf16.mxu0 0
    %429 = vmatpush1.bf16.msra.mxu0 0
    %430 = vmatprep.subr.bf16.mxu0 0
    %431 = vmatpush1.bf16.msra.mxu0 0
    %432 = vmatprep.mubr.bf16.mxu0 0
    %433 = vmatmul.mubr.bf16.gmra.mrb[0].mxu0 %v398
    %v434 = vpop.f32.mrb[0].mxu0
    %v435 = vadd.f32 %v370, %v434
    %v436 = vpop.f32.mrb[0].mxu0
    %v437 = vpop.f32.mrb[0].mxu0
    %v438 = vpop.f32.mrb[0].mxu0
    %439 = vdwg.mxu0
    %v440 = vxor.u32 %v435, 2147483648
    %v441 = vmul.f32 %v440, 1.442695
    %v442 = vpow.pop %v441
    %v443 = vadd.f32 %v442, 1.0
    %v444 = vrcp.pop %v443
    %v445 = vmul.f32 1.0, %v444
    %v446 = vtanh.pop %v435
    %v447 = vsel %vm270, %v446, %v445
    %v448 = vmul.f32 %v447, 0.0
    %450 = vrot.lane.b32.xlu0 %v447, 64
    %v451 = vpop.permute.xlu0 %450
    %v453 = vmul.f32 %v447, %v451
    %455 = vrot.lane.b32.xlu0 %v453, 32
    %v456 = vpop.permute.xlu0 %455
    %v458 = vadd.f32 %v448, %v456
    %v459 = vtanh.pop %v458
    %461 = vrot.lane.b32.xlu0 %v459, 64
    %v462 = vpop.permute.xlu0 %461
    %v464 = vmul.f32 %v447, %v462
    %v465 = vld [vmem:[#allocation2 + $0x8] sm:$0xff]
    %v466 = vpack.c.bf16 %v353, %v353
    %468 = vrot.lane.b32.xlu0 %v466, 32
    %v469 = vpop.permute.xlu0 %468
    %v471 = vsel %vm284, %v469, 0
    %473 = vmatprep.subr.bf16.mxu0 0
    %474 = vmatpush1.bf16.msra.mxu0 %v280
    %475 = vmatprep.subr.bf16.mxu0 0
    %476 = vmatpush1.bf16.msra.mxu0 %v281
    %477 = vmatprep.subr.bf16.mxu0 0
    %478 = vmatpush1.bf16.msra.mxu0 0
    %479 = vmatprep.subr.bf16.mxu0 0
    %480 = vmatpush1.bf16.msra.mxu0 0
    %481 = vmatprep.subr.bf16.mxu0 0
    %482 = vmatpush1.bf16.msra.mxu0 0
    %483 = vmatprep.subr.bf16.mxu0 0
    %484 = vmatpush1.bf16.msra.mxu0 0
    %485 = vmatprep.subr.bf16.mxu0 0
    %486 = vmatpush1.bf16.msra.mxu0 0
    %487 = vmatprep.subr.bf16.mxu0 0
    %488 = vmatpush1.bf16.msra.mxu0 0
    %489 = vmatprep.subr.bf16.mxu0 0
    %490 = vmatpush1.bf16.msra.mxu0 0
    %491 = vmatprep.subr.bf16.mxu0 0
    %492 = vmatpush1.bf16.msra.mxu0 0
    %493 = vmatprep.subr.bf16.mxu0 0
    %494 = vmatpush1.bf16.msra.mxu0 0
    %495 = vmatprep.subr.bf16.mxu0 0
    %496 = vmatpush1.bf16.msra.mxu0 0
    %497 = vmatprep.subr.bf16.mxu0 0
    %498 = vmatpush1.bf16.msra.mxu0 0
    %499 = vmatprep.subr.bf16.mxu0 0
    %500 = vmatpush1.bf16.msra.mxu0 0
    %501 = vmatprep.subr.bf16.mxu0 0
    %502 = vmatpush1.bf16.msra.mxu0 0
    %503 = vmatprep.subr.bf16.mxu0 0
    %504 = vmatpush1.bf16.msra.mxu0 0
    %505 = vmatprep.mubr.bf16.mxu0 0
    %506 = vmatmul.mubr.bf16.gmra.mrb[0].mxu0 %v471
    %v507 = vpop.f32.mrb[0].mxu0
    %v508 = vadd.f32 0.0, %v507
    %v509 = vpop.f32.mrb[0].mxu0
    %v510 = vpop.f32.mrb[0].mxu0
    %v511 = vpop.f32.mrb[0].mxu0
    %512 = vdwg.mxu0
    %v513 = vadd.f32 %v465, %v508
    %v514 = vxor.u32 %v513, 2147483648
    %v515 = vmul.f32 %v514, 1.442695
    %v516 = vpow.pop %v515
    %v517 = vadd.f32 %v516, 1.0
    %v518 = vrcp.pop %v517
    %v519 = vmul.f32 1.0, %v518
    %v520 = vtanh.pop %v513
    %v521 = vsel %vm270, %v520, %v519
    %v522 = vmul.f32 %v521, %v347
    %524 = vrot.lane.b32.xlu0 %v521, 64
    %v525 = vpop.permute.xlu0 %524
    %v527 = vmul.f32 %v521, %v525
    %529 = vrot.lane.b32.xlu0 %v527, 32
    %v530 = vpop.permute.xlu0 %529
    %v532 = vadd.f32 %v522, %v530
    %v533 = vtanh.pop %v532
    %535 = vrot.lane.b32.xlu0 %v533, 64
    %v536 = vpop.permute.xlu0 %535
    %v538 = vmul.f32 %v521, %v536
    %v539 = vxor.u32 %v538, 2147483648
    %v540 = vmul.f32 %v539, 1.442695
    %v541 = vpow.pop %v540
    %v542 = vadd.f32 %v541, 1.0
    %v543 = vrcp.pop %v542
    %v544 = vmul.f32 1.0, %v543
    %546 = vrot.lane.b32.xlu0 %v544, 32
    %v547 = vpop.permute.xlu0 %546
    %550 = vrot.lane.b32.xlu0 %v464, 64
    %v551 = vpop.permute.xlu0 %550
    %v553 = vsel %vm284, %v547, %v551
    %v554 = vpack.c.bf16 %v553, %v553
    %v556 = vsel %vm396, %v554, 0
    %558 = vmatprep.subr.bf16.mxu0 0
    %559 = vmatpush1.bf16.msra.mxu0 %v388
    %560 = vmatprep.subr.bf16.mxu0 0
    %561 = vmatpush1.bf16.msra.mxu0 %v389
    %562 = vmatprep.subr.bf16.mxu0 0
    %563 = vmatpush1.bf16.msra.mxu0 %v390
    %564 = vmatprep.subr.bf16.mxu0 0
    %565 = vmatpush1.bf16.msra.mxu0 %v391
    %566 = vmatprep.subr.bf16.mxu0 0
    %567 = vmatpush1.bf16.msra.mxu0 0
    %568 = vmatprep.subr.bf16.mxu0 0
    %569 = vmatpush1.bf16.msra.mxu0 0
    %570 = vmatprep.subr.bf16.mxu0 0
    %571 = vmatpush1.bf16.msra.mxu0 0
    %572 = vmatprep.subr.bf16.mxu0 0
    %573 = vmatpush1.bf16.msra.mxu0 0
    %574 = vmatprep.subr.bf16.mxu0 0
    %575 = vmatpush1.bf16.msra.mxu0 0
    %576 = vmatprep.subr.bf16.mxu0 0
    %577 = vmatpush1.bf16.msra.mxu0 0
    %578 = vmatprep.subr.bf16.mxu0 0
    %579 = vmatpush1.bf16.msra.mxu0 0
    %580 = vmatprep.subr.bf16.mxu0 0
    %581 = vmatpush1.bf16.msra.mxu0 0
    %582 = vmatprep.subr.bf16.mxu0 0
    %583 = vmatpush1.bf16.msra.mxu0 0
    %584 = vmatprep.subr.bf16.mxu0 0
    %585 = vmatpush1.bf16.msra.mxu0 0
    %586 = vmatprep.subr.bf16.mxu0 0
    %587 = vmatpush1.bf16.msra.mxu0 0
    %588 = vmatprep.subr.bf16.mxu0 0
    %589 = vmatpush1.bf16.msra.mxu0 0
    %590 = vmatprep.mubr.bf16.mxu0 0
    %591 = vmatmul.mubr.bf16.gmra.mrb[0].mxu0 %v556
    %v592 = vpop.f32.mrb[0].mxu0
    %v593 = vadd.f32 %v370, %v592
    %v594 = vpop.f32.mrb[0].mxu0
    %v595 = vpop.f32.mrb[0].mxu0
    %v596 = vpop.f32.mrb[0].mxu0
    %597 = vdwg.mxu0
    %v598 = vxor.u32 %v593, 2147483648
    %v599 = vmul.f32 %v598, 1.442695
    %v600 = vpow.pop %v599
    %v601 = vadd.f32 %v600, 1.0
    %v602 = vrcp.pop %v601
    %v603 = vmul.f32 1.0, %v602
    %v604 = vtanh.pop %v593
    %v605 = vsel %vm270, %v604, %v603
    %v606 = vmul.f32 %v605, %v458
    %608 = vrot.lane.b32.xlu0 %v605, 64
    %v609 = vpop.permute.xlu0 %608
    %v611 = vmul.f32 %v605, %v609
    %613 = vrot.lane.b32.xlu0 %v611, 32
    %v614 = vpop.permute.xlu0 %613
    %v616 = vadd.f32 %v606, %v614
    %v617 = vtanh.pop %v616
    %619 = vrot.lane.b32.xlu0 %v617, 64
    %v620 = vpop.permute.xlu0 %619
    %v622 = vmul.f32 %v605, %v620
    %v623 = vld [vmem:[#allocation2 + $0x10] sm:$0xff]
    %v624 = vpack.c.bf16 %v538, %v538
    %626 = vrot.lane.b32.xlu0 %v624, 32
    %v627 = vpop.permute.xlu0 %626
    %v629 = vsel %vm284, %v627, 0
    %631 = vmatprep.subr.bf16.mxu0 0
    %632 = vmatpush1.bf16.msra.mxu0 %v280
    %633 = vmatprep.subr.bf16.mxu0 0
    %634 = vmatpush1.bf16.msra.mxu0 %v281
    %635 = vmatprep.subr.bf16.mxu0 0
    %636 = vmatpush1.bf16.msra.mxu0 0
    %637 = vmatprep.subr.bf16.mxu0 0
    %638 = vmatpush1.bf16.msra.mxu0 0
    %639 = vmatprep.subr.bf16.mxu0 0
    %640 = vmatpush1.bf16.msra.mxu0 0
    %641 = vmatprep.subr.bf16.mxu0 0
    %642 = vmatpush1.bf16.msra.mxu0 0
    %643 = vmatprep.subr.bf16.mxu0 0
    %644 = vmatpush1.bf16.msra.mxu0 0
    %645 = vmatprep.subr.bf16.mxu0 0
    %646 = vmatpush1.bf16.msra.mxu0 0
    %647 = vmatprep.subr.bf16.mxu0 0
    %648 = vmatpush1.bf16.msra.mxu0 0
    %649 = vmatprep.subr.bf16.mxu0 0
    %650 = vmatpush1.bf16.msra.mxu0 0
    %651 = vmatprep.subr.bf16.mxu0 0
    %652 = vmatpush1.bf16.msra.mxu0 0
    %653 = vmatprep.subr.bf16.mxu0 0
    %654 = vmatpush1.bf16.msra.mxu0 0
    %655 = vmatprep.subr.bf16.mxu0 0
    %656 = vmatpush1.bf16.msra.mxu0 0
    %657 = vmatprep.subr.bf16.mxu0 0
    %658 = vmatpush1.bf16.msra.mxu0 0
    %659 = vmatprep.subr.bf16.mxu0 0
    %660 = vmatpush1.bf16.msra.mxu0 0
    %661 = vmatprep.subr.bf16.mxu0 0
    %662 = vmatpush1.bf16.msra.mxu0 0
    %663 = vmatprep.mubr.bf16.mxu0 0
    %664 = vmatmul.mubr.bf16.gmra.mrb[0].mxu0 %v629
    %v665 = vpop.f32.mrb[0].mxu0
    %v666 = vadd.f32 0.0, %v665
    %v667 = vpop.f32.mrb[0].mxu0
    %v668 = vpop.f32.mrb[0].mxu0
    %v669 = vpop.f32.mrb[0].mxu0
    %670 = vdwg.mxu0
    %v671 = vadd.f32 %v623, %v666
    %v672 = vxor.u32 %v671, 2147483648
    %v673 = vmul.f32 %v672, 1.442695
    %v674 = vpow.pop %v673
    %v675 = vadd.f32 %v674, 1.0
    %v676 = vrcp.pop %v675
    %v677 = vmul.f32 1.0, %v676
    %v678 = vtanh.pop %v671
    %v679 = vsel %vm270, %v678, %v677
    %v680 = vmul.f32 %v679, %v532
    %682 = vrot.lane.b32.xlu0 %v679, 64
    %v683 = vpop.permute.xlu0 %682
    %v685 = vmul.f32 %v679, %v683
    %687 = vrot.lane.b32.xlu0 %v685, 32
    %v688 = vpop.permute.xlu0 %687
    %v690 = vadd.f32 %v680, %v688
    %v691 = vtanh.pop %v690
    %693 = vrot.lane.b32.xlu0 %v691, 64
    %v694 = vpop.permute.xlu0 %693
    %v696 = vmul.f32 %v679, %v694
    %v697 = vxor.u32 %v696, 2147483648
    %v698 = vmul.f32 %v697, 1.442695
    %v699 = vpow.pop %v698
    %v700 = vadd.f32 %v699, 1.0
    %v701 = vrcp.pop %v700
    %v702 = vmul.f32 1.0, %v701
    %704 = vrot.lane.b32.xlu0 %v702, 32
    %v705 = vpop.permute.xlu0 %704
    %708 = vrot.lane.b32.xlu0 %v622, 64
    %v709 = vpop.permute.xlu0 %708
    %v711 = vsel %vm284, %v705, %v709
    %v712 = vpack.c.bf16 %v711, %v711
    %v714 = vsel %vm396, %v712, 0
    %716 = vmatprep.subr.bf16.mxu0 0
    %717 = vmatpush1.bf16.msra.mxu0 %v388
    %718 = vmatprep.subr.bf16.mxu0 0
    %719 = vmatpush1.bf16.msra.mxu0 %v389
    %720 = vmatprep.subr.bf16.mxu0 0
    %721 = vmatpush1.bf16.msra.mxu0 %v390
    %722 = vmatprep.subr.bf16.mxu0 0
    %723 = vmatpush1.bf16.msra.mxu0 %v391
    %724 = vmatprep.subr.bf16.mxu0 0
    %725 = vmatpush1.bf16.msra.mxu0 0
    %726 = vmatprep.subr.bf16.mxu0 0
    %727 = vmatpush1.bf16.msra.mxu0 0
    %728 = vmatprep.subr.bf16.mxu0 0
    %729 = vmatpush1.bf16.msra.mxu0 0
    %730 = vmatprep.subr.bf16.mxu0 0
    %731 = vmatpush1.bf16.msra.mxu0 0
    %732 = vmatprep.subr.bf16.mxu0 0
    %733 = vmatpush1.bf16.msra.mxu0 0
    %734 = vmatprep.subr.bf16.mxu0 0
    %735 = vmatpush1.bf16.msra.mxu0 0
    %736 = vmatprep.subr.bf16.mxu0 0
    %737 = vmatpush1.bf16.msra.mxu0 0
    %738 = vmatprep.subr.bf16.mxu0 0
    %739 = vmatpush1.bf16.msra.mxu0 0
    %740 = vmatprep.subr.bf16.mxu0 0
    %741 = vmatpush1.bf16.msra.mxu0 0
    %742 = vmatprep.subr.bf16.mxu0 0
    %743 = vmatpush1.bf16.msra.mxu0 0
    %744 = vmatprep.subr.bf16.mxu0 0
    %745 = vmatpush1.bf16.msra.mxu0 0
    %746 = vmatprep.subr.bf16.mxu0 0
    %747 = vmatpush1.bf16.msra.mxu0 0
    %748 = vmatprep.mubr.bf16.mxu0 0
    %749 = vmatmul.mubr.bf16.gmra.mrb[0].mxu0 %v714
    %v750 = vpop.f32.mrb[0].mxu0
    %v751 = vadd.f32 %v370, %v750
    %v752 = vpop.f32.mrb[0].mxu0
    %v753 = vpop.f32.mrb[0].mxu0
    %v754 = vpop.f32.mrb[0].mxu0
    %755 = vdwg.mxu0
    %v756 = vxor.u32 %v751, 2147483648
    %v757 = vmul.f32 %v756, 1.442695
    %v758 = vpow.pop %v757
    %v759 = vadd.f32 %v758, 1.0
    %v760 = vrcp.pop %v759
    %v761 = vmul.f32 1.0, %v760
    %v762 = vtanh.pop %v751
    %v763 = vsel %vm270, %v762, %v761
    %v764 = vmul.f32 %v763, %v616
    %766 = vrot.lane.b32.xlu0 %v763, 64
    %v767 = vpop.permute.xlu0 %766
    %v769 = vmul.f32 %v763, %v767
    %771 = vrot.lane.b32.xlu0 %v769, 32
    %v772 = vpop.permute.xlu0 %771
    %v774 = vadd.f32 %v764, %v772
    %v775 = vtanh.pop %v774
    %777 = vrot.lane.b32.xlu0 %v775, 64
    %v778 = vpop.permute.xlu0 %777
    %v780 = vmul.f32 %v763, %v778
    %v781 = vld [vmem:[#allocation2 + $0x18] sm:$0xff]
    %v782 = vpack.c.bf16 %v696, %v696
    %784 = vrot.lane.b32.xlu0 %v782, 32
    %v785 = vpop.permute.xlu0 %784
    %v787 = vsel %vm284, %v785, 0
    %789 = vmatprep.subr.bf16.mxu0 0
    %790 = vmatpush1.bf16.msra.mxu0 %v280
    %791 = vmatprep.subr.bf16.mxu0 0
    %792 = vmatpush1.bf16.msra.mxu0 %v281
    %793 = vmatprep.subr.bf16.mxu0 0
    %794 = vmatpush1.bf16.msra.mxu0 0
    %795 = vmatprep.subr.bf16.mxu0 0
    %796 = vmatpush1.bf16.msra.mxu0 0
    %797 = vmatprep.subr.bf16.mxu0 0
    %798 = vmatpush1.bf16.msra.mxu0 0
    %799 = vmatprep.subr.bf16.mxu0 0
    %800 = vmatpush1.bf16.msra.mxu0 0
    %801 = vmatprep.subr.bf16.mxu0 0
    %802 = vmatpush1.bf16.msra.mxu0 0
    %803 = vmatprep.subr.bf16.mxu0 0
    %804 = vmatpush1.bf16.msra.mxu0 0
    %805 = vmatprep.subr.bf16.mxu0 0
    %806 = vmatpush1.bf16.msra.mxu0 0
    %807 = vmatprep.subr.bf16.mxu0 0
    %808 = vmatpush1.bf16.msra.mxu0 0
    %809 = vmatprep.subr.bf16.mxu0 0
    %810 = vmatpush1.bf16.msra.mxu0 0
    %811 = vmatprep.subr.bf16.mxu0 0
    %812 = vmatpush1.bf16.msra.mxu0 0
    %813 = vmatprep.subr.bf16.mxu0 0
    %814 = vmatpush1.bf16.msra.mxu0 0
    %815 = vmatprep.subr.bf16.mxu0 0
    %816 = vmatpush1.bf16.msra.mxu0 0
    %817 = vmatprep.subr.bf16.mxu0 0
    %818 = vmatpush1.bf16.msra.mxu0 0
    %819 = vmatprep.subr.bf16.mxu0 0
    %820 = vmatpush1.bf16.msra.mxu0 0
    %821 = vmatprep.mubr.bf16.mxu0 0
    %822 = vmatmul.mubr.bf16.gmra.mrb[0].mxu0 %v787
    %v823 = vpop.f32.mrb[0].mxu0
    %v824 = vadd.f32 0.0, %v823
    %v825 = vpop.f32.mrb[0].mxu0
    %v826 = vpop.f32.mrb[0].mxu0
    %v827 = vpop.f32.mrb[0].mxu0
    %828 = vdwg.mxu0
    %v829 = vadd.f32 %v781, %v824
    %v830 = vxor.u32 %v829, 2147483648
    %v831 = vmul.f32 %v830, 1.442695
    %v832 = vpow.pop %v831
    %v833 = vadd.f32 %v832, 1.0
    %v834 = vrcp.pop %v833
    %v835 = vmul.f32 1.0, %v834
    %v836 = vtanh.pop %v829
    %v837 = vsel %vm270, %v836, %v835
    %v838 = vmul.f32 %v837, %v690
    %840 = vrot.lane.b32.xlu0 %v837, 64
    %v841 = vpop.permute.xlu0 %840
    %v843 = vmul.f32 %v837, %v841
    %845 = vrot.lane.b32.xlu0 %v843, 32
    %v846 = vpop.permute.xlu0 %845
    %v848 = vadd.f32 %v838, %v846
    %v849 = vtanh.pop %v848
    %851 = vrot.lane.b32.xlu0 %v849, 64
    %v852 = vpop.permute.xlu0 %851
    %v854 = vmul.f32 %v837, %v852
    %v855 = vxor.u32 %v854, 2147483648
    %v856 = vmul.f32 %v855, 1.442695
    %v857 = vpow.pop %v856
    %v858 = vadd.f32 %v857, 1.0
    %v859 = vrcp.pop %v858
    %v860 = vmul.f32 1.0, %v859
    %862 = vrot.lane.b32.xlu0 %v860, 32
    %v863 = vpop.permute.xlu0 %862
    %866 = vrot.lane.b32.xlu0 %v780, 64
    %v867 = vpop.permute.xlu0 %866
    %v869 = vsel %vm284, %v863, %v867
    %v870 = vpack.c.bf16 %v869, %v869
    %v872 = vsel %vm396, %v870, 0
    %874 = vmatprep.subr.bf16.mxu0 0
    %875 = vmatpush1.bf16.msra.mxu0 %v388
    %876 = vmatprep.subr.bf16.mxu0 0
    %877 = vmatpush1.bf16.msra.mxu0 %v389
    %878 = vmatprep.subr.bf16.mxu0 0
    %879 = vmatpush1.bf16.msra.mxu0 %v390
    %880 = vmatprep.subr.bf16.mxu0 0
    %881 = vmatpush1.bf16.msra.mxu0 %v391
    %882 = vmatprep.subr.bf16.mxu0 0
    %883 = vmatpush1.bf16.msra.mxu0 0
    %884 = vmatprep.subr.bf16.mxu0 0
    %885 = vmatpush1.bf16.msra.mxu0 0
    %886 = vmatprep.subr.bf16.mxu0 0
    %887 = vmatpush1.bf16.msra.mxu0 0
    %888 = vmatprep.subr.bf16.mxu0 0
    %889 = vmatpush1.bf16.msra.mxu0 0
    %890 = vmatprep.subr.bf16.mxu0 0
    %891 = vmatpush1.bf16.msra.mxu0 0
    %892 = vmatprep.subr.bf16.mxu0 0
    %893 = vmatpush1.bf16.msra.mxu0 0
    %894 = vmatprep.subr.bf16.mxu0 0
    %895 = vmatpush1.bf16.msra.mxu0 0
    %896 = vmatprep.subr.bf16.mxu0 0
    %897 = vmatpush1.bf16.msra.mxu0 0
    %898 = vmatprep.subr.bf16.mxu0 0
    %899 = vmatpush1.bf16.msra.mxu0 0
    %900 = vmatprep.subr.bf16.mxu0 0
    %901 = vmatpush1.bf16.msra.mxu0 0
    %902 = vmatprep.subr.bf16.mxu0 0
    %903 = vmatpush1.bf16.msra.mxu0 0
    %904 = vmatprep.subr.bf16.mxu0 0
    %905 = vmatpush1.bf16.msra.mxu0 0
    %906 = vmatprep.mubr.bf16.mxu0 0
    %907 = vmatmul.mubr.bf16.gmra.mrb[0].mxu0 %v872
    %v908 = vpop.f32.mrb[0].mxu0
    %v909 = vadd.f32 %v370, %v908
    %v910 = vpop.f32.mrb[0].mxu0
    %v911 = vpop.f32.mrb[0].mxu0
    %v912 = vpop.f32.mrb[0].mxu0
    %913 = vdwg.mxu0
    %v914 = vxor.u32 %v909, 2147483648
    %v915 = vmul.f32 %v914, 1.442695
    %v916 = vpow.pop %v915
    %v917 = vadd.f32 %v916, 1.0
    %v918 = vrcp.pop %v917
    %v919 = vmul.f32 1.0, %v918
    %v920 = vtanh.pop %v909
    %v921 = vsel %vm270, %v920, %v919
    %v922 = vmul.f32 %v921, %v774
    %924 = vrot.lane.b32.xlu0 %v921, 64
    %v925 = vpop.permute.xlu0 %924
    %v927 = vmul.f32 %v921, %v925
    %929 = vrot.lane.b32.xlu0 %v927, 32
    %v930 = vpop.permute.xlu0 %929
    %v932 = vadd.f32 %v922, %v930
    %v933 = vtanh.pop %v932
    %935 = vrot.lane.b32.xlu0 %v933, 64
    %v936 = vpop.permute.xlu0 %935
    %v938 = vmul.f32 %v921, %v936
    %v939 = vld [vmem:[#allocation2 + $0x20] sm:$0xff]
    %v940 = vpack.c.bf16 %v854, %v854
    %942 = vrot.lane.b32.xlu0 %v940, 32
    %v943 = vpop.permute.xlu0 %942
    %v945 = vsel %vm284, %v943, 0
    %947 = vmatprep.subr.bf16.mxu0 0
    %948 = vmatpush1.bf16.msra.mxu0 %v280
    %949 = vmatprep.subr.bf16.mxu0 0
    %950 = vmatpush1.bf16.msra.mxu0 %v281
    %951 = vmatprep.subr.bf16.mxu0 0
    %952 = vmatpush1.bf16.msra.mxu0 0
    %953 = vmatprep.subr.bf16.mxu0 0
    %954 = vmatpush1.bf16.msra.mxu0 0
    %955 = vmatprep.subr.bf16.mxu0 0
    %956 = vmatpush1.bf16.msra.mxu0 0
    %957 = vmatprep.subr.bf16.mxu0 0
    %958 = vmatpush1.bf16.msra.mxu0 0
    %959 = vmatprep.subr.bf16.mxu0 0
    %960 = vmatpush1.bf16.msra.mxu0 0
    %961 = vmatprep.subr.bf16.mxu0 0
    %962 = vmatpush1.bf16.msra.mxu0 0
    %963 = vmatprep.subr.bf16.mxu0 0
    %964 = vmatpush1.bf16.msra.mxu0 0
    %965 = vmatprep.subr.bf16.mxu0 0
    %966 = vmatpush1.bf16.msra.mxu0 0
    %967 = vmatprep.subr.bf16.mxu0 0
    %968 = vmatpush1.bf16.msra.mxu0 0
    %969 = vmatprep.subr.bf16.mxu0 0
    %970 = vmatpush1.bf16.msra.mxu0 0
    %971 = vmatprep.subr.bf16.mxu0 0
    %972 = vmatpush1.bf16.msra.mxu0 0
    %973 = vmatprep.subr.bf16.mxu0 0
    %974 = vmatpush1.bf16.msra.mxu0 0
    %975 = vmatprep.subr.bf16.mxu0 0
    %976 = vmatpush1.bf16.msra.mxu0 0
    %977 = vmatprep.subr.bf16.mxu0 0
    %978 = vmatpush1.bf16.msra.mxu0 0
    %979 = vmatprep.mubr.bf16.mxu0 0
    %980 = vmatmul.mubr.bf16.gmra.mrb[0].mxu0 %v945
    %v981 = vpop.f32.mrb[0].mxu0
    %v982 = vadd.f32 0.0, %v981
    %v983 = vpop.f32.mrb[0].mxu0
    %v984 = vpop.f32.mrb[0].mxu0
    %v985 = vpop.f32.mrb[0].mxu0
    %986 = vdwg.mxu0
    %v987 = vadd.f32 %v939, %v982
    %v988 = vxor.u32 %v987, 2147483648
    %v989 = vmul.f32 %v988, 1.442695
    %v990 = vpow.pop %v989
    %v991 = vadd.f32 %v990, 1.0
    %v992 = vrcp.pop %v991
    %v993 = vmul.f32 1.0, %v992
    %v994 = vtanh.pop %v987
    %v995 = vsel %vm270, %v994, %v993
    %v996 = vmul.f32 %v995, %v848
    %998 = vrot.lane.b32.xlu0 %v995, 64
    %v999 = vpop.permute.xlu0 %998
    %v1001 = vmul.f32 %v995, %v999
    %1003 = vrot.lane.b32.xlu0 %v1001, 32
    %v1004 = vpop.permute.xlu0 %1003
    %v1006 = vadd.f32 %v996, %v1004
    %v1007 = vtanh.pop %v1006
    %1009 = vrot.lane.b32.xlu0 %v1007, 64
    %v1010 = vpop.permute.xlu0 %1009
    %v1012 = vmul.f32 %v995, %v1010
    %v1013 = vxor.u32 %v1012, 2147483648
    %v1014 = vmul.f32 %v1013, 1.442695
    %v1015 = vpow.pop %v1014
    %v1016 = vadd.f32 %v1015, 1.0
    %v1017 = vrcp.pop %v1016
    %v1018 = vmul.f32 1.0, %v1017
    %1020 = vrot.lane.b32.xlu0 %v1018, 32
    %v1021 = vpop.permute.xlu0 %1020
    %1024 = vrot.lane.b32.xlu0 %v938, 64
    %v1025 = vpop.permute.xlu0 %1024
    %v1027 = vsel %vm284, %v1021, %v1025
    %v1028 = vpack.c.bf16 %v1027, %v1027
    %v1030 = vsel %vm396, %v1028, 0
    %1032 = vmatprep.subr.bf16.mxu0 0
    %1033 = vmatpush1.bf16.msra.mxu0 %v388
    %1034 = vmatprep.subr.bf16.mxu0 0
    %1035 = vmatpush1.bf16.msra.mxu0 %v389
    %1036 = vmatprep.subr.bf16.mxu0 0
    %1037 = vmatpush1.bf16.msra.mxu0 %v390
    %1038 = vmatprep.subr.bf16.mxu0 0
    %1039 = vmatpush1.bf16.msra.mxu0 %v391
    %1040 = vmatprep.subr.bf16.mxu0 0
    %1041 = vmatpush1.bf16.msra.mxu0 0
    %1042 = vmatprep.subr.bf16.mxu0 0
    %1043 = vmatpush1.bf16.msra.mxu0 0
    %1044 = vmatprep.subr.bf16.mxu0 0
    %1045 = vmatpush1.bf16.msra.mxu0 0
    %1046 = vmatprep.subr.bf16.mxu0 0
    %1047 = vmatpush1.bf16.msra.mxu0 0
    %1048 = vmatprep.subr.bf16.mxu0 0
    %1049 = vmatpush1.bf16.msra.mxu0 0
    %1050 = vmatprep.subr.bf16.mxu0 0
    %1051 = vmatpush1.bf16.msra.mxu0 0
    %1052 = vmatprep.subr.bf16.mxu0 0
    %1053 = vmatpush1.bf16.msra.mxu0 0
    %1054 = vmatprep.subr.bf16.mxu0 0
    %1055 = vmatpush1.bf16.msra.mxu0 0
    %1056 = vmatprep.subr.bf16.mxu0 0
    %1057 = vmatpush1.bf16.msra.mxu0 0
    %1058 = vmatprep.subr.bf16.mxu0 0
    %1059 = vmatpush1.bf16.msra.mxu0 0
    %1060 = vmatprep.subr.bf16.mxu0 0
    %1061 = vmatpush1.bf16.msra.mxu0 0
    %1062 = vmatprep.subr.bf16.mxu0 0
    %1063 = vmatpush1.bf16.msra.mxu0 0
    %1064 = vmatprep.mubr.bf16.mxu0 0
    %1065 = vmatmul.mubr.bf16.gmra.mrb[0].mxu0 %v1030
    %v1066 = vpop.f32.mrb[0].mxu0
    %v1067 = vadd.f32 %v370, %v1066
    %v1068 = vpop.f32.mrb[0].mxu0
    %v1069 = vpop.f32.mrb[0].mxu0
    %v1070 = vpop.f32.mrb[0].mxu0
    %1071 = vdwg.mxu0
    %v1072 = vxor.u32 %v1067, 2147483648
    %v1073 = vmul.f32 %v1072, 1.442695
    %v1074 = vpow.pop %v1073
    %v1075 = vadd.f32 %v1074, 1.0
    %v1076 = vrcp.pop %v1075
    %v1077 = vmul.f32 1.0, %v1076
    %v1078 = vtanh.pop %v1067
    %v1079 = vsel %vm270, %v1078, %v1077
    %v1080 = vmul.f32 %v1079, %v932
    %1082 = vrot.lane.b32.xlu0 %v1079, 64
    %v1083 = vpop.permute.xlu0 %1082
    %v1085 = vmul.f32 %v1079, %v1083
    %1087 = vrot.lane.b32.xlu0 %v1085, 32
    %v1088 = vpop.permute.xlu0 %1087
    %v1090 = vadd.f32 %v1080, %v1088
    %v1091 = vtanh.pop %v1090
    %1093 = vrot.lane.b32.xlu0 %v1091, 64
    %v1094 = vpop.permute.xlu0 %1093
    %v1096 = vmul.f32 %v1079, %v1094
    %v1097 = vld [vmem:[#allocation2 + $0x28] sm:$0xff]
    %v1098 = vpack.c.bf16 %v1012, %v1012
    %1100 = vrot.lane.b32.xlu0 %v1098, 32
    %v1101 = vpop.permute.xlu0 %1100
    %v1103 = vsel %vm284, %v1101, 0
    %1105 = vmatprep.subr.bf16.mxu0 0
    %1106 = vmatpush1.bf16.msra.mxu0 %v280
    %1107 = vmatprep.subr.bf16.mxu0 0
    %1108 = vmatpush1.bf16.msra.mxu0 %v281
    %1109 = vmatprep.subr.bf16.mxu0 0
    %1110 = vmatpush1.bf16.msra.mxu0 0
    %1111 = vmatprep.subr.bf16.mxu0 0
    %1112 = vmatpush1.bf16.msra.mxu0 0
    %1113 = vmatprep.subr.bf16.mxu0 0
    %1114 = vmatpush1.bf16.msra.mxu0 0
    %1115 = vmatprep.subr.bf16.mxu0 0
    %1116 = vmatpush1.bf16.msra.mxu0 0
    %1117 = vmatprep.subr.bf16.mxu0 0
    %1118 = vmatpush1.bf16.msra.mxu0 0
    %1119 = vmatprep.subr.bf16.mxu0 0
    %1120 = vmatpush1.bf16.msra.mxu0 0
    %1121 = vmatprep.subr.bf16.mxu0 0
    %1122 = vmatpush1.bf16.msra.mxu0 0
    %1123 = vmatprep.subr.bf16.mxu0 0
    %1124 = vmatpush1.bf16.msra.mxu0 0
    %1125 = vmatprep.subr.bf16.mxu0 0
    %1126 = vmatpush1.bf16.msra.mxu0 0
    %1127 = vmatprep.subr.bf16.mxu0 0
    %1128 = vmatpush1.bf16.msra.mxu0 0
    %1129 = vmatprep.subr.bf16.mxu0 0
    %1130 = vmatpush1.bf16.msra.mxu0 0
    %1131 = vmatprep.subr.bf16.mxu0 0
    %1132 = vmatpush1.bf16.msra.mxu0 0
    %1133 = vmatprep.subr.bf16.mxu0 0
    %1134 = vmatpush1.bf16.msra.mxu0 0
    %1135 = vmatprep.subr.bf16.mxu0 0
    %1136 = vmatpush1.bf16.msra.mxu0 0
    %1137 = vmatprep.mubr.bf16.mxu0 0
    %1138 = vmatmul.mubr.bf16.gmra.mrb[0].mxu0 %v1103
    %v1139 = vpop.f32.mrb[0].mxu0
    %v1140 = vadd.f32 0.0, %v1139
    %v1141 = vpop.f32.mrb[0].mxu0
    %v1142 = vpop.f32.mrb[0].mxu0
    %v1143 = vpop.f32.mrb[0].mxu0
    %1144 = vdwg.mxu0
    %v1145 = vadd.f32 %v1097, %v1140
    %v1146 = vxor.u32 %v1145, 2147483648
    %v1147 = vmul.f32 %v1146, 1.442695
    %v1148 = vpow.pop %v1147
    %v1149 = vadd.f32 %v1148, 1.0
    %v1150 = vrcp.pop %v1149
    %v1151 = vmul.f32 1.0, %v1150
    %v1152 = vtanh.pop %v1145
    %v1153 = vsel %vm270, %v1152, %v1151
    %v1154 = vmul.f32 %v1153, %v1006
    %1156 = vrot.lane.b32.xlu0 %v1153, 64
    %v1157 = vpop.permute.xlu0 %1156
    %v1159 = vmul.f32 %v1153, %v1157
    %1161 = vrot.lane.b32.xlu0 %v1159, 32
    %v1162 = vpop.permute.xlu0 %1161
    %v1164 = vadd.f32 %v1154, %v1162
    %v1165 = vtanh.pop %v1164
    %1167 = vrot.lane.b32.xlu0 %v1165, 64
    %v1168 = vpop.permute.xlu0 %1167
    %v1170 = vmul.f32 %v1153, %v1168
    %v1171 = vxor.u32 %v1170, 2147483648
    %v1172 = vmul.f32 %v1171, 1.442695
    %v1173 = vpow.pop %v1172
    %v1174 = vadd.f32 %v1173, 1.0
    %v1175 = vrcp.pop %v1174
    %v1176 = vmul.f32 1.0, %v1175
    %1178 = vrot.lane.b32.xlu0 %v1176, 32
    %v1179 = vpop.permute.xlu0 %1178
    %1182 = vrot.lane.b32.xlu0 %v1096, 64
    %v1183 = vpop.permute.xlu0 %1182
    %v1185 = vsel %vm284, %v1179, %v1183
    %v1186 = vpack.c.bf16 %v1185, %v1185
    %v1188 = vsel %vm396, %v1186, 0
    %1190 = vmatprep.subr.bf16.mxu0 0
    %1191 = vmatpush1.bf16.msra.mxu0 %v388
    %1192 = vmatprep.subr.bf16.mxu0 0
    %1193 = vmatpush1.bf16.msra.mxu0 %v389
    %1194 = vmatprep.subr.bf16.mxu0 0
    %1195 = vmatpush1.bf16.msra.mxu0 %v390
    %1196 = vmatprep.subr.bf16.mxu0 0
    %1197 = vmatpush1.bf16.msra.mxu0 %v391
    %1198 = vmatprep.subr.bf16.mxu0 0
    %1199 = vmatpush1.bf16.msra.mxu0 0
    %1200 = vmatprep.subr.bf16.mxu0 0
    %1201 = vmatpush1.bf16.msra.mxu0 0
    %1202 = vmatprep.subr.bf16.mxu0 0
    %1203 = vmatpush1.bf16.msra.mxu0 0
    %1204 = vmatprep.subr.bf16.mxu0 0
    %1205 = vmatpush1.bf16.msra.mxu0 0
    %1206 = vmatprep.subr.bf16.mxu0 0
    %1207 = vmatpush1.bf16.msra.mxu0 0
    %1208 = vmatprep.subr.bf16.mxu0 0
    %1209 = vmatpush1.bf16.msra.mxu0 0
    %1210 = vmatprep.subr.bf16.mxu0 0
    %1211 = vmatpush1.bf16.msra.mxu0 0
    %1212 = vmatprep.subr.bf16.mxu0 0
    %1213 = vmatpush1.bf16.msra.mxu0 0
    %1214 = vmatprep.subr.bf16.mxu0 0
    %1215 = vmatpush1.bf16.msra.mxu0 0
    %1216 = vmatprep.subr.bf16.mxu0 0
    %1217 = vmatpush1.bf16.msra.mxu0 0
    %1218 = vmatprep.subr.bf16.mxu0 0
    %1219 = vmatpush1.bf16.msra.mxu0 0
    %1220 = vmatprep.subr.bf16.mxu0 0
    %1221 = vmatpush1.bf16.msra.mxu0 0
    %1222 = vmatprep.mubr.bf16.mxu0 0
    %1223 = vmatmul.mubr.bf16.gmra.mrb[0].mxu0 %v1188
    %v1224 = vpop.f32.mrb[0].mxu0
    %v1225 = vadd.f32 %v370, %v1224
    %v1226 = vpop.f32.mrb[0].mxu0
    %v1227 = vpop.f32.mrb[0].mxu0
    %v1228 = vpop.f32.mrb[0].mxu0
    %1229 = vdwg.mxu0
    %v1230 = vxor.u32 %v1225, 2147483648
    %v1231 = vmul.f32 %v1230, 1.442695
    %v1232 = vpow.pop %v1231
    %v1233 = vadd.f32 %v1232, 1.0
    %v1234 = vrcp.pop %v1233
    %v1235 = vmul.f32 1.0, %v1234
    %v1236 = vtanh.pop %v1225
    %v1237 = vsel %vm270, %v1236, %v1235
    %v1238 = vmul.f32 %v1237, %v1090
    %1240 = vrot.lane.b32.xlu0 %v1237, 64
    %v1241 = vpop.permute.xlu0 %1240
    %v1243 = vmul.f32 %v1237, %v1241
    %1245 = vrot.lane.b32.xlu0 %v1243, 32
    %v1246 = vpop.permute.xlu0 %1245
    %v1248 = vadd.f32 %v1238, %v1246
    %v1249 = vtanh.pop %v1248
    %1251 = vrot.lane.b32.xlu0 %v1249, 64
    %v1252 = vpop.permute.xlu0 %1251
    %v1254 = vmul.f32 %v1237, %v1252
    %v1255 = vld [vmem:[#allocation2 + $0x30] sm:$0xff]
    %v1256 = vpack.c.bf16 %v1170, %v1170
    %1258 = vrot.lane.b32.xlu0 %v1256, 32
    %v1259 = vpop.permute.xlu0 %1258
    %v1261 = vsel %vm284, %v1259, 0
    %1263 = vmatprep.subr.bf16.mxu0 0
    %1264 = vmatpush1.bf16.msra.mxu0 %v280
    %1265 = vmatprep.subr.bf16.mxu0 0
    %1266 = vmatpush1.bf16.msra.mxu0 %v281
    %1267 = vmatprep.subr.bf16.mxu0 0
    %1268 = vmatpush1.bf16.msra.mxu0 0
    %1269 = vmatprep.subr.bf16.mxu0 0
    %1270 = vmatpush1.bf16.msra.mxu0 0
    %1271 = vmatprep.subr.bf16.mxu0 0
    %1272 = vmatpush1.bf16.msra.mxu0 0
    %1273 = vmatprep.subr.bf16.mxu0 0
    %1274 = vmatpush1.bf16.msra.mxu0 0
    %1275 = vmatprep.subr.bf16.mxu0 0
    %1276 = vmatpush1.bf16.msra.mxu0 0
    %1277 = vmatprep.subr.bf16.mxu0 0
    %1278 = vmatpush1.bf16.msra.mxu0 0
    %1279 = vmatprep.subr.bf16.mxu0 0
    %1280 = vmatpush1.bf16.msra.mxu0 0
    %1281 = vmatprep.subr.bf16.mxu0 0
    %1282 = vmatpush1.bf16.msra.mxu0 0
    %1283 = vmatprep.subr.bf16.mxu0 0
    %1284 = vmatpush1.bf16.msra.mxu0 0
    %1285 = vmatprep.subr.bf16.mxu0 0
    %1286 = vmatpush1.bf16.msra.mxu0 0
    %1287 = vmatprep.subr.bf16.mxu0 0
    %1288 = vmatpush1.bf16.msra.mxu0 0
    %1289 = vmatprep.subr.bf16.mxu0 0
    %1290 = vmatpush1.bf16.msra.mxu0 0
    %1291 = vmatprep.subr.bf16.mxu0 0
    %1292 = vmatpush1.bf16.msra.mxu0 0
    %1293 = vmatprep.subr.bf16.mxu0 0
    %1294 = vmatpush1.bf16.msra.mxu0 0
    %1295 = vmatprep.mubr.bf16.mxu0 0
    %1296 = vmatmul.mubr.bf16.gmra.mrb[0].mxu0 %v1261
    %v1297 = vpop.f32.mrb[0].mxu0
    %v1298 = vadd.f32 0.0, %v1297
    %v1299 = vpop.f32.mrb[0].mxu0
    %v1300 = vpop.f32.mrb[0].mxu0
    %v1301 = vpop.f32.mrb[0].mxu0
    %1302 = vdwg.mxu0
    %v1303 = vadd.f32 %v1255, %v1298
    %v1304 = vxor.u32 %v1303, 2147483648
    %v1305 = vmul.f32 %v1304, 1.442695
    %v1306 = vpow.pop %v1305
    %v1307 = vadd.f32 %v1306, 1.0
    %v1308 = vrcp.pop %v1307
    %v1309 = vmul.f32 1.0, %v1308
    %v1310 = vtanh.pop %v1303
    %v1311 = vsel %vm270, %v1310, %v1309
    %v1312 = vmul.f32 %v1311, %v1164
    %1314 = vrot.lane.b32.xlu0 %v1311, 64
    %v1315 = vpop.permute.xlu0 %1314
    %v1317 = vmul.f32 %v1311, %v1315
    %1319 = vrot.lane.b32.xlu0 %v1317, 32
    %v1320 = vpop.permute.xlu0 %1319
    %v1322 = vadd.f32 %v1312, %v1320
    %v1323 = vtanh.pop %v1322
    %1325 = vrot.lane.b32.xlu0 %v1323, 64
    %v1326 = vpop.permute.xlu0 %1325
    %v1328 = vmul.f32 %v1311, %v1326
    %v1329 = vxor.u32 %v1328, 2147483648
    %v1330 = vmul.f32 %v1329, 1.442695
    %v1331 = vpow.pop %v1330
    %v1332 = vadd.f32 %v1331, 1.0
    %v1333 = vrcp.pop %v1332
    %v1334 = vmul.f32 1.0, %v1333
    %1336 = vrot.lane.b32.xlu0 %v1334, 32
    %v1337 = vpop.permute.xlu0 %1336
    %1340 = vrot.lane.b32.xlu0 %v1254, 64
    %v1341 = vpop.permute.xlu0 %1340
    %v1343 = vsel %vm284, %v1337, %v1341
    %v1344 = vpack.c.bf16 %v1343, %v1343
    %v1346 = vsel %vm396, %v1344, 0
    %1348 = vmatprep.subr.bf16.mxu0 0
    %1349 = vmatpush1.bf16.msra.mxu0 %v388
    %1350 = vmatprep.subr.bf16.mxu0 0
    %1351 = vmatpush1.bf16.msra.mxu0 %v389
    %1352 = vmatprep.subr.bf16.mxu0 0
    %1353 = vmatpush1.bf16.msra.mxu0 %v390
    %1354 = vmatprep.subr.bf16.mxu0 0
    %1355 = vmatpush1.bf16.msra.mxu0 %v391
    %1356 = vmatprep.subr.bf16.mxu0 0
    %1357 = vmatpush1.bf16.msra.mxu0 0
    %1358 = vmatprep.subr.bf16.mxu0 0
    %1359 = vmatpush1.bf16.msra.mxu0 0
    %1360 = vmatprep.subr.bf16.mxu0 0
    %1361 = vmatpush1.bf16.msra.mxu0 0
    %1362 = vmatprep.subr.bf16.mxu0 0
    %1363 = vmatpush1.bf16.msra.mxu0 0
    %1364 = vmatprep.subr.bf16.mxu0 0
    %1365 = vmatpush1.bf16.msra.mxu0 0
    %1366 = vmatprep.subr.bf16.mxu0 0
    %1367 = vmatpush1.bf16.msra.mxu0 0
    %1368 = vmatprep.subr.bf16.mxu0 0
    %1369 = vmatpush1.bf16.msra.mxu0 0
    %1370 = vmatprep.subr.bf16.mxu0 0
    %1371 = vmatpush1.bf16.msra.mxu0 0
    %1372 = vmatprep.subr.bf16.mxu0 0
    %1373 = vmatpush1.bf16.msra.mxu0 0
    %1374 = vmatprep.subr.bf16.mxu0 0
    %1375 = vmatpush1.bf16.msra.mxu0 0
    %1376 = vmatprep.subr.bf16.mxu0 0
    %1377 = vmatpush1.bf16.msra.mxu0 0
    %1378 = vmatprep.subr.bf16.mxu0 0
    %1379 = vmatpush1.bf16.msra.mxu0 0
    %1380 = vmatprep.mubr.bf16.mxu0 0
    %1381 = vmatmul.mubr.bf16.gmra.mrb[0].mxu0 %v1346
    %v1382 = vpop.f32.mrb[0].mxu0
    %v1383 = vadd.f32 %v370, %v1382
    %v1384 = vpop.f32.mrb[0].mxu0
    %v1385 = vpop.f32.mrb[0].mxu0
    %v1386 = vpop.f32.mrb[0].mxu0
    %1387 = vdwg.mxu0
    %v1388 = vxor.u32 %v1383, 2147483648
    %v1389 = vmul.f32 %v1388, 1.442695
    %v1390 = vpow.pop %v1389
    %v1391 = vadd.f32 %v1390, 1.0
    %v1392 = vrcp.pop %v1391
    %v1393 = vmul.f32 1.0, %v1392
    %v1394 = vtanh.pop %v1383
    %v1395 = vsel %vm270, %v1394, %v1393
    %v1396 = vmul.f32 %v1395, %v1248
    %1398 = vrot.lane.b32.xlu0 %v1395, 64
    %v1399 = vpop.permute.xlu0 %1398
    %v1401 = vmul.f32 %v1395, %v1399
    %1403 = vrot.lane.b32.xlu0 %v1401, 32
    %v1404 = vpop.permute.xlu0 %1403
    %v1406 = vadd.f32 %v1396, %v1404
    %v1407 = vtanh.pop %v1406
    %1409 = vrot.lane.b32.xlu0 %v1407, 64
    %v1410 = vpop.permute.xlu0 %1409
    %v1412 = vmul.f32 %v1395, %v1410
    %v1413 = vld [vmem:[#allocation2 + $0x38] sm:$0xff]
    %v1414 = vpack.c.bf16 %v1328, %v1328
    %1416 = vrot.lane.b32.xlu0 %v1414, 32
    %v1417 = vpop.permute.xlu0 %1416
    %v1419 = vsel %vm284, %v1417, 0
    %1421 = vmatprep.subr.bf16.mxu0 0
    %1422 = vmatpush1.bf16.msra.mxu0 %v280
    %1423 = vmatprep.subr.bf16.mxu0 0
    %1424 = vmatpush1.bf16.msra.mxu0 %v281
    %1425 = vmatprep.subr.bf16.mxu0 0
    %1426 = vmatpush1.bf16.msra.mxu0 0
    %1427 = vmatprep.subr.bf16.mxu0 0
    %1428 = vmatpush1.bf16.msra.mxu0 0
    %1429 = vmatprep.subr.bf16.mxu0 0
    %1430 = vmatpush1.bf16.msra.mxu0 0
    %1431 = vmatprep.subr.bf16.mxu0 0
    %1432 = vmatpush1.bf16.msra.mxu0 0
    %1433 = vmatprep.subr.bf16.mxu0 0
    %1434 = vmatpush1.bf16.msra.mxu0 0
    %1435 = vmatprep.subr.bf16.mxu0 0
    %1436 = vmatpush1.bf16.msra.mxu0 0
    %1437 = vmatprep.subr.bf16.mxu0 0
    %1438 = vmatpush1.bf16.msra.mxu0 0
    %1439 = vmatprep.subr.bf16.mxu0 0
    %1440 = vmatpush1.bf16.msra.mxu0 0
    %1441 = vmatprep.subr.bf16.mxu0 0
    %1442 = vmatpush1.bf16.msra.mxu0 0
    %1443 = vmatprep.subr.bf16.mxu0 0
    %1444 = vmatpush1.bf16.msra.mxu0 0
    %1445 = vmatprep.subr.bf16.mxu0 0
    %1446 = vmatpush1.bf16.msra.mxu0 0
    %1447 = vmatprep.subr.bf16.mxu0 0
    %1448 = vmatpush1.bf16.msra.mxu0 0
    %1449 = vmatprep.subr.bf16.mxu0 0
    %1450 = vmatpush1.bf16.msra.mxu0 0
    %1451 = vmatprep.subr.bf16.mxu0 0
    %1452 = vmatpush1.bf16.msra.mxu0 0
    %1453 = vmatprep.mubr.bf16.mxu0 0
    %1454 = vmatmul.mubr.bf16.gmra.mrb[0].mxu0 %v1419
    %v1455 = vpop.f32.mrb[0].mxu0
    %v1456 = vadd.f32 0.0, %v1455
    %v1457 = vpop.f32.mrb[0].mxu0
    %v1458 = vpop.f32.mrb[0].mxu0
    %v1459 = vpop.f32.mrb[0].mxu0
    %1460 = vdwg.mxu0
    %v1461 = vadd.f32 %v1413, %v1456
    %v1462 = vxor.u32 %v1461, 2147483648
    %v1463 = vmul.f32 %v1462, 1.442695
    %v1464 = vpow.pop %v1463
    %v1465 = vadd.f32 %v1464, 1.0
    %v1466 = vrcp.pop %v1465
    %v1467 = vmul.f32 1.0, %v1466
    %v1468 = vtanh.pop %v1461
    %v1469 = vsel %vm270, %v1468, %v1467
    %v1470 = vmul.f32 %v1469, %v1322
    %1472 = vrot.lane.b32.xlu0 %v1469, 64
    %v1473 = vpop.permute.xlu0 %1472
    %v1475 = vmul.f32 %v1469, %v1473
    %1477 = vrot.lane.b32.xlu0 %v1475, 32
    %v1478 = vpop.permute.xlu0 %1477
    %v1480 = vadd.f32 %v1470, %v1478
    %v1481 = vtanh.pop %v1480
    %1483 = vrot.lane.b32.xlu0 %v1481, 64
    %v1484 = vpop.permute.xlu0 %1483
    %v1486 = vmul.f32 %v1469, %v1484
    %v1487 = vxor.u32 %v1486, 2147483648
    %v1488 = vmul.f32 %v1487, 1.442695
    %v1489 = vpow.pop %v1488
    %v1490 = vadd.f32 %v1489, 1.0
    %v1491 = vrcp.pop %v1490
    %v1492 = vmul.f32 1.0, %v1491
    %1494 = vrot.lane.b32.xlu0 %v1492, 32
    %v1495 = vpop.permute.xlu0 %1494
    %1498 = vrot.lane.b32.xlu0 %v1412, 64
    %v1499 = vpop.permute.xlu0 %1498
    %v1501 = vsel %vm284, %v1495, %v1499
    %v1502 = vpack.c.bf16 %v1501, %v1501
    %v1504 = vsel %vm396, %v1502, 0
    %1506 = vmatprep.subr.bf16.mxu0 0
    %1507 = vmatpush1.bf16.msra.mxu0 %v388
    %1508 = vmatprep.subr.bf16.mxu0 0
    %1509 = vmatpush1.bf16.msra.mxu0 %v389
    %1510 = vmatprep.subr.bf16.mxu0 0
    %1511 = vmatpush1.bf16.msra.mxu0 %v390
    %1512 = vmatprep.subr.bf16.mxu0 0
    %1513 = vmatpush1.bf16.msra.mxu0 %v391
    %1514 = vmatprep.subr.bf16.mxu0 0
    %1515 = vmatpush1.bf16.msra.mxu0 0
    %1516 = vmatprep.subr.bf16.mxu0 0
    %1517 = vmatpush1.bf16.msra.mxu0 0
    %1518 = vmatprep.subr.bf16.mxu0 0
    %1519 = vmatpush1.bf16.msra.mxu0 0
    %1520 = vmatprep.subr.bf16.mxu0 0
    %1521 = vmatpush1.bf16.msra.mxu0 0
    %1522 = vmatprep.subr.bf16.mxu0 0
    %1523 = vmatpush1.bf16.msra.mxu0 0
    %1524 = vmatprep.subr.bf16.mxu0 0
    %1525 = vmatpush1.bf16.msra.mxu0 0
    %1526 = vmatprep.subr.bf16.mxu0 0
    %1527 = vmatpush1.bf16.msra.mxu0 0
    %1528 = vmatprep.subr.bf16.mxu0 0
    %1529 = vmatpush1.bf16.msra.mxu0 0
    %1530 = vmatprep.subr.bf16.mxu0 0
    %1531 = vmatpush1.bf16.msra.mxu0 0
    %1532 = vmatprep.subr.bf16.mxu0 0
    %1533 = vmatpush1.bf16.msra.mxu0 0
    %1534 = vmatprep.subr.bf16.mxu0 0
    %1535 = vmatpush1.bf16.msra.mxu0 0
    %1536 = vmatprep.subr.bf16.mxu0 0
    %1537 = vmatpush1.bf16.msra.mxu0 0
    %1538 = vmatprep.mubr.bf16.mxu0 0
    %1539 = vmatmul.mubr.bf16.gmra.mrb[0].mxu0 %v1504
    %v1540 = vpop.f32.mrb[0].mxu0
    %v1541 = vadd.f32 %v370, %v1540
    %v1542 = vpop.f32.mrb[0].mxu0
    %v1543 = vpop.f32.mrb[0].mxu0
    %v1544 = vpop.f32.mrb[0].mxu0
    %1545 = vdwg.mxu0
    %v1546 = vxor.u32 %v1541, 2147483648
    %v1547 = vmul.f32 %v1546, 1.442695
    %v1548 = vpow.pop %v1547
    %v1549 = vadd.f32 %v1548, 1.0
    %v1550 = vrcp.pop %v1549
    %v1551 = vmul.f32 1.0, %v1550
    %v1552 = vtanh.pop %v1541
    %v1553 = vsel %vm270, %v1552, %v1551
    %v1554 = vmul.f32 %v1553, %v1406
    %1556 = vrot.lane.b32.xlu0 %v1553, 64
    %v1557 = vpop.permute.xlu0 %1556
    %v1559 = vmul.f32 %v1553, %v1557
    %1561 = vrot.lane.b32.xlu0 %v1559, 32
    %v1562 = vpop.permute.xlu0 %1561
    %v1564 = vadd.f32 %v1554, %v1562
    %v1565 = vtanh.pop %v1564
    %1567 = vrot.lane.b32.xlu0 %v1565, 64
    %v1568 = vpop.permute.xlu0 %1567
    %v1570 = vmul.f32 %v1553, %v1568
    %v1571 = vtanh.pop %v1570
    %1573 = vrot.lane.b32.xlu0 %v1571, 32
    %v1574 = vpop.permute.xlu0 %1573
    %v1576 = vsel %vm284, %v1574, 0.0
    %1577 = vst [vmem:[#allocation11] sm:$0xff] %v1576
    %v1578 = vld [vmem:[%s6] sm:$0xff]
    %v1579 = vld [vmem:[%s6 + $0x8] sm:$0xff]
    %v1580 = vld [vmem:[%s6 + $0x10] sm:$0xff]
    %v1581 = vld [vmem:[%s6 + $0x18] sm:$0xff]
    %v1582 = vld [vmem:[%s8] sm:$0x1]
    %v1584 = vlaneseq
    %v1585 = vshrl.u32 %v1584, 7
    %v1586 = vsub.s32 0, %v1585
    %v1587 = vrot.slane %v1582, %v1586
    %v1589 = vsel %vm284, %v1574, 0
    %1591 = vmatprep.subr.mxu0 0.0
    %1592 = vmatpush1.msra.mxu0 %v1578
    %1593 = vmatprep.subr.mxu0 0.0
    %1594 = vmatpush1.msra.mxu0 %v1579
    %1595 = vmatprep.subr.mxu0 0.0
    %1596 = vmatpush1.msra.mxu0 %v1580
    %1597 = vmatprep.subr.mxu0 0.0
    %1598 = vmatpush1.msra.mxu0 %v1581
    %1599 = vmatprep.subr.mxu0 0.0
    %1600 = vmatpush1.msra.mxu0 0.0
    %1601 = vmatprep.subr.mxu0 0.0
    %1602 = vmatpush1.msra.mxu0 0.0
    %1603 = vmatprep.subr.mxu0 0.0
    %1604 = vmatpush1.msra.mxu0 0.0
    %1605 = vmatprep.subr.mxu0 0.0
    %1606 = vmatpush1.msra.mxu0 0.0
    %1607 = vmatprep.subr.mxu0 0.0
    %1608 = vmatpush1.msra.mxu0 0.0
    %1609 = vmatprep.subr.mxu0 0.0
    %1610 = vmatpush1.msra.mxu0 0.0
    %1611 = vmatprep.subr.mxu0 0.0
    %1612 = vmatpush1.msra.mxu0 0.0
    %1613 = vmatprep.subr.mxu0 0.0
    %1614 = vmatpush1.msra.mxu0 0.0
    %1615 = vmatprep.subr.mxu0 0.0
    %1616 = vmatpush1.msra.mxu0 0.0
    %1617 = vmatprep.subr.mxu0 0.0
    %1618 = vmatpush1.msra.mxu0 0.0
    %1619 = vmatprep.subr.mxu0 0.0
    %1620 = vmatpush1.msra.mxu0 0.0
    %1621 = vmatprep.subr.mxu0 0.0
    %1622 = vmatpush1.msra.mxu0 0.0
    %1623 = vmatprep.subr.mxu0 0.0
    %1624 = vmatpush1.msra.mxu0 0.0
    %1625 = vmatprep.subr.mxu0 0.0
    %1626 = vmatpush1.msra.mxu0 0.0
    %1627 = vmatprep.subr.mxu0 0.0
    %1628 = vmatpush1.msra.mxu0 0.0
    %1629 = vmatprep.subr.mxu0 0.0
    %1630 = vmatpush1.msra.mxu0 0.0
    %1631 = vmatprep.subr.mxu0 0.0
    %1632 = vmatpush1.msra.mxu0 0.0
    %1633 = vmatprep.subr.mxu0 0.0
    %1634 = vmatpush1.msra.mxu0 0.0
    %1635 = vmatprep.subr.mxu0 0.0
    %1636 = vmatpush1.msra.mxu0 0.0
    %1637 = vmatprep.subr.mxu0 0.0
    %1638 = vmatpush1.msra.mxu0 0.0
    %1639 = vmatprep.subr.mxu0 0.0
    %1640 = vmatpush1.msra.mxu0 0.0
    %1641 = vmatprep.subr.mxu0 0.0
    %1642 = vmatpush1.msra.mxu0 0.0
    %1643 = vmatprep.subr.mxu0 0.0
    %1644 = vmatpush1.msra.mxu0 0.0
    %1645 = vmatprep.subr.mxu0 0.0
    %1646 = vmatpush1.msra.mxu0 0.0
    %1647 = vmatprep.subr.mxu0 0.0
    %1648 = vmatpush1.msra.mxu0 0.0
    %1649 = vmatprep.subr.mxu0 0.0
    %1650 = vmatpush1.msra.mxu0 0.0
    %1651 = vmatprep.subr.mxu0 0.0
    %1652 = vmatpush1.msra.mxu0 0.0
    %1653 = vmatprep.subr.mxu0 0.0
    %1654 = vmatpush1.msra.mxu0 0.0
    %1655 = vmatprep.mubr.f32.mxu0 0.0
    %1656 = vmatmul.mubr.f32.gmra.mrb[0].mxu0 %v1589
    %v1657 = vpop.f32.mrb[0].mxu0
    %v1658 = vadd.f32 %v1587, %v1657
    %v1659 = vpop.f32.mrb[0].mxu0
    %1660 = vdwg.mxu0
    %v1661 = vld [vmem:[#allocation9] sm:$0xff]
    %v1662 = vld [vmem:[#allocation9 + $0x8] sm:$0xff]
    %v1663 = vld [vmem:[#allocation9 + $0x10] sm:$0xff]
    %v1664 = vld [vmem:[#allocation9 + $0x18] sm:$0xff]
    %v1665 = vld [vmem:[#allocation8] sm:$0xf]
    %v1666 = vld [vmem:[#allocation8 + $0x4] sm:$0xf]
    %v1667 = vld [vmem:[#allocation8 + $0x8] sm:$0xf]
    %v1668 = vld [vmem:[#allocation8 + $0xc] sm:$0xf]
    %v1669 = vld [vmem:[%s9] sm:$0xf]
    %v1670 = vld [vmem:[%s9 + $0x4] sm:$0xf]
    %v1671 = vld [vmem:[%s9 + $0x8] sm:$0xf]
    %v1672 = vld [vmem:[%s9 + $0xc] sm:$0xf]
    %v1673 = vld [vmem:[%s9 + $0x10] sm:$0xf]
    %v1674 = vld [vmem:[%s9 + $0x14] sm:$0xf]
    %v1675 = vld [vmem:[%s9 + $0x18] sm:$0xf]
    %v1676 = vld [vmem:[%s9 + $0x1c] sm:$0xf]
    %v1677 = vld [vmem:[%s10] sm:$0x1]
    %v1682 = vunpack.c.l.b16 %v1665
    %v1683 = vunpack.c.l.b16 %v1666
    %v1684 = vunpack.c.l.b16 %v1667
    %v1685 = vunpack.c.l.b16 %v1668
    %v1686 = vpack.c.b16 %v1683, %v1682
    %v1687 = vpack.c.b16 %v1685, %v1684
    %1690 = vmatprep.subr.bf16.mxu0 0
    %1691 = vmatpush1.bf16.msra.mxu0 %v1686
    %1692 = vmatprep.subr.bf16.mxu0 0
    %1693 = vmatpush1.bf16.msra.mxu0 %v1687
    %1694 = vmatprep.subr.bf16.mxu0 0
    %1695 = vmatpush1.bf16.msra.mxu0 0
    %1696 = vmatprep.subr.bf16.mxu0 0
    %1697 = vmatpush1.bf16.msra.mxu0 0
    %1698 = vmatprep.subr.bf16.mxu0 0
    %1699 = vmatpush1.bf16.msra.mxu0 0
    %1700 = vmatprep.subr.bf16.mxu0 0
    %1701 = vmatpush1.bf16.msra.mxu0 0
    %1702 = vmatprep.subr.bf16.mxu0 0
    %1703 = vmatpush1.bf16.msra.mxu0 0
    %1704 = vmatprep.subr.bf16.mxu0 0
    %1705 = vmatpush1.bf16.msra.mxu0 0
    %1706 = vmatprep.subr.bf16.mxu0 0
    %1707 = vmatpush1.bf16.msra.mxu0 0
    %1708 = vmatprep.subr.bf16.mxu0 0
    %1709 = vmatpush1.bf16.msra.mxu0 0
    %1710 = vmatprep.subr.bf16.mxu0 0
    %1711 = vmatpush1.bf16.msra.mxu0 0
    %1712 = vmatprep.subr.bf16.mxu0 0
    %1713 = vmatpush1.bf16.msra.mxu0 0
    %1714 = vmatprep.subr.bf16.mxu0 0
    %1715 = vmatpush1.bf16.msra.mxu0 0
    %1716 = vmatprep.subr.bf16.mxu0 0
    %1717 = vmatpush1.bf16.msra.mxu0 0
    %1718 = vmatprep.subr.bf16.mxu0 0
    %1719 = vmatpush1.bf16.msra.mxu0 0
    %1720 = vmatprep.subr.bf16.mxu0 0
    %1721 = vmatpush1.bf16.msra.mxu0 0
    %1722 = vmatprep.mubr.bf16.mxu0 0
    %1723 = vmatmul.mubr.bf16.gmra.mrb[0].mxu0 %v286
    %v1724 = vpop.f32.mrb[0].mxu0
    %v1725 = vadd.f32 0.0, %v1724
    %v1726 = vpop.f32.mrb[0].mxu0
    %v1727 = vpop.f32.mrb[0].mxu0
    %v1728 = vpop.f32.mrb[0].mxu0
    %1729 = vdwg.mxu0
    %v1730 = vadd.f32 %v1658, %v1725
    %v1731 = vxor.u32 %v1730, 2147483648
    %v1732 = vmul.f32 %v1731, 1.442695
    %v1733 = vpow.pop %v1732
    %v1734 = vadd.f32 %v1733, 1.0
    %v1735 = vrcp.pop %v1734
    %v1736 = vmul.f32 1.0, %v1735
    %v1737 = vtanh.pop %v1730
    %v1738 = vsel %vm270, %v1737, %v1736
    %v1739 = vmul.f32 %v1738, 0.0
    %1741 = vrot.lane.b32.xlu0 %v1738, 64
    %v1742 = vpop.permute.xlu0 %1741
    %v1744 = vmul.f32 %v1738, %v1742
    %1746 = vrot.lane.b32.xlu0 %v1744, 32
    %v1747 = vpop.permute.xlu0 %1746
    %v1749 = vadd.f32 %v1739, %v1747
    %v1750 = vtanh.pop %v1749
    %1752 = vrot.lane.b32.xlu0 %v1750, 64
    %v1753 = vpop.permute.xlu0 %1752
    %v1755 = vmul.f32 %v1738, %v1753
    %v1756 = vxor.u32 %v1755, 2147483648
    %v1757 = vmul.f32 %v1756, 1.442695
    %v1758 = vpow.pop %v1757
    %v1759 = vadd.f32 %v1758, 1.0
    %v1760 = vrcp.pop %v1759
    %v1761 = vmul.f32 1.0, %v1760
    %1763 = vrot.lane.b32.xlu0 %v1761, 32
    %v1764 = vpop.permute.xlu0 %1763
    %v1766 = vsel %vm284, %v1764, 0.0
    %v1767 = vpack.c.bf16 %v1766, %v1766
    %v1769 = vlaneseq
    %v1770 = vshrl.u32 %v1769, 7
    %v1771 = vsub.s32 0, %v1770
    %v1772 = vrot.slane %v1677, %v1771
    %v1782 = vunpack.c.l.b16 %v1669
    %v1783 = vunpack.c.l.b16 %v1670
    %v1784 = vunpack.c.l.b16 %v1671
    %v1785 = vunpack.c.l.b16 %v1672
    %v1786 = vunpack.c.l.b16 %v1673
    %v1787 = vunpack.c.l.b16 %v1674
    %v1788 = vunpack.c.l.b16 %v1675
    %v1789 = vunpack.c.l.b16 %v1676
    %v1790 = vpack.c.b16 %v1783, %v1782
    %v1791 = vpack.c.b16 %v1785, %v1784
    %v1792 = vpack.c.b16 %v1787, %v1786
    %v1793 = vpack.c.b16 %v1789, %v1788
    %v1799 = vsel %vm396, %v1767, 0
    %1801 = vmatprep.subr.bf16.mxu0 0
    %1802 = vmatpush1.bf16.msra.mxu0 %v1790
    %1803 = vmatprep.subr.bf16.mxu0 0
    %1804 = vmatpush1.bf16.msra.mxu0 %v1791
    %1805 = vmatprep.subr.bf16.mxu0 0
    %1806 = vmatpush1.bf16.msra.mxu0 %v1792
    %1807 = vmatprep.subr.bf16.mxu0 0
    %1808 = vmatpush1.bf16.msra.mxu0 %v1793
    %1809 = vmatprep.subr.bf16.mxu0 0
    %1810 = vmatpush1.bf16.msra.mxu0 0
    %1811 = vmatprep.subr.bf16.mxu0 0
    %1812 = vmatpush1.bf16.msra.mxu0 0
    %1813 = vmatprep.subr.bf16.mxu0 0
    %1814 = vmatpush1.bf16.msra.mxu0 0
    %1815 = vmatprep.subr.bf16.mxu0 0
    %1816 = vmatpush1.bf16.msra.mxu0 0
    %1817 = vmatprep.subr.bf16.mxu0 0
    %1818 = vmatpush1.bf16.msra.mxu0 0
    %1819 = vmatprep.subr.bf16.mxu0 0
    %1820 = vmatpush1.bf16.msra.mxu0 0
    %1821 = vmatprep.subr.bf16.mxu0 0
    %1822 = vmatpush1.bf16.msra.mxu0 0
    %1823 = vmatprep.subr.bf16.mxu0 0
    %1824 = vmatpush1.bf16.msra.mxu0 0
    %1825 = vmatprep.subr.bf16.mxu0 0
    %1826 = vmatpush1.bf16.msra.mxu0 0
    %1827 = vmatprep.subr.bf16.mxu0 0
    %1828 = vmatpush1.bf16.msra.mxu0 0
    %1829 = vmatprep.subr.bf16.mxu0 0
    %1830 = vmatpush1.bf16.msra.mxu0 0
    %1831 = vmatprep.subr.bf16.mxu0 0
    %1832 = vmatpush1.bf16.msra.mxu0 0
    %1833 = vmatprep.mubr.bf16.mxu0 0
    %1834 = vmatmul.mubr.bf16.gmra.mrb[0].mxu0 %v1799
    %v1835 = vpop.f32.mrb[0].mxu0
    %v1836 = vadd.f32 %v1772, %v1835
    %v1837 = vpop.f32.mrb[0].mxu0
    %v1838 = vpop.f32.mrb[0].mxu0
    %v1839 = vpop.f32.mrb[0].mxu0
    %1840 = vdwg.mxu0
    %v1841 = vxor.u32 %v1836, 2147483648
    %v1842 = vmul.f32 %v1841, 1.442695
    %v1843 = vpow.pop %v1842
    %v1844 = vadd.f32 %v1843, 1.0
    %v1845 = vrcp.pop %v1844
    %v1846 = vmul.f32 1.0, %v1845
    %v1847 = vtanh.pop %v1836
    %v1848 = vsel %vm270, %v1847, %v1846
    %v1849 = vmul.f32 %v1848, 0.0
    %1851 = vrot.lane.b32.xlu0 %v1848, 64
    %v1852 = vpop.permute.xlu0 %1851
    %v1854 = vmul.f32 %v1848, %v1852
    %1856 = vrot.lane.b32.xlu0 %v1854, 32
    %v1857 = vpop.permute.xlu0 %1856
    %v1859 = vadd.f32 %v1849, %v1857
    %v1860 = vtanh.pop %v1859
    %1862 = vrot.lane.b32.xlu0 %v1860, 64
    %v1863 = vpop.permute.xlu0 %1862
    %v1865 = vmul.f32 %v1848, %v1863
    %1867 = vrot.lane.b32.xlu0 %v1865, 32
    %v1868 = vpop.permute.xlu0 %1867
    %v1869 = vsel %vm284, %v1868, 0
    %1871 = vmatprep.subr.mxu0 0.0
    %1872 = vmatpush1.msra.mxu0 %v1661
    %1873 = vmatprep.subr.mxu0 0.0
    %1874 = vmatpush1.msra.mxu0 %v1662
    %1875 = vmatprep.subr.mxu0 0.0
    %1876 = vmatpush1.msra.mxu0 %v1663
    %1877 = vmatprep.subr.mxu0 0.0
    %1878 = vmatpush1.msra.mxu0 %v1664
    %1879 = vmatprep.subr.mxu0 0.0
    %1880 = vmatpush1.msra.mxu0 0.0
    %1881 = vmatprep.subr.mxu0 0.0
    %1882 = vmatpush1.msra.mxu0 0.0
    %1883 = vmatprep.subr.mxu0 0.0
    %1884 = vmatpush1.msra.mxu0 0.0
    %1885 = vmatprep.subr.mxu0 0.0
    %1886 = vmatpush1.msra.mxu0 0.0
    %1887 = vmatprep.subr.mxu0 0.0
    %1888 = vmatpush1.msra.mxu0 0.0
    %1889 = vmatprep.subr.mxu0 0.0
    %1890 = vmatpush1.msra.mxu0 0.0
    %1891 = vmatprep.subr.mxu0 0.0
    %1892 = vmatpush1.msra.mxu0 0.0
    %1893 = vmatprep.subr.mxu0 0.0
    %1894 = vmatpush1.msra.mxu0 0.0
    %1895 = vmatprep.subr.mxu0 0.0
    %1896 = vmatpush1.msra.mxu0 0.0
    %1897 = vmatprep.subr.mxu0 0.0
    %1898 = vmatpush1.msra.mxu0 0.0
    %1899 = vmatprep.subr.mxu0 0.0
    %1900 = vmatpush1.msra.mxu0 0.0
    %1901 = vmatprep.subr.mxu0 0.0
    %1902 = vmatpush1.msra.mxu0 0.0
    %1903 = vmatprep.subr.mxu0 0.0
    %1904 = vmatpush1.msra.mxu0 0.0
    %1905 = vmatprep.subr.mxu0 0.0
    %1906 = vmatpush1.msra.mxu0 0.0
    %1907 = vmatprep.subr.mxu0 0.0
    %1908 = vmatpush1.msra.mxu0 0.0
    %1909 = vmatprep.subr.mxu0 0.0
    %1910 = vmatpush1.msra.mxu0 0.0
    %1911 = vmatprep.subr.mxu0 0.0
    %1912 = vmatpush1.msra.mxu0 0.0
    %1913 = vmatprep.subr.mxu0 0.0
    %1914 = vmatpush1.msra.mxu0 0.0
    %1915 = vmatprep.subr.mxu0 0.0
    %1916 = vmatpush1.msra.mxu0 0.0
    %1917 = vmatprep.subr.mxu0 0.0
    %1918 = vmatpush1.msra.mxu0 0.0
    %1919 = vmatprep.subr.mxu0 0.0
    %1920 = vmatpush1.msra.mxu0 0.0
    %1921 = vmatprep.subr.mxu0 0.0
    %1922 = vmatpush1.msra.mxu0 0.0
    %1923 = vmatprep.subr.mxu0 0.0
    %1924 = vmatpush1.msra.mxu0 0.0
    %1925 = vmatprep.subr.mxu0 0.0
    %1926 = vmatpush1.msra.mxu0 0.0
    %1927 = vmatprep.subr.mxu0 0.0
    %1928 = vmatpush1.msra.mxu0 0.0
    %1929 = vmatprep.subr.mxu0 0.0
    %1930 = vmatpush1.msra.mxu0 0.0
    %1931 = vmatprep.subr.mxu0 0.0
    %1932 = vmatpush1.msra.mxu0 0.0
    %1933 = vmatprep.subr.mxu0 0.0
    %1934 = vmatpush1.msra.mxu0 0.0
    %1935 = vmatprep.mubr.f32.mxu0 0.0
    %1936 = vmatmul.mubr.f32.gmra.mrb[0].mxu0 %v1869
    %v1937 = vpop.f32.mrb[0].mxu0
    %v1938 = vadd.f32 0.0, %v1937
    %v1939 = vpop.f32.mrb[0].mxu0
    %1940 = vdwg.mxu0
    %1941 = vst [vmem:[#allocation12] sm:$0xff] %v1938
    %v1942 = vpack.c.bf16 %v1755, %v1755
    %1944 = vrot.lane.b32.xlu0 %v1942, 32
    %v1945 = vpop.permute.xlu0 %1944
    %v1947 = vsel %vm284, %v1945, 0
    %1949 = vmatprep.subr.bf16.mxu0 0
    %1950 = vmatpush1.bf16.msra.mxu0 %v1686
    %1951 = vmatprep.subr.bf16.mxu0 0
    %1952 = vmatpush1.bf16.msra.mxu0 %v1687
    %1953 = vmatprep.subr.bf16.mxu0 0
    %1954 = vmatpush1.bf16.msra.mxu0 0
    %1955 = vmatprep.subr.bf16.mxu0 0
    %1956 = vmatpush1.bf16.msra.mxu0 0
    %1957 = vmatprep.subr.bf16.mxu0 0
    %1958 = vmatpush1.bf16.msra.mxu0 0
    %1959 = vmatprep.subr.bf16.mxu0 0
    %1960 = vmatpush1.bf16.msra.mxu0 0
    %1961 = vmatprep.subr.bf16.mxu0 0
    %1962 = vmatpush1.bf16.msra.mxu0 0
    %1963 = vmatprep.subr.bf16.mxu0 0
    %1964 = vmatpush1.bf16.msra.mxu0 0
    %1965 = vmatprep.subr.bf16.mxu0 0
    %1966 = vmatpush1.bf16.msra.mxu0 0
    %1967 = vmatprep.subr.bf16.mxu0 0
    %1968 = vmatpush1.bf16.msra.mxu0 0
    %1969 = vmatprep.subr.bf16.mxu0 0
    %1970 = vmatpush1.bf16.msra.mxu0 0
    %1971 = vmatprep.subr.bf16.mxu0 0
    %1972 = vmatpush1.bf16.msra.mxu0 0
    %1973 = vmatprep.subr.bf16.mxu0 0
    %1974 = vmatpush1.bf16.msra.mxu0 0
    %1975 = vmatprep.subr.bf16.mxu0 0
    %1976 = vmatpush1.bf16.msra.mxu0 0
    %1977 = vmatprep.subr.bf16.mxu0 0
    %1978 = vmatpush1.bf16.msra.mxu0 0
    %1979 = vmatprep.subr.bf16.mxu0 0
    %1980 = vmatpush1.bf16.msra.mxu0 0
    %1981 = vmatprep.mubr.bf16.mxu0 0
    %1982 = vmatmul.mubr.bf16.gmra.mrb[0].mxu0 %v1947
    %v1983 = vpop.f32.mrb[0].mxu0
    %v1984 = vadd.f32 0.0, %v1983
    %v1985 = vpop.f32.mrb[0].mxu0
    %v1986 = vpop.f32.mrb[0].mxu0
    %v1987 = vpop.f32.mrb[0].mxu0
    %1988 = vdwg.mxu0
    %v1989 = vadd.f32 %v1658, %v1984
    %v1990 = vxor.u32 %v1989, 2147483648
    %v1991 = vmul.f32 %v1990, 1.442695
    %v1992 = vpow.pop %v1991
    %v1993 = vadd.f32 %v1992, 1.0
    %v1994 = vrcp.pop %v1993
    %v1995 = vmul.f32 1.0, %v1994
    %v1996 = vtanh.pop %v1989
    %v1997 = vsel %vm270, %v1996, %v1995
    %v1998 = vmul.f32 %v1997, %v1749
    %2000 = vrot.lane.b32.xlu0 %v1997, 64
    %v2001 = vpop.permute.xlu0 %2000
    %v2003 = vmul.f32 %v1997, %v2001
    %2005 = vrot.lane.b32.xlu0 %v2003, 32
    %v2006 = vpop.permute.xlu0 %2005
    %v2008 = vadd.f32 %v1998, %v2006
    %v2009 = vtanh.pop %v2008
    %2011 = vrot.lane.b32.xlu0 %v2009, 64
    %v2012 = vpop.permute.xlu0 %2011
    %v2014 = vmul.f32 %v1997, %v2012
    %v2015 = vxor.u32 %v2014, 2147483648
    %v2016 = vmul.f32 %v2015, 1.442695
    %v2017 = vpow.pop %v2016
    %v2018 = vadd.f32 %v2017, 1.0
    %v2019 = vrcp.pop %v2018
    %v2020 = vmul.f32 1.0, %v2019
    %2022 = vrot.lane.b32.xlu0 %v2020, 32
    %v2023 = vpop.permute.xlu0 %2022
    %2025 = vrot.lane.b32.xlu0 %v1865, 64
    %v2026 = vpop.permute.xlu0 %2025
    %v2028 = vsel %vm284, %v2023, %v2026
    %v2029 = vpack.c.bf16 %v2028, %v2028
    %v2031 = vsel %vm396, %v2029, 0
    %2033 = vmatprep.subr.bf16.mxu0 0
    %2034 = vmatpush1.bf16.msra.mxu0 %v1790
    %2035 = vmatprep.subr.bf16.mxu0 0
    %2036 = vmatpush1.bf16.msra.mxu0 %v1791
    %2037 = vmatprep.subr.bf16.mxu0 0
    %2038 = vmatpush1.bf16.msra.mxu0 %v1792
    %2039 = vmatprep.subr.bf16.mxu0 0
    %2040 = vmatpush1.bf16.msra.mxu0 %v1793
    %2041 = vmatprep.subr.bf16.mxu0 0
    %2042 = vmatpush1.bf16.msra.mxu0 0
    %2043 = vmatprep.subr.bf16.mxu0 0
    %2044 = vmatpush1.bf16.msra.mxu0 0
    %2045 = vmatprep.subr.bf16.mxu0 0
    %2046 = vmatpush1.bf16.msra.mxu0 0
    %2047 = vmatprep.subr.bf16.mxu0 0
    %2048 = vmatpush1.bf16.msra.mxu0 0
    %2049 = vmatprep.subr.bf16.mxu0 0
    %2050 = vmatpush1.bf16.msra.mxu0 0
    %2051 = vmatprep.subr.bf16.mxu0 0
    %2052 = vmatpush1.bf16.msra.mxu0 0
    %2053 = vmatprep.subr.bf16.mxu0 0
    %2054 = vmatpush1.bf16.msra.mxu0 0
    %2055 = vmatprep.subr.bf16.mxu0 0
    %2056 = vmatpush1.bf16.msra.mxu0 0
    %2057 = vmatprep.subr.bf16.mxu0 0
    %2058 = vmatpush1.bf16.msra.mxu0 0
    %2059 = vmatprep.subr.bf16.mxu0 0
    %2060 = vmatpush1.bf16.msra.mxu0 0
    %2061 = vmatprep.subr.bf16.mxu0 0
    %2062 = vmatpush1.bf16.msra.mxu0 0
    %2063 = vmatprep.subr.bf16.mxu0 0
    %2064 = vmatpush1.bf16.msra.mxu0 0
    %2065 = vmatprep.mubr.bf16.mxu0 0
    %2066 = vmatmul.mubr.bf16.gmra.mrb[0].mxu0 %v2031
    %v2067 = vpop.f32.mrb[0].mxu0
    %v2068 = vadd.f32 %v1772, %v2067
    %v2069 = vpop.f32.mrb[0].mxu0
    %v2070 = vpop.f32.mrb[0].mxu0
    %v2071 = vpop.f32.mrb[0].mxu0
    %2072 = vdwg.mxu0
    %v2073 = vxor.u32 %v2068, 2147483648
    %v2074 = vmul.f32 %v2073, 1.442695
    %v2075 = vpow.pop %v2074
    %v2076 = vadd.f32 %v2075, 1.0
    %v2077 = vrcp.pop %v2076
    %v2078 = vmul.f32 1.0, %v2077
    %v2079 = vtanh.pop %v2068
    %v2080 = vsel %vm270, %v2079, %v2078
    %v2081 = vmul.f32 %v2080, %v1859
    %2083 = vrot.lane.b32.xlu0 %v2080, 64
    %v2084 = vpop.permute.xlu0 %2083
    %v2086 = vmul.f32 %v2080, %v2084
    %2088 = vrot.lane.b32.xlu0 %v2086, 32
    %v2089 = vpop.permute.xlu0 %2088
    %v2091 = vadd.f32 %v2081, %v2089
    %v2092 = vtanh.pop %v2091
    %2094 = vrot.lane.b32.xlu0 %v2092, 64
    %v2095 = vpop.permute.xlu0 %2094
    %v2097 = vmul.f32 %v2080, %v2095
    %2099 = vrot.lane.b32.xlu0 %v2097, 32
    %v2100 = vpop.permute.xlu0 %2099
    %v2101 = vsel %vm284, %v2100, 0
    %2103 = vmatprep.subr.mxu0 0.0
    %2104 = vmatpush1.msra.mxu0 %v1661
    %2105 = vmatprep.subr.mxu0 0.0
    %2106 = vmatpush1.msra.mxu0 %v1662
    %2107 = vmatprep.subr.mxu0 0.0
    %2108 = vmatpush1.msra.mxu0 %v1663
    %2109 = vmatprep.subr.mxu0 0.0
    %2110 = vmatpush1.msra.mxu0 %v1664
    %2111 = vmatprep.subr.mxu0 0.0
    %2112 = vmatpush1.msra.mxu0 0.0
    %2113 = vmatprep.subr.mxu0 0.0
    %2114 = vmatpush1.msra.mxu0 0.0
    %2115 = vmatprep.subr.mxu0 0.0
    %2116 = vmatpush1.msra.mxu0 0.0
    %2117 = vmatprep.subr.mxu0 0.0
    %2118 = vmatpush1.msra.mxu0 0.0
    %2119 = vmatprep.subr.mxu0 0.0
    %2120 = vmatpush1.msra.mxu0 0.0
    %2121 = vmatprep.subr.mxu0 0.0
    %2122 = vmatpush1.msra.mxu0 0.0
    %2123 = vmatprep.subr.mxu0 0.0
    %2124 = vmatpush1.msra.mxu0 0.0
    %2125 = vmatprep.subr.mxu0 0.0
    %2126 = vmatpush1.msra.mxu0 0.0
    %2127 = vmatprep.subr.mxu0 0.0
    %2128 = vmatpush1.msra.mxu0 0.0
    %2129 = vmatprep.subr.mxu0 0.0
    %2130 = vmatpush1.msra.mxu0 0.0
    %2131 = vmatprep.subr.mxu0 0.0
    %2132 = vmatpush1.msra.mxu0 0.0
    %2133 = vmatprep.subr.mxu0 0.0
    %2134 = vmatpush1.msra.mxu0 0.0
    %2135 = vmatprep.subr.mxu0 0.0
    %2136 = vmatpush1.msra.mxu0 0.0
    %2137 = vmatprep.subr.mxu0 0.0
    %2138 = vmatpush1.msra.mxu0 0.0
    %2139 = vmatprep.subr.mxu0 0.0
    %2140 = vmatpush1.msra.mxu0 0.0
    %2141 = vmatprep.subr.mxu0 0.0
    %2142 = vmatpush1.msra.mxu0 0.0
    %2143 = vmatprep.subr.mxu0 0.0
    %2144 = vmatpush1.msra.mxu0 0.0
    %2145 = vmatprep.subr.mxu0 0.0
    %2146 = vmatpush1.msra.mxu0 0.0
    %2147 = vmatprep.subr.mxu0 0.0
    %2148 = vmatpush1.msra.mxu0 0.0
    %2149 = vmatprep.subr.mxu0 0.0
    %2150 = vmatpush1.msra.mxu0 0.0
    %2151 = vmatprep.subr.mxu0 0.0
    %2152 = vmatpush1.msra.mxu0 0.0
    %2153 = vmatprep.subr.mxu0 0.0
    %2154 = vmatpush1.msra.mxu0 0.0
    %2155 = vmatprep.subr.mxu0 0.0
    %2156 = vmatpush1.msra.mxu0 0.0
    %2157 = vmatprep.subr.mxu0 0.0
    %2158 = vmatpush1.msra.mxu0 0.0
    %2159 = vmatprep.subr.mxu0 0.0
    %2160 = vmatpush1.msra.mxu0 0.0
    %2161 = vmatprep.subr.mxu0 0.0
    %2162 = vmatpush1.msra.mxu0 0.0
    %2163 = vmatprep.subr.mxu0 0.0
    %2164 = vmatpush1.msra.mxu0 0.0
    %2165 = vmatprep.subr.mxu0 0.0
    %2166 = vmatpush1.msra.mxu0 0.0
    %2167 = vmatprep.mubr.f32.mxu0 0.0
    %2168 = vmatmul.mubr.f32.gmra.mrb[0].mxu0 %v2101
    %v2169 = vpop.f32.mrb[0].mxu0
    %v2170 = vadd.f32 0.0, %v2169
    %v2171 = vpop.f32.mrb[0].mxu0
    %2172 = vdwg.mxu0
    %2173 = vst [vmem:[#allocation12 + $0x8] sm:$0xff] %v2170
    %v2174 = vpack.c.bf16 %v2014, %v2014
    %2176 = vrot.lane.b32.xlu0 %v2174, 32
    %v2177 = vpop.permute.xlu0 %2176
    %v2179 = vsel %vm284, %v2177, 0
    %2181 = vmatprep.subr.bf16.mxu0 0
    %2182 = vmatpush1.bf16.msra.mxu0 %v1686
    %2183 = vmatprep.subr.bf16.mxu0 0
    %2184 = vmatpush1.bf16.msra.mxu0 %v1687
    %2185 = vmatprep.subr.bf16.mxu0 0
    %2186 = vmatpush1.bf16.msra.mxu0 0
    %2187 = vmatprep.subr.bf16.mxu0 0
    %2188 = vmatpush1.bf16.msra.mxu0 0
    %2189 = vmatprep.subr.bf16.mxu0 0
    %2190 = vmatpush1.bf16.msra.mxu0 0
    %2191 = vmatprep.subr.bf16.mxu0 0
    %2192 = vmatpush1.bf16.msra.mxu0 0
    %2193 = vmatprep.subr.bf16.mxu0 0
    %2194 = vmatpush1.bf16.msra.mxu0 0
    %2195 = vmatprep.subr.bf16.mxu0 0
    %2196 = vmatpush1.bf16.msra.mxu0 0
    %2197 = vmatprep.subr.bf16.mxu0 0
    %2198 = vmatpush1.bf16.msra.mxu0 0
    %2199 = vmatprep.subr.bf16.mxu0 0
    %2200 = vmatpush1.bf16.msra.mxu0 0
    %2201 = vmatprep.subr.bf16.mxu0 0
    %2202 = vmatpush1.bf16.msra.mxu0 0
    %2203 = vmatprep.subr.bf16.mxu0 0
    %2204 = vmatpush1.bf16.msra.mxu0 0
    %2205 = vmatprep.subr.bf16.mxu0 0
    %2206 = vmatpush1.bf16.msra.mxu0 0
    %2207 = vmatprep.subr.bf16.mxu0 0
    %2208 = vmatpush1.bf16.msra.mxu0 0
    %2209 = vmatprep.subr.bf16.mxu0 0
    %2210 = vmatpush1.bf16.msra.mxu0 0
    %2211 = vmatprep.subr.bf16.mxu0 0
    %2212 = vmatpush1.bf16.msra.mxu0 0
    %2213 = vmatprep.mubr.bf16.mxu0 0
    %2214 = vmatmul.mubr.bf16.gmra.mrb[0].mxu0 %v2179
    %v2215 = vpop.f32.mrb[0].mxu0
    %v2216 = vadd.f32 0.0, %v2215
    %v2217 = vpop.f32.mrb[0].mxu0
    %v2218 = vpop.f32.mrb[0].mxu0
    %v2219 = vpop.f32.mrb[0].mxu0
    %2220 = vdwg.mxu0
    %v2221 = vadd.f32 %v1658, %v2216
    %v2222 = vxor.u32 %v2221, 2147483648
    %v2223 = vmul.f32 %v2222, 1.442695
    %v2224 = vpow.pop %v2223
    %v2225 = vadd.f32 %v2224, 1.0
    %v2226 = vrcp.pop %v2225
    %v2227 = vmul.f32 1.0, %v2226
    %v2228 = vtanh.pop %v2221
    %v2229 = vsel %vm270, %v2228, %v2227
    %v2230 = vmul.f32 %v2229, %v2008
    %2232 = vrot.lane.b32.xlu0 %v2229, 64
    %v2233 = vpop.permute.xlu0 %2232
    %v2235 = vmul.f32 %v2229, %v2233
    %2237 = vrot.lane.b32.xlu0 %v2235, 32
    %v2238 = vpop.permute.xlu0 %2237
    %v2240 = vadd.f32 %v2230, %v2238
    %v2241 = vtanh.pop %v2240
    %2243 = vrot.lane.b32.xlu0 %v2241, 64
    %v2244 = vpop.permute.xlu0 %2243
    %v2246 = vmul.f32 %v2229, %v2244
    %v2247 = vxor.u32 %v2246, 2147483648
    %v2248 = vmul.f32 %v2247, 1.442695
    %v2249 = vpow.pop %v2248
    %v2250 = vadd.f32 %v2249, 1.0
    %v2251 = vrcp.pop %v2250
    %v2252 = vmul.f32 1.0, %v2251
    %2254 = vrot.lane.b32.xlu0 %v2252, 32
    %v2255 = vpop.permute.xlu0 %2254
    %2257 = vrot.lane.b32.xlu0 %v2097, 64
    %v2258 = vpop.permute.xlu0 %2257
    %v2260 = vsel %vm284, %v2255, %v2258
    %v2261 = vpack.c.bf16 %v2260, %v2260
    %v2263 = vsel %vm396, %v2261, 0
    %2265 = vmatprep.subr.bf16.mxu0 0
    %2266 = vmatpush1.bf16.msra.mxu0 %v1790
    %2267 = vmatprep.subr.bf16.mxu0 0
    %2268 = vmatpush1.bf16.msra.mxu0 %v1791
    %2269 = vmatprep.subr.bf16.mxu0 0
    %2270 = vmatpush1.bf16.msra.mxu0 %v1792
    %2271 = vmatprep.subr.bf16.mxu0 0
    %2272 = vmatpush1.bf16.msra.mxu0 %v1793
    %2273 = vmatprep.subr.bf16.mxu0 0
    %2274 = vmatpush1.bf16.msra.mxu0 0
    %2275 = vmatprep.subr.bf16.mxu0 0
    %2276 = vmatpush1.bf16.msra.mxu0 0
    %2277 = vmatprep.subr.bf16.mxu0 0
    %2278 = vmatpush1.bf16.msra.mxu0 0
    %2279 = vmatprep.subr.bf16.mxu0 0
    %2280 = vmatpush1.bf16.msra.mxu0 0
    %2281 = vmatprep.subr.bf16.mxu0 0
    %2282 = vmatpush1.bf16.msra.mxu0 0
    %2283 = vmatprep.subr.bf16.mxu0 0
    %2284 = vmatpush1.bf16.msra.mxu0 0
    %2285 = vmatprep.subr.bf16.mxu0 0
    %2286 = vmatpush1.bf16.msra.mxu0 0
    %2287 = vmatprep.subr.bf16.mxu0 0
    %2288 = vmatpush1.bf16.msra.mxu0 0
    %2289 = vmatprep.subr.bf16.mxu0 0
    %2290 = vmatpush1.bf16.msra.mxu0 0
    %2291 = vmatprep.subr.bf16.mxu0 0
    %2292 = vmatpush1.bf16.msra.mxu0 0
    %2293 = vmatprep.subr.bf16.mxu0 0
    %2294 = vmatpush1.bf16.msra.mxu0 0
    %2295 = vmatprep.subr.bf16.mxu0 0
    %2296 = vmatpush1.bf16.msra.mxu0 0
    %2297 = vmatprep.mubr.bf16.mxu0 0
    %2298 = vmatmul.mubr.bf16.gmra.mrb[0].mxu0 %v2263
    %v2299 = vpop.f32.mrb[0].mxu0
    %v2300 = vadd.f32 %v1772, %v2299
    %v2301 = vpop.f32.mrb[0].mxu0
    %v2302 = vpop.f32.mrb[0].mxu0
    %v2303 = vpop.f32.mrb[0].mxu0
    %2304 = vdwg.mxu0
    %v2305 = vxor.u32 %v2300, 2147483648
    %v2306 = vmul.f32 %v2305, 1.442695
    %v2307 = vpow.pop %v2306
    %v2308 = vadd.f32 %v2307, 1.0
    %v2309 = vrcp.pop %v2308
    %v2310 = vmul.f32 1.0, %v2309
    %v2311 = vtanh.pop %v2300
    %v2312 = vsel %vm270, %v2311, %v2310
    %v2313 = vmul.f32 %v2312, %v2091
    %2315 = vrot.lane.b32.xlu0 %v2312, 64
    %v2316 = vpop.permute.xlu0 %2315
    %v2318 = vmul.f32 %v2312, %v2316
    %2320 = vrot.lane.b32.xlu0 %v2318, 32
    %v2321 = vpop.permute.xlu0 %2320
    %v2323 = vadd.f32 %v2313, %v2321
    %v2324 = vtanh.pop %v2323
    %2326 = vrot.lane.b32.xlu0 %v2324, 64
    %v2327 = vpop.permute.xlu0 %2326
    %v2329 = vmul.f32 %v2312, %v2327
    %2331 = vrot.lane.b32.xlu0 %v2329, 32
    %v2332 = vpop.permute.xlu0 %2331
    %v2333 = vsel %vm284, %v2332, 0
    %2335 = vmatprep.subr.mxu0 0.0
    %2336 = vmatpush1.msra.mxu0 %v1661
    %2337 = vmatprep.subr.mxu0 0.0
    %2338 = vmatpush1.msra.mxu0 %v1662
    %2339 = vmatprep.subr.mxu0 0.0
    %2340 = vmatpush1.msra.mxu0 %v1663
    %2341 = vmatprep.subr.mxu0 0.0
    %2342 = vmatpush1.msra.mxu0 %v1664
    %2343 = vmatprep.subr.mxu0 0.0
    %2344 = vmatpush1.msra.mxu0 0.0
    %2345 = vmatprep.subr.mxu0 0.0
    %2346 = vmatpush1.msra.mxu0 0.0
    %2347 = vmatprep.subr.mxu0 0.0
    %2348 = vmatpush1.msra.mxu0 0.0
    %2349 = vmatprep.subr.mxu0 0.0
    %2350 = vmatpush1.msra.mxu0 0.0
    %2351 = vmatprep.subr.mxu0 0.0
    %2352 = vmatpush1.msra.mxu0 0.0
    %2353 = vmatprep.subr.mxu0 0.0
    %2354 = vmatpush1.msra.mxu0 0.0
    %2355 = vmatprep.subr.mxu0 0.0
    %2356 = vmatpush1.msra.mxu0 0.0
    %2357 = vmatprep.subr.mxu0 0.0
    %2358 = vmatpush1.msra.mxu0 0.0
    %2359 = vmatprep.subr.mxu0 0.0
    %2360 = vmatpush1.msra.mxu0 0.0
    %2361 = vmatprep.subr.mxu0 0.0
    %2362 = vmatpush1.msra.mxu0 0.0
    %2363 = vmatprep.subr.mxu0 0.0
    %2364 = vmatpush1.msra.mxu0 0.0
    %2365 = vmatprep.subr.mxu0 0.0
    %2366 = vmatpush1.msra.mxu0 0.0
    %2367 = vmatprep.subr.mxu0 0.0
    %2368 = vmatpush1.msra.mxu0 0.0
    %2369 = vmatprep.subr.mxu0 0.0
    %2370 = vmatpush1.msra.mxu0 0.0
    %2371 = vmatprep.subr.mxu0 0.0
    %2372 = vmatpush1.msra.mxu0 0.0
    %2373 = vmatprep.subr.mxu0 0.0
    %2374 = vmatpush1.msra.mxu0 0.0
    %2375 = vmatprep.subr.mxu0 0.0
    %2376 = vmatpush1.msra.mxu0 0.0
    %2377 = vmatprep.subr.mxu0 0.0
    %2378 = vmatpush1.msra.mxu0 0.0
    %2379 = vmatprep.subr.mxu0 0.0
    %2380 = vmatpush1.msra.mxu0 0.0
    %2381 = vmatprep.subr.mxu0 0.0
    %2382 = vmatpush1.msra.mxu0 0.0
    %2383 = vmatprep.subr.mxu0 0.0
    %2384 = vmatpush1.msra.mxu0 0.0
    %2385 = vmatprep.subr.mxu0 0.0
    %2386 = vmatpush1.msra.mxu0 0.0
    %2387 = vmatprep.subr.mxu0 0.0
    %2388 = vmatpush1.msra.mxu0 0.0
    %2389 = vmatprep.subr.mxu0 0.0
    %2390 = vmatpush1.msra.mxu0 0.0
    %2391 = vmatprep.subr.mxu0 0.0
    %2392 = vmatpush1.msra.mxu0 0.0
    %2393 = vmatprep.subr.mxu0 0.0
    %2394 = vmatpush1.msra.mxu0 0.0
    %2395 = vmatprep.subr.mxu0 0.0
    %2396 = vmatpush1.msra.mxu0 0.0
    %2397 = vmatprep.subr.mxu0 0.0
    %2398 = vmatpush1.msra.mxu0 0.0
    %2399 = vmatprep.mubr.f32.mxu0 0.0
    %2400 = vmatmul.mubr.f32.gmra.mrb[0].mxu0 %v2333
    %v2401 = vpop.f32.mrb[0].mxu0
    %v2402 = vadd.f32 0.0, %v2401
    %v2403 = vpop.f32.mrb[0].mxu0
    %2404 = vdwg.mxu0
    %2405 = vst [vmem:[#allocation12 + $0x10] sm:$0xff] %v2402
    %v2406 = vpack.c.bf16 %v2246, %v2246
    %2408 = vrot.lane.b32.xlu0 %v2406, 32
    %v2409 = vpop.permute.xlu0 %2408
    %v2411 = vsel %vm284, %v2409, 0
    %2413 = vmatprep.subr.bf16.mxu0 0
    %2414 = vmatpush1.bf16.msra.mxu0 %v1686
    %2415 = vmatprep.subr.bf16.mxu0 0
    %2416 = vmatpush1.bf16.msra.mxu0 %v1687
    %2417 = vmatprep.subr.bf16.mxu0 0
    %2418 = vmatpush1.bf16.msra.mxu0 0
    %2419 = vmatprep.subr.bf16.mxu0 0
    %2420 = vmatpush1.bf16.msra.mxu0 0
    %2421 = vmatprep.subr.bf16.mxu0 0
    %2422 = vmatpush1.bf16.msra.mxu0 0
    %2423 = vmatprep.subr.bf16.mxu0 0
    %2424 = vmatpush1.bf16.msra.mxu0 0
    %2425 = vmatprep.subr.bf16.mxu0 0
    %2426 = vmatpush1.bf16.msra.mxu0 0
    %2427 = vmatprep.subr.bf16.mxu0 0
    %2428 = vmatpush1.bf16.msra.mxu0 0
    %2429 = vmatprep.subr.bf16.mxu0 0
    %2430 = vmatpush1.bf16.msra.mxu0 0
    %2431 = vmatprep.subr.bf16.mxu0 0
    %2432 = vmatpush1.bf16.msra.mxu0 0
    %2433 = vmatprep.subr.bf16.mxu0 0
    %2434 = vmatpush1.bf16.msra.mxu0 0
    %2435 = vmatprep.subr.bf16.mxu0 0
    %2436 = vmatpush1.bf16.msra.mxu0 0
    %2437 = vmatprep.subr.bf16.mxu0 0
    %2438 = vmatpush1.bf16.msra.mxu0 0
    %2439 = vmatprep.subr.bf16.mxu0 0
    %2440 = vmatpush1.bf16.msra.mxu0 0
    %2441 = vmatprep.subr.bf16.mxu0 0
    %2442 = vmatpush1.bf16.msra.mxu0 0
    %2443 = vmatprep.subr.bf16.mxu0 0
    %2444 = vmatpush1.bf16.msra.mxu0 0
    %2445 = vmatprep.mubr.bf16.mxu0 0
    %2446 = vmatmul.mubr.bf16.gmra.mrb[0].mxu0 %v2411
    %v2447 = vpop.f32.mrb[0].mxu0
    %v2448 = vadd.f32 0.0, %v2447
    %v2449 = vpop.f32.mrb[0].mxu0
    %v2450 = vpop.f32.mrb[0].mxu0
    %v2451 = vpop.f32.mrb[0].mxu0
    %2452 = vdwg.mxu0
    %v2453 = vadd.f32 %v1658, %v2448
    %v2454 = vxor.u32 %v2453, 2147483648
    %v2455 = vmul.f32 %v2454, 1.442695
    %v2456 = vpow.pop %v2455
    %v2457 = vadd.f32 %v2456, 1.0
    %v2458 = vrcp.pop %v2457
    %v2459 = vmul.f32 1.0, %v2458
    %v2460 = vtanh.pop %v2453
    %v2461 = vsel %vm270, %v2460, %v2459
    %v2462 = vmul.f32 %v2461, %v2240
    %2464 = vrot.lane.b32.xlu0 %v2461, 64
    %v2465 = vpop.permute.xlu0 %2464
    %v2467 = vmul.f32 %v2461, %v2465
    %2469 = vrot.lane.b32.xlu0 %v2467, 32
    %v2470 = vpop.permute.xlu0 %2469
    %v2472 = vadd.f32 %v2462, %v2470
    %v2473 = vtanh.pop %v2472
    %2475 = vrot.lane.b32.xlu0 %v2473, 64
    %v2476 = vpop.permute.xlu0 %2475
    %v2478 = vmul.f32 %v2461, %v2476
    %v2479 = vxor.u32 %v2478, 2147483648
    %v2480 = vmul.f32 %v2479, 1.442695
    %v2481 = vpow.pop %v2480
    %v2482 = vadd.f32 %v2481, 1.0
    %v2483 = vrcp.pop %v2482
    %v2484 = vmul.f32 1.0, %v2483
    %2486 = vrot.lane.b32.xlu0 %v2484, 32
    %v2487 = vpop.permute.xlu0 %2486
    %2489 = vrot.lane.b32.xlu0 %v2329, 64
    %v2490 = vpop.permute.xlu0 %2489
    %v2492 = vsel %vm284, %v2487, %v2490
    %v2493 = vpack.c.bf16 %v2492, %v2492
    %v2495 = vsel %vm396, %v2493, 0
    %2497 = vmatprep.subr.bf16.mxu0 0
    %2498 = vmatpush1.bf16.msra.mxu0 %v1790
    %2499 = vmatprep.subr.bf16.mxu0 0
    %2500 = vmatpush1.bf16.msra.mxu0 %v1791
    %2501 = vmatprep.subr.bf16.mxu0 0
    %2502 = vmatpush1.bf16.msra.mxu0 %v1792
    %2503 = vmatprep.subr.bf16.mxu0 0
    %2504 = vmatpush1.bf16.msra.mxu0 %v1793
    %2505 = vmatprep.subr.bf16.mxu0 0
    %2506 = vmatpush1.bf16.msra.mxu0 0
    %2507 = vmatprep.subr.bf16.mxu0 0
    %2508 = vmatpush1.bf16.msra.mxu0 0
    %2509 = vmatprep.subr.bf16.mxu0 0
    %2510 = vmatpush1.bf16.msra.mxu0 0
    %2511 = vmatprep.subr.bf16.mxu0 0
    %2512 = vmatpush1.bf16.msra.mxu0 0
    %2513 = vmatprep.subr.bf16.mxu0 0
    %2514 = vmatpush1.bf16.msra.mxu0 0
    %2515 = vmatprep.subr.bf16.mxu0 0
    %2516 = vmatpush1.bf16.msra.mxu0 0
    %2517 = vmatprep.subr.bf16.mxu0 0
    %2518 = vmatpush1.bf16.msra.mxu0 0
    %2519 = vmatprep.subr.bf16.mxu0 0
    %2520 = vmatpush1.bf16.msra.mxu0 0
    %2521 = vmatprep.subr.bf16.mxu0 0
    %2522 = vmatpush1.bf16.msra.mxu0 0
    %2523 = vmatprep.subr.bf16.mxu0 0
    %2524 = vmatpush1.bf16.msra.mxu0 0
    %2525 = vmatprep.subr.bf16.mxu0 0
    %2526 = vmatpush1.bf16.msra.mxu0 0
    %2527 = vmatprep.subr.bf16.mxu0 0
    %2528 = vmatpush1.bf16.msra.mxu0 0
    %2529 = vmatprep.mubr.bf16.mxu0 0
    %2530 = vmatmul.mubr.bf16.gmra.mrb[0].mxu0 %v2495
    %v2531 = vpop.f32.mrb[0].mxu0
    %v2532 = vadd.f32 %v1772, %v2531
    %v2533 = vpop.f32.mrb[0].mxu0
    %v2534 = vpop.f32.mrb[0].mxu0
    %v2535 = vpop.f32.mrb[0].mxu0
    %2536 = vdwg.mxu0
    %v2537 = vxor.u32 %v2532, 2147483648
    %v2538 = vmul.f32 %v2537, 1.442695
    %v2539 = vpow.pop %v2538
    %v2540 = vadd.f32 %v2539, 1.0
    %v2541 = vrcp.pop %v2540
    %v2542 = vmul.f32 1.0, %v2541
    %v2543 = vtanh.pop %v2532
    %v2544 = vsel %vm270, %v2543, %v2542
    %v2545 = vmul.f32 %v2544, %v2323
    %2547 = vrot.lane.b32.xlu0 %v2544, 64
    %v2548 = vpop.permute.xlu0 %2547
    %v2550 = vmul.f32 %v2544, %v2548
    %2552 = vrot.lane.b32.xlu0 %v2550, 32
    %v2553 = vpop.permute.xlu0 %2552
    %v2555 = vadd.f32 %v2545, %v2553
    %v2556 = vtanh.pop %v2555
    %2558 = vrot.lane.b32.xlu0 %v2556, 64
    %v2559 = vpop.permute.xlu0 %2558
    %v2561 = vmul.f32 %v2544, %v2559
    %2563 = vrot.lane.b32.xlu0 %v2561, 32
    %v2564 = vpop.permute.xlu0 %2563
    %v2565 = vsel %vm284, %v2564, 0
    %2567 = vmatprep.subr.mxu0 0.0
    %2568 = vmatpush1.msra.mxu0 %v1661
    %2569 = vmatprep.subr.mxu0 0.0
    %2570 = vmatpush1.msra.mxu0 %v1662
    %2571 = vmatprep.subr.mxu0 0.0
    %2572 = vmatpush1.msra.mxu0 %v1663
    %2573 = vmatprep.subr.mxu0 0.0
    %2574 = vmatpush1.msra.mxu0 %v1664
    %2575 = vmatprep.subr.mxu0 0.0
    %2576 = vmatpush1.msra.mxu0 0.0
    %2577 = vmatprep.subr.mxu0 0.0
    %2578 = vmatpush1.msra.mxu0 0.0
    %2579 = vmatprep.subr.mxu0 0.0
    %2580 = vmatpush1.msra.mxu0 0.0
    %2581 = vmatprep.subr.mxu0 0.0
    %2582 = vmatpush1.msra.mxu0 0.0
    %2583 = vmatprep.subr.mxu0 0.0
    %2584 = vmatpush1.msra.mxu0 0.0
    %2585 = vmatprep.subr.mxu0 0.0
    %2586 = vmatpush1.msra.mxu0 0.0
    %2587 = vmatprep.subr.mxu0 0.0
    %2588 = vmatpush1.msra.mxu0 0.0
    %2589 = vmatprep.subr.mxu0 0.0
    %2590 = vmatpush1.msra.mxu0 0.0
    %2591 = vmatprep.subr.mxu0 0.0
    %2592 = vmatpush1.msra.mxu0 0.0
    %2593 = vmatprep.subr.mxu0 0.0
    %2594 = vmatpush1.msra.mxu0 0.0
    %2595 = vmatprep.subr.mxu0 0.0
    %2596 = vmatpush1.msra.mxu0 0.0
    %2597 = vmatprep.subr.mxu0 0.0
    %2598 = vmatpush1.msra.mxu0 0.0
    %2599 = vmatprep.subr.mxu0 0.0
    %2600 = vmatpush1.msra.mxu0 0.0
    %2601 = vmatprep.subr.mxu0 0.0
    %2602 = vmatpush1.msra.mxu0 0.0
    %2603 = vmatprep.subr.mxu0 0.0
    %2604 = vmatpush1.msra.mxu0 0.0
    %2605 = vmatprep.subr.mxu0 0.0
    %2606 = vmatpush1.msra.mxu0 0.0
    %2607 = vmatprep.subr.mxu0 0.0
    %2608 = vmatpush1.msra.mxu0 0.0
    %2609 = vmatprep.subr.mxu0 0.0
    %2610 = vmatpush1.msra.mxu0 0.0
    %2611 = vmatprep.subr.mxu0 0.0
    %2612 = vmatpush1.msra.mxu0 0.0
    %2613 = vmatprep.subr.mxu0 0.0
    %2614 = vmatpush1.msra.mxu0 0.0
    %2615 = vmatprep.subr.mxu0 0.0
    %2616 = vmatpush1.msra.mxu0 0.0
    %2617 = vmatprep.subr.mxu0 0.0
    %2618 = vmatpush1.msra.mxu0 0.0
    %2619 = vmatprep.subr.mxu0 0.0
    %2620 = vmatpush1.msra.mxu0 0.0
    %2621 = vmatprep.subr.mxu0 0.0
    %2622 = vmatpush1.msra.mxu0 0.0
    %2623 = vmatprep.subr.mxu0 0.0
    %2624 = vmatpush1.msra.mxu0 0.0
    %2625 = vmatprep.subr.mxu0 0.0
    %2626 = vmatpush1.msra.mxu0 0.0
    %2627 = vmatprep.subr.mxu0 0.0
    %2628 = vmatpush1.msra.mxu0 0.0
    %2629 = vmatprep.subr.mxu0 0.0
    %2630 = vmatpush1.msra.mxu0 0.0
    %2631 = vmatprep.mubr.f32.mxu0 0.0
    %2632 = vmatmul.mubr.f32.gmra.mrb[0].mxu0 %v2565
    %v2633 = vpop.f32.mrb[0].mxu0
    %v2634 = vadd.f32 0.0, %v2633
    %v2635 = vpop.f32.mrb[0].mxu0
    %2636 = vdwg.mxu0
    %2637 = vst [vmem:[#allocation12 + $0x18] sm:$0xff] %v2634
    %v2638 = vpack.c.bf16 %v2478, %v2478
    %2640 = vrot.lane.b32.xlu0 %v2638, 32
    %v2641 = vpop.permute.xlu0 %2640
    %v2643 = vsel %vm284, %v2641, 0
    %2645 = vmatprep.subr.bf16.mxu0 0
    %2646 = vmatpush1.bf16.msra.mxu0 %v1686
    %2647 = vmatprep.subr.bf16.mxu0 0
    %2648 = vmatpush1.bf16.msra.mxu0 %v1687
    %2649 = vmatprep.subr.bf16.mxu0 0
    %2650 = vmatpush1.bf16.msra.mxu0 0
    %2651 = vmatprep.subr.bf16.mxu0 0
    %2652 = vmatpush1.bf16.msra.mxu0 0
    %2653 = vmatprep.subr.bf16.mxu0 0
    %2654 = vmatpush1.bf16.msra.mxu0 0
    %2655 = vmatprep.subr.bf16.mxu0 0
    %2656 = vmatpush1.bf16.msra.mxu0 0
    %2657 = vmatprep.subr.bf16.mxu0 0
    %2658 = vmatpush1.bf16.msra.mxu0 0
    %2659 = vmatprep.subr.bf16.mxu0 0
    %2660 = vmatpush1.bf16.msra.mxu0 0
    %2661 = vmatprep.subr.bf16.mxu0 0
    %2662 = vmatpush1.bf16.msra.mxu0 0
    %2663 = vmatprep.subr.bf16.mxu0 0
    %2664 = vmatpush1.bf16.msra.mxu0 0
    %2665 = vmatprep.subr.bf16.mxu0 0
    %2666 = vmatpush1.bf16.msra.mxu0 0
    %2667 = vmatprep.subr.bf16.mxu0 0
    %2668 = vmatpush1.bf16.msra.mxu0 0
    %2669 = vmatprep.subr.bf16.mxu0 0
    %2670 = vmatpush1.bf16.msra.mxu0 0
    %2671 = vmatprep.subr.bf16.mxu0 0
    %2672 = vmatpush1.bf16.msra.mxu0 0
    %2673 = vmatprep.subr.bf16.mxu0 0
    %2674 = vmatpush1.bf16.msra.mxu0 0
    %2675 = vmatprep.subr.bf16.mxu0 0
    %2676 = vmatpush1.bf16.msra.mxu0 0
    %2677 = vmatprep.mubr.bf16.mxu0 0
    %2678 = vmatmul.mubr.bf16.gmra.mrb[0].mxu0 %v2643
    %v2679 = vpop.f32.mrb[0].mxu0
    %v2680 = vadd.f32 0.0, %v2679
    %v2681 = vpop.f32.mrb[0].mxu0
    %v2682 = vpop.f32.mrb[0].mxu0
    %v2683 = vpop.f32.mrb[0].mxu0
    %2684 = vdwg.mxu0
    %v2685 = vadd.f32 %v1658, %v2680
    %v2686 = vxor.u32 %v2685, 2147483648
    %v2687 = vmul.f32 %v2686, 1.442695
    %v2688 = vpow.pop %v2687
    %v2689 = vadd.f32 %v2688, 1.0
    %v2690 = vrcp.pop %v2689
    %v2691 = vmul.f32 1.0, %v2690
    %v2692 = vtanh.pop %v2685
    %v2693 = vsel %vm270, %v2692, %v2691
    %v2694 = vmul.f32 %v2693, %v2472
    %2696 = vrot.lane.b32.xlu0 %v2693, 64
    %v2697 = vpop.permute.xlu0 %2696
    %v2699 = vmul.f32 %v2693, %v2697
    %2701 = vrot.lane.b32.xlu0 %v2699, 32
    %v2702 = vpop.permute.xlu0 %2701
    %v2704 = vadd.f32 %v2694, %v2702
    %v2705 = vtanh.pop %v2704
    %2707 = vrot.lane.b32.xlu0 %v2705, 64
    %v2708 = vpop.permute.xlu0 %2707
    %v2710 = vmul.f32 %v2693, %v2708
    %v2711 = vxor.u32 %v2710, 2147483648
    %v2712 = vmul.f32 %v2711, 1.442695
    %v2713 = vpow.pop %v2712
    %v2714 = vadd.f32 %v2713, 1.0
    %v2715 = vrcp.pop %v2714
    %v2716 = vmul.f32 1.0, %v2715
    %2718 = vrot.lane.b32.xlu0 %v2716, 32
    %v2719 = vpop.permute.xlu0 %2718
    %2721 = vrot.lane.b32.xlu0 %v2561, 64
    %v2722 = vpop.permute.xlu0 %2721
    %v2724 = vsel %vm284, %v2719, %v2722
    %v2725 = vpack.c.bf16 %v2724, %v2724
    %v2727 = vsel %vm396, %v2725, 0
    %2729 = vmatprep.subr.bf16.mxu0 0
    %2730 = vmatpush1.bf16.msra.mxu0 %v1790
    %2731 = vmatprep.subr.bf16.mxu0 0
    %2732 = vmatpush1.bf16.msra.mxu0 %v1791
    %2733 = vmatprep.subr.bf16.mxu0 0
    %2734 = vmatpush1.bf16.msra.mxu0 %v1792
    %2735 = vmatprep.subr.bf16.mxu0 0
    %2736 = vmatpush1.bf16.msra.mxu0 %v1793
    %2737 = vmatprep.subr.bf16.mxu0 0
    %2738 = vmatpush1.bf16.msra.mxu0 0
    %2739 = vmatprep.subr.bf16.mxu0 0
    %2740 = vmatpush1.bf16.msra.mxu0 0
    %2741 = vmatprep.subr.bf16.mxu0 0
    %2742 = vmatpush1.bf16.msra.mxu0 0
    %2743 = vmatprep.subr.bf16.mxu0 0
    %2744 = vmatpush1.bf16.msra.mxu0 0
    %2745 = vmatprep.subr.bf16.mxu0 0
    %2746 = vmatpush1.bf16.msra.mxu0 0
    %2747 = vmatprep.subr.bf16.mxu0 0
    %2748 = vmatpush1.bf16.msra.mxu0 0
    %2749 = vmatprep.subr.bf16.mxu0 0
    %2750 = vmatpush1.bf16.msra.mxu0 0
    %2751 = vmatprep.subr.bf16.mxu0 0
    %2752 = vmatpush1.bf16.msra.mxu0 0
    %2753 = vmatprep.subr.bf16.mxu0 0
    %2754 = vmatpush1.bf16.msra.mxu0 0
    %2755 = vmatprep.subr.bf16.mxu0 0
    %2756 = vmatpush1.bf16.msra.mxu0 0
    %2757 = vmatprep.subr.bf16.mxu0 0
    %2758 = vmatpush1.bf16.msra.mxu0 0
    %2759 = vmatprep.subr.bf16.mxu0 0
    %2760 = vmatpush1.bf16.msra.mxu0 0
    %2761 = vmatprep.mubr.bf16.mxu0 0
    %2762 = vmatmul.mubr.bf16.gmra.mrb[0].mxu0 %v2727
    %v2763 = vpop.f32.mrb[0].mxu0
    %v2764 = vadd.f32 %v1772, %v2763
    %v2765 = vpop.f32.mrb[0].mxu0
    %v2766 = vpop.f32.mrb[0].mxu0
    %v2767 = vpop.f32.mrb[0].mxu0
    %2768 = vdwg.mxu0
    %v2769 = vxor.u32 %v2764, 2147483648
    %v2770 = vmul.f32 %v2769, 1.442695
    %v2771 = vpow.pop %v2770
    %v2772 = vadd.f32 %v2771, 1.0
    %v2773 = vrcp.pop %v2772
    %v2774 = vmul.f32 1.0, %v2773
    %v2775 = vtanh.pop %v2764
    %v2776 = vsel %vm270, %v2775, %v2774
    %v2777 = vmul.f32 %v2776, %v2555
    %2779 = vrot.lane.b32.xlu0 %v2776, 64
    %v2780 = vpop.permute.xlu0 %2779
    %v2782 = vmul.f32 %v2776, %v2780
    %2784 = vrot.lane.b32.xlu0 %v2782, 32
    %v2785 = vpop.permute.xlu0 %2784
    %v2787 = vadd.f32 %v2777, %v2785
    %v2788 = vtanh.pop %v2787
    %2790 = vrot.lane.b32.xlu0 %v2788, 64
    %v2791 = vpop.permute.xlu0 %2790
    %v2793 = vmul.f32 %v2776, %v2791
    %2795 = vrot.lane.b32.xlu0 %v2793, 32
    %v2796 = vpop.permute.xlu0 %2795
    %v2797 = vsel %vm284, %v2796, 0
    %2799 = vmatprep.subr.mxu0 0.0
    %2800 = vmatpush1.msra.mxu0 %v1661
    %2801 = vmatprep.subr.mxu0 0.0
    %2802 = vmatpush1.msra.mxu0 %v1662
    %2803 = vmatprep.subr.mxu0 0.0
    %2804 = vmatpush1.msra.mxu0 %v1663
    %2805 = vmatprep.subr.mxu0 0.0
    %2806 = vmatpush1.msra.mxu0 %v1664
    %2807 = vmatprep.subr.mxu0 0.0
    %2808 = vmatpush1.msra.mxu0 0.0
    %2809 = vmatprep.subr.mxu0 0.0
    %2810 = vmatpush1.msra.mxu0 0.0
    %2811 = vmatprep.subr.mxu0 0.0
    %2812 = vmatpush1.msra.mxu0 0.0
    %2813 = vmatprep.subr.mxu0 0.0
    %2814 = vmatpush1.msra.mxu0 0.0
    %2815 = vmatprep.subr.mxu0 0.0
    %2816 = vmatpush1.msra.mxu0 0.0
    %2817 = vmatprep.subr.mxu0 0.0
    %2818 = vmatpush1.msra.mxu0 0.0
    %2819 = vmatprep.subr.mxu0 0.0
    %2820 = vmatpush1.msra.mxu0 0.0
    %2821 = vmatprep.subr.mxu0 0.0
    %2822 = vmatpush1.msra.mxu0 0.0
    %2823 = vmatprep.subr.mxu0 0.0
    %2824 = vmatpush1.msra.mxu0 0.0
    %2825 = vmatprep.subr.mxu0 0.0
    %2826 = vmatpush1.msra.mxu0 0.0
    %2827 = vmatprep.subr.mxu0 0.0
    %2828 = vmatpush1.msra.mxu0 0.0
    %2829 = vmatprep.subr.mxu0 0.0
    %2830 = vmatpush1.msra.mxu0 0.0
    %2831 = vmatprep.subr.mxu0 0.0
    %2832 = vmatpush1.msra.mxu0 0.0
    %2833 = vmatprep.subr.mxu0 0.0
    %2834 = vmatpush1.msra.mxu0 0.0
    %2835 = vmatprep.subr.mxu0 0.0
    %2836 = vmatpush1.msra.mxu0 0.0
    %2837 = vmatprep.subr.mxu0 0.0
    %2838 = vmatpush1.msra.mxu0 0.0
    %2839 = vmatprep.subr.mxu0 0.0
    %2840 = vmatpush1.msra.mxu0 0.0
    %2841 = vmatprep.subr.mxu0 0.0
    %2842 = vmatpush1.msra.mxu0 0.0
    %2843 = vmatprep.subr.mxu0 0.0
    %2844 = vmatpush1.msra.mxu0 0.0
    %2845 = vmatprep.subr.mxu0 0.0
    %2846 = vmatpush1.msra.mxu0 0.0
    %2847 = vmatprep.subr.mxu0 0.0
    %2848 = vmatpush1.msra.mxu0 0.0
    %2849 = vmatprep.subr.mxu0 0.0
    %2850 = vmatpush1.msra.mxu0 0.0
    %2851 = vmatprep.subr.mxu0 0.0
    %2852 = vmatpush1.msra.mxu0 0.0
    %2853 = vmatprep.subr.mxu0 0.0
    %2854 = vmatpush1.msra.mxu0 0.0
    %2855 = vmatprep.subr.mxu0 0.0
    %2856 = vmatpush1.msra.mxu0 0.0
    %2857 = vmatprep.subr.mxu0 0.0
    %2858 = vmatpush1.msra.mxu0 0.0
    %2859 = vmatprep.subr.mxu0 0.0
    %2860 = vmatpush1.msra.mxu0 0.0
    %2861 = vmatprep.subr.mxu0 0.0
    %2862 = vmatpush1.msra.mxu0 0.0
    %2863 = vmatprep.mubr.f32.mxu0 0.0
    %2864 = vmatmul.mubr.f32.gmra.mrb[0].mxu0 %v2797
    %v2865 = vpop.f32.mrb[0].mxu0
    %v2866 = vadd.f32 0.0, %v2865
    %v2867 = vpop.f32.mrb[0].mxu0
    %2868 = vdwg.mxu0
    %2869 = vst [vmem:[#allocation12 + $0x20] sm:$0xff] %v2866
    %v2870 = vpack.c.bf16 %v2710, %v2710
    %2872 = vrot.lane.b32.xlu0 %v2870, 32
    %v2873 = vpop.permute.xlu0 %2872
    %v2875 = vsel %vm284, %v2873, 0
    %2877 = vmatprep.subr.bf16.mxu0 0
    %2878 = vmatpush1.bf16.msra.mxu0 %v1686
    %2879 = vmatprep.subr.bf16.mxu0 0
    %2880 = vmatpush1.bf16.msra.mxu0 %v1687
    %2881 = vmatprep.subr.bf16.mxu0 0
    %2882 = vmatpush1.bf16.msra.mxu0 0
    %2883 = vmatprep.subr.bf16.mxu0 0
    %2884 = vmatpush1.bf16.msra.mxu0 0
    %2885 = vmatprep.subr.bf16.mxu0 0
    %2886 = vmatpush1.bf16.msra.mxu0 0
    %2887 = vmatprep.subr.bf16.mxu0 0
    %2888 = vmatpush1.bf16.msra.mxu0 0
    %2889 = vmatprep.subr.bf16.mxu0 0
    %2890 = vmatpush1.bf16.msra.mxu0 0
    %2891 = vmatprep.subr.bf16.mxu0 0
    %2892 = vmatpush1.bf16.msra.mxu0 0
    %2893 = vmatprep.subr.bf16.mxu0 0
    %2894 = vmatpush1.bf16.msra.mxu0 0
    %2895 = vmatprep.subr.bf16.mxu0 0
    %2896 = vmatpush1.bf16.msra.mxu0 0
    %2897 = vmatprep.subr.bf16.mxu0 0
    %2898 = vmatpush1.bf16.msra.mxu0 0
    %2899 = vmatprep.subr.bf16.mxu0 0
    %2900 = vmatpush1.bf16.msra.mxu0 0
    %2901 = vmatprep.subr.bf16.mxu0 0
    %2902 = vmatpush1.bf16.msra.mxu0 0
    %2903 = vmatprep.subr.bf16.mxu0 0
    %2904 = vmatpush1.bf16.msra.mxu0 0
    %2905 = vmatprep.subr.bf16.mxu0 0
    %2906 = vmatpush1.bf16.msra.mxu0 0
    %2907 = vmatprep.subr.bf16.mxu0 0
    %2908 = vmatpush1.bf16.msra.mxu0 0
    %2909 = vmatprep.mubr.bf16.mxu0 0
    %2910 = vmatmul.mubr.bf16.gmra.mrb[0].mxu0 %v2875
    %v2911 = vpop.f32.mrb[0].mxu0
    %v2912 = vadd.f32 0.0, %v2911
    %v2913 = vpop.f32.mrb[0].mxu0
    %v2914 = vpop.f32.mrb[0].mxu0
    %v2915 = vpop.f32.mrb[0].mxu0
    %2916 = vdwg.mxu0
    %v2917 = vadd.f32 %v1658, %v2912
    %v2918 = vxor.u32 %v2917, 2147483648
    %v2919 = vmul.f32 %v2918, 1.442695
    %v2920 = vpow.pop %v2919
    %v2921 = vadd.f32 %v2920, 1.0
    %v2922 = vrcp.pop %v2921
    %v2923 = vmul.f32 1.0, %v2922
    %v2924 = vtanh.pop %v2917
    %v2925 = vsel %vm270, %v2924, %v2923
    %v2926 = vmul.f32 %v2925, %v2704
    %2928 = vrot.lane.b32.xlu0 %v2925, 64
    %v2929 = vpop.permute.xlu0 %2928
    %v2931 = vmul.f32 %v2925, %v2929
    %2933 = vrot.lane.b32.xlu0 %v2931, 32
    %v2934 = vpop.permute.xlu0 %2933
    %v2936 = vadd.f32 %v2926, %v2934
    %v2937 = vtanh.pop %v2936
    %2939 = vrot.lane.b32.xlu0 %v2937, 64
    %v2940 = vpop.permute.xlu0 %2939
    %v2942 = vmul.f32 %v2925, %v2940
    %v2943 = vxor.u32 %v2942, 2147483648
    %v2944 = vmul.f32 %v2943, 1.442695
    %v2945 = vpow.pop %v2944
    %v2946 = vadd.f32 %v2945, 1.0
    %v2947 = vrcp.pop %v2946
    %v2948 = vmul.f32 1.0, %v2947
    %2950 = vrot.lane.b32.xlu0 %v2948, 32
    %v2951 = vpop.permute.xlu0 %2950
    %2953 = vrot.lane.b32.xlu0 %v2793, 64
    %v2954 = vpop.permute.xlu0 %2953
    %v2956 = vsel %vm284, %v2951, %v2954
    %v2957 = vpack.c.bf16 %v2956, %v2956
    %v2959 = vsel %vm396, %v2957, 0
    %2961 = vmatprep.subr.bf16.mxu0 0
    %2962 = vmatpush1.bf16.msra.mxu0 %v1790
    %2963 = vmatprep.subr.bf16.mxu0 0
    %2964 = vmatpush1.bf16.msra.mxu0 %v1791
    %2965 = vmatprep.subr.bf16.mxu0 0
    %2966 = vmatpush1.bf16.msra.mxu0 %v1792
    %2967 = vmatprep.subr.bf16.mxu0 0
    %2968 = vmatpush1.bf16.msra.mxu0 %v1793
    %2969 = vmatprep.subr.bf16.mxu0 0
    %2970 = vmatpush1.bf16.msra.mxu0 0
    %2971 = vmatprep.subr.bf16.mxu0 0
    %2972 = vmatpush1.bf16.msra.mxu0 0
    %2973 = vmatprep.subr.bf16.mxu0 0
    %2974 = vmatpush1.bf16.msra.mxu0 0
    %2975 = vmatprep.subr.bf16.mxu0 0
    %2976 = vmatpush1.bf16.msra.mxu0 0
    %2977 = vmatprep.subr.bf16.mxu0 0
    %2978 = vmatpush1.bf16.msra.mxu0 0
    %2979 = vmatprep.subr.bf16.mxu0 0
    %2980 = vmatpush1.bf16.msra.mxu0 0
    %2981 = vmatprep.subr.bf16.mxu0 0
    %2982 = vmatpush1.bf16.msra.mxu0 0
    %2983 = vmatprep.subr.bf16.mxu0 0
    %2984 = vmatpush1.bf16.msra.mxu0 0
    %2985 = vmatprep.subr.bf16.mxu0 0
    %2986 = vmatpush1.bf16.msra.mxu0 0
    %2987 = vmatprep.subr.bf16.mxu0 0
    %2988 = vmatpush1.bf16.msra.mxu0 0
    %2989 = vmatprep.subr.bf16.mxu0 0
    %2990 = vmatpush1.bf16.msra.mxu0 0
    %2991 = vmatprep.subr.bf16.mxu0 0
    %2992 = vmatpush1.bf16.msra.mxu0 0
    %2993 = vmatprep.mubr.bf16.mxu0 0
    %2994 = vmatmul.mubr.bf16.gmra.mrb[0].mxu0 %v2959
    %v2995 = vpop.f32.mrb[0].mxu0
    %v2996 = vadd.f32 %v1772, %v2995
    %v2997 = vpop.f32.mrb[0].mxu0
    %v2998 = vpop.f32.mrb[0].mxu0
    %v2999 = vpop.f32.mrb[0].mxu0
    %3000 = vdwg.mxu0
    %v3001 = vxor.u32 %v2996, 2147483648
    %v3002 = vmul.f32 %v3001, 1.442695
    %v3003 = vpow.pop %v3002
    %v3004 = vadd.f32 %v3003, 1.0
    %v3005 = vrcp.pop %v3004
    %v3006 = vmul.f32 1.0, %v3005
    %v3007 = vtanh.pop %v2996
    %v3008 = vsel %vm270, %v3007, %v3006
    %v3009 = vmul.f32 %v3008, %v2787
    %3011 = vrot.lane.b32.xlu0 %v3008, 64
    %v3012 = vpop.permute.xlu0 %3011
    %v3014 = vmul.f32 %v3008, %v3012
    %3016 = vrot.lane.b32.xlu0 %v3014, 32
    %v3017 = vpop.permute.xlu0 %3016
    %v3019 = vadd.f32 %v3009, %v3017
    %v3020 = vtanh.pop %v3019
    %3022 = vrot.lane.b32.xlu0 %v3020, 64
    %v3023 = vpop.permute.xlu0 %3022
    %v3025 = vmul.f32 %v3008, %v3023
    %3027 = vrot.lane.b32.xlu0 %v3025, 32
    %v3028 = vpop.permute.xlu0 %3027
    %v3029 = vsel %vm284, %v3028, 0
    %3031 = vmatprep.subr.mxu0 0.0
    %3032 = vmatpush1.msra.mxu0 %v1661
    %3033 = vmatprep.subr.mxu0 0.0
    %3034 = vmatpush1.msra.mxu0 %v1662
    %3035 = vmatprep.subr.mxu0 0.0
    %3036 = vmatpush1.msra.mxu0 %v1663
    %3037 = vmatprep.subr.mxu0 0.0
    %3038 = vmatpush1.msra.mxu0 %v1664
    %3039 = vmatprep.subr.mxu0 0.0
    %3040 = vmatpush1.msra.mxu0 0.0
    %3041 = vmatprep.subr.mxu0 0.0
    %3042 = vmatpush1.msra.mxu0 0.0
    %3043 = vmatprep.subr.mxu0 0.0
    %3044 = vmatpush1.msra.mxu0 0.0
    %3045 = vmatprep.subr.mxu0 0.0
    %3046 = vmatpush1.msra.mxu0 0.0
    %3047 = vmatprep.subr.mxu0 0.0
    %3048 = vmatpush1.msra.mxu0 0.0
    %3049 = vmatprep.subr.mxu0 0.0
    %3050 = vmatpush1.msra.mxu0 0.0
    %3051 = vmatprep.subr.mxu0 0.0
    %3052 = vmatpush1.msra.mxu0 0.0
    %3053 = vmatprep.subr.mxu0 0.0
    %3054 = vmatpush1.msra.mxu0 0.0
    %3055 = vmatprep.subr.mxu0 0.0
    %3056 = vmatpush1.msra.mxu0 0.0
    %3057 = vmatprep.subr.mxu0 0.0
    %3058 = vmatpush1.msra.mxu0 0.0
    %3059 = vmatprep.subr.mxu0 0.0
    %3060 = vmatpush1.msra.mxu0 0.0
    %3061 = vmatprep.subr.mxu0 0.0
    %3062 = vmatpush1.msra.mxu0 0.0
    %3063 = vmatprep.subr.mxu0 0.0
    %3064 = vmatpush1.msra.mxu0 0.0
    %3065 = vmatprep.subr.mxu0 0.0
    %3066 = vmatpush1.msra.mxu0 0.0
    %3067 = vmatprep.subr.mxu0 0.0
    %3068 = vmatpush1.msra.mxu0 0.0
    %3069 = vmatprep.subr.mxu0 0.0
    %3070 = vmatpush1.msra.mxu0 0.0
    %3071 = vmatprep.subr.mxu0 0.0
    %3072 = vmatpush1.msra.mxu0 0.0
    %3073 = vmatprep.subr.mxu0 0.0
    %3074 = vmatpush1.msra.mxu0 0.0
    %3075 = vmatprep.subr.mxu0 0.0
    %3076 = vmatpush1.msra.mxu0 0.0
    %3077 = vmatprep.subr.mxu0 0.0
    %3078 = vmatpush1.msra.mxu0 0.0
    %3079 = vmatprep.subr.mxu0 0.0
    %3080 = vmatpush1.msra.mxu0 0.0
    %3081 = vmatprep.subr.mxu0 0.0
    %3082 = vmatpush1.msra.mxu0 0.0
    %3083 = vmatprep.subr.mxu0 0.0
    %3084 = vmatpush1.msra.mxu0 0.0
    %3085 = vmatprep.subr.mxu0 0.0
    %3086 = vmatpush1.msra.mxu0 0.0
    %3087 = vmatprep.subr.mxu0 0.0
    %3088 = vmatpush1.msra.mxu0 0.0
    %3089 = vmatprep.subr.mxu0 0.0
    %3090 = vmatpush1.msra.mxu0 0.0
    %3091 = vmatprep.subr.mxu0 0.0
    %3092 = vmatpush1.msra.mxu0 0.0
    %3093 = vmatprep.subr.mxu0 0.0
    %3094 = vmatpush1.msra.mxu0 0.0
    %3095 = vmatprep.mubr.f32.mxu0 0.0
    %3096 = vmatmul.mubr.f32.gmra.mrb[0].mxu0 %v3029
    %v3097 = vpop.f32.mrb[0].mxu0
    %v3098 = vadd.f32 0.0, %v3097
    %v3099 = vpop.f32.mrb[0].mxu0
    %3100 = vdwg.mxu0
    %3101 = vst [vmem:[#allocation12 + $0x28] sm:$0xff] %v3098
    %v3102 = vpack.c.bf16 %v2942, %v2942
    %3104 = vrot.lane.b32.xlu0 %v3102, 32
    %v3105 = vpop.permute.xlu0 %3104
    %v3107 = vsel %vm284, %v3105, 0
    %3109 = vmatprep.subr.bf16.mxu0 0
    %3110 = vmatpush1.bf16.msra.mxu0 %v1686
    %3111 = vmatprep.subr.bf16.mxu0 0
    %3112 = vmatpush1.bf16.msra.mxu0 %v1687
    %3113 = vmatprep.subr.bf16.mxu0 0
    %3114 = vmatpush1.bf16.msra.mxu0 0
    %3115 = vmatprep.subr.bf16.mxu0 0
    %3116 = vmatpush1.bf16.msra.mxu0 0
    %3117 = vmatprep.subr.bf16.mxu0 0
    %3118 = vmatpush1.bf16.msra.mxu0 0
    %3119 = vmatprep.subr.bf16.mxu0 0
    %3120 = vmatpush1.bf16.msra.mxu0 0
    %3121 = vmatprep.subr.bf16.mxu0 0
    %3122 = vmatpush1.bf16.msra.mxu0 0
    %3123 = vmatprep.subr.bf16.mxu0 0
    %3124 = vmatpush1.bf16.msra.mxu0 0
    %3125 = vmatprep.subr.bf16.mxu0 0
    %3126 = vmatpush1.bf16.msra.mxu0 0
    %3127 = vmatprep.subr.bf16.mxu0 0
    %3128 = vmatpush1.bf16.msra.mxu0 0
    %3129 = vmatprep.subr.bf16.mxu0 0
    %3130 = vmatpush1.bf16.msra.mxu0 0
    %3131 = vmatprep.subr.bf16.mxu0 0
    %3132 = vmatpush1.bf16.msra.mxu0 0
    %3133 = vmatprep.subr.bf16.mxu0 0
    %3134 = vmatpush1.bf16.msra.mxu0 0
    %3135 = vmatprep.subr.bf16.mxu0 0
    %3136 = vmatpush1.bf16.msra.mxu0 0
    %3137 = vmatprep.subr.bf16.mxu0 0
    %3138 = vmatpush1.bf16.msra.mxu0 0
    %3139 = vmatprep.subr.bf16.mxu0 0
    %3140 = vmatpush1.bf16.msra.mxu0 0
    %3141 = vmatprep.mubr.bf16.mxu0 0
    %3142 = vmatmul.mubr.bf16.gmra.mrb[0].mxu0 %v3107
    %v3143 = vpop.f32.mrb[0].mxu0
    %v3144 = vadd.f32 0.0, %v3143
    %v3145 = vpop.f32.mrb[0].mxu0
    %v3146 = vpop.f32.mrb[0].mxu0
    %v3147 = vpop.f32.mrb[0].mxu0
    %3148 = vdwg.mxu0
    %v3149 = vadd.f32 %v1658, %v3144
    %v3150 = vxor.u32 %v3149, 2147483648
    %v3151 = vmul.f32 %v3150, 1.442695
    %v3152 = vpow.pop %v3151
    %v3153 = vadd.f32 %v3152, 1.0
    %v3154 = vrcp.pop %v3153
    %v3155 = vmul.f32 1.0, %v3154
    %v3156 = vtanh.pop %v3149
    %v3157 = vsel %vm270, %v3156, %v3155
    %v3158 = vmul.f32 %v3157, %v2936
    %3160 = vrot.lane.b32.xlu0 %v3157, 64
    %v3161 = vpop.permute.xlu0 %3160
    %v3163 = vmul.f32 %v3157, %v3161
    %3165 = vrot.lane.b32.xlu0 %v3163, 32
    %v3166 = vpop.permute.xlu0 %3165
    %v3168 = vadd.f32 %v3158, %v3166
    %v3169 = vtanh.pop %v3168
    %3171 = vrot.lane.b32.xlu0 %v3169, 64
    %v3172 = vpop.permute.xlu0 %3171
    %v3174 = vmul.f32 %v3157, %v3172
    %v3175 = vxor.u32 %v3174, 2147483648
    %v3176 = vmul.f32 %v3175, 1.442695
    %v3177 = vpow.pop %v3176
    %v3178 = vadd.f32 %v3177, 1.0
    %v3179 = vrcp.pop %v3178
    %v3180 = vmul.f32 1.0, %v3179
    %3182 = vrot.lane.b32.xlu0 %v3180, 32
    %v3183 = vpop.permute.xlu0 %3182
    %3185 = vrot.lane.b32.xlu0 %v3025, 64
    %v3186 = vpop.permute.xlu0 %3185
    %v3188 = vsel %vm284, %v3183, %v3186
    %v3189 = vpack.c.bf16 %v3188, %v3188
    %v3191 = vsel %vm396, %v3189, 0
    %3193 = vmatprep.subr.bf16.mxu0 0
    %3194 = vmatpush1.bf16.msra.mxu0 %v1790
    %3195 = vmatprep.subr.bf16.mxu0 0
    %3196 = vmatpush1.bf16.msra.mxu0 %v1791
    %3197 = vmatprep.subr.bf16.mxu0 0
    %3198 = vmatpush1.bf16.msra.mxu0 %v1792
    %3199 = vmatprep.subr.bf16.mxu0 0
    %3200 = vmatpush1.bf16.msra.mxu0 %v1793
    %3201 = vmatprep.subr.bf16.mxu0 0
    %3202 = vmatpush1.bf16.msra.mxu0 0
    %3203 = vmatprep.subr.bf16.mxu0 0
    %3204 = vmatpush1.bf16.msra.mxu0 0
    %3205 = vmatprep.subr.bf16.mxu0 0
    %3206 = vmatpush1.bf16.msra.mxu0 0
    %3207 = vmatprep.subr.bf16.mxu0 0
    %3208 = vmatpush1.bf16.msra.mxu0 0
    %3209 = vmatprep.subr.bf16.mxu0 0
    %3210 = vmatpush1.bf16.msra.mxu0 0
    %3211 = vmatprep.subr.bf16.mxu0 0
    %3212 = vmatpush1.bf16.msra.mxu0 0
    %3213 = vmatprep.subr.bf16.mxu0 0
    %3214 = vmatpush1.bf16.msra.mxu0 0
    %3215 = vmatprep.subr.bf16.mxu0 0
    %3216 = vmatpush1.bf16.msra.mxu0 0
    %3217 = vmatprep.subr.bf16.mxu0 0
    %3218 = vmatpush1.bf16.msra.mxu0 0
    %3219 = vmatprep.subr.bf16.mxu0 0
    %3220 = vmatpush1.bf16.msra.mxu0 0
    %3221 = vmatprep.subr.bf16.mxu0 0
    %3222 = vmatpush1.bf16.msra.mxu0 0
    %3223 = vmatprep.subr.bf16.mxu0 0
    %3224 = vmatpush1.bf16.msra.mxu0 0
    %3225 = vmatprep.mubr.bf16.mxu0 0
    %3226 = vmatmul.mubr.bf16.gmra.mrb[0].mxu0 %v3191
    %v3227 = vpop.f32.mrb[0].mxu0
    %v3228 = vadd.f32 %v1772, %v3227
    %v3229 = vpop.f32.mrb[0].mxu0
    %v3230 = vpop.f32.mrb[0].mxu0
    %v3231 = vpop.f32.mrb[0].mxu0
    %3232 = vdwg.mxu0
    %v3233 = vxor.u32 %v3228, 2147483648
    %v3234 = vmul.f32 %v3233, 1.442695
    %v3235 = vpow.pop %v3234
    %v3236 = vadd.f32 %v3235, 1.0
    %v3237 = vrcp.pop %v3236
    %v3238 = vmul.f32 1.0, %v3237
    %v3239 = vtanh.pop %v3228
    %v3240 = vsel %vm270, %v3239, %v3238
    %v3241 = vmul.f32 %v3240, %v3019
    %3243 = vrot.lane.b32.xlu0 %v3240, 64
    %v3244 = vpop.permute.xlu0 %3243
    %v3246 = vmul.f32 %v3240, %v3244
    %3248 = vrot.lane.b32.xlu0 %v3246, 32
    %v3249 = vpop.permute.xlu0 %3248
    %v3251 = vadd.f32 %v3241, %v3249
    %v3252 = vtanh.pop %v3251
    %3254 = vrot.lane.b32.xlu0 %v3252, 64
    %v3255 = vpop.permute.xlu0 %3254
    %v3257 = vmul.f32 %v3240, %v3255
    %3259 = vrot.lane.b32.xlu0 %v3257, 32
    %v3260 = vpop.permute.xlu0 %3259
    %v3261 = vsel %vm284, %v3260, 0
    %3263 = vmatprep.subr.mxu0 0.0
    %3264 = vmatpush1.msra.mxu0 %v1661
    %3265 = vmatprep.subr.mxu0 0.0
    %3266 = vmatpush1.msra.mxu0 %v1662
    %3267 = vmatprep.subr.mxu0 0.0
    %3268 = vmatpush1.msra.mxu0 %v1663
    %3269 = vmatprep.subr.mxu0 0.0
    %3270 = vmatpush1.msra.mxu0 %v1664
    %3271 = vmatprep.subr.mxu0 0.0
    %3272 = vmatpush1.msra.mxu0 0.0
    %3273 = vmatprep.subr.mxu0 0.0
    %3274 = vmatpush1.msra.mxu0 0.0
    %3275 = vmatprep.subr.mxu0 0.0
    %3276 = vmatpush1.msra.mxu0 0.0
    %3277 = vmatprep.subr.mxu0 0.0
    %3278 = vmatpush1.msra.mxu0 0.0
    %3279 = vmatprep.subr.mxu0 0.0
    %3280 = vmatpush1.msra.mxu0 0.0
    %3281 = vmatprep.subr.mxu0 0.0
    %3282 = vmatpush1.msra.mxu0 0.0
    %3283 = vmatprep.subr.mxu0 0.0
    %3284 = vmatpush1.msra.mxu0 0.0
    %3285 = vmatprep.subr.mxu0 0.0
    %3286 = vmatpush1.msra.mxu0 0.0
    %3287 = vmatprep.subr.mxu0 0.0
    %3288 = vmatpush1.msra.mxu0 0.0
    %3289 = vmatprep.subr.mxu0 0.0
    %3290 = vmatpush1.msra.mxu0 0.0
    %3291 = vmatprep.subr.mxu0 0.0
    %3292 = vmatpush1.msra.mxu0 0.0
    %3293 = vmatprep.subr.mxu0 0.0
    %3294 = vmatpush1.msra.mxu0 0.0
    %3295 = vmatprep.subr.mxu0 0.0
    %3296 = vmatpush1.msra.mxu0 0.0
    %3297 = vmatprep.subr.mxu0 0.0
    %3298 = vmatpush1.msra.mxu0 0.0
    %3299 = vmatprep.subr.mxu0 0.0
    %3300 = vmatpush1.msra.mxu0 0.0
    %3301 = vmatprep.subr.mxu0 0.0
    %3302 = vmatpush1.msra.mxu0 0.0
    %3303 = vmatprep.subr.mxu0 0.0
    %3304 = vmatpush1.msra.mxu0 0.0
    %3305 = vmatprep.subr.mxu0 0.0
    %3306 = vmatpush1.msra.mxu0 0.0
    %3307 = vmatprep.subr.mxu0 0.0
    %3308 = vmatpush1.msra.mxu0 0.0
    %3309 = vmatprep.subr.mxu0 0.0
    %3310 = vmatpush1.msra.mxu0 0.0
    %3311 = vmatprep.subr.mxu0 0.0
    %3312 = vmatpush1.msra.mxu0 0.0
    %3313 = vmatprep.subr.mxu0 0.0
    %3314 = vmatpush1.msra.mxu0 0.0
    %3315 = vmatprep.subr.mxu0 0.0
    %3316 = vmatpush1.msra.mxu0 0.0
    %3317 = vmatprep.subr.mxu0 0.0
    %3318 = vmatpush1.msra.mxu0 0.0
    %3319 = vmatprep.subr.mxu0 0.0
    %3320 = vmatpush1.msra.mxu0 0.0
    %3321 = vmatprep.subr.mxu0 0.0
    %3322 = vmatpush1.msra.mxu0 0.0
    %3323 = vmatprep.subr.mxu0 0.0
    %3324 = vmatpush1.msra.mxu0 0.0
    %3325 = vmatprep.subr.mxu0 0.0
    %3326 = vmatpush1.msra.mxu0 0.0
    %3327 = vmatprep.mubr.f32.mxu0 0.0
    %3328 = vmatmul.mubr.f32.gmra.mrb[0].mxu0 %v3261
    %v3329 = vpop.f32.mrb[0].mxu0
    %v3330 = vadd.f32 0.0, %v3329
    %v3331 = vpop.f32.mrb[0].mxu0
    %3332 = vdwg.mxu0
    %3333 = vst [vmem:[#allocation12 + $0x30] sm:$0xff] %v3330
    %v3334 = vpack.c.bf16 %v3174, %v3174
    %3336 = vrot.lane.b32.xlu0 %v3334, 32
    %v3337 = vpop.permute.xlu0 %3336
    %v3339 = vsel %vm284, %v3337, 0
    %3341 = vmatprep.subr.bf16.mxu0 0
    %3342 = vmatpush1.bf16.msra.mxu0 %v1686
    %3343 = vmatprep.subr.bf16.mxu0 0
    %3344 = vmatpush1.bf16.msra.mxu0 %v1687
    %3345 = vmatprep.subr.bf16.mxu0 0
    %3346 = vmatpush1.bf16.msra.mxu0 0
    %3347 = vmatprep.subr.bf16.mxu0 0
    %3348 = vmatpush1.bf16.msra.mxu0 0
    %3349 = vmatprep.subr.bf16.mxu0 0
    %3350 = vmatpush1.bf16.msra.mxu0 0
    %3351 = vmatprep.subr.bf16.mxu0 0
    %3352 = vmatpush1.bf16.msra.mxu0 0
    %3353 = vmatprep.subr.bf16.mxu0 0
    %3354 = vmatpush1.bf16.msra.mxu0 0
    %3355 = vmatprep.subr.bf16.mxu0 0
    %3356 = vmatpush1.bf16.msra.mxu0 0
    %3357 = vmatprep.subr.bf16.mxu0 0
    %3358 = vmatpush1.bf16.msra.mxu0 0
    %3359 = vmatprep.subr.bf16.mxu0 0
    %3360 = vmatpush1.bf16.msra.mxu0 0
    %3361 = vmatprep.subr.bf16.mxu0 0
    %3362 = vmatpush1.bf16.msra.mxu0 0
    %3363 = vmatprep.subr.bf16.mxu0 0
    %3364 = vmatpush1.bf16.msra.mxu0 0
    %3365 = vmatprep.subr.bf16.mxu0 0
    %3366 = vmatpush1.bf16.msra.mxu0 0
    %3367 = vmatprep.subr.bf16.mxu0 0
    %3368 = vmatpush1.bf16.msra.mxu0 0
    %3369 = vmatprep.subr.bf16.mxu0 0
    %3370 = vmatpush1.bf16.msra.mxu0 0
    %3371 = vmatprep.subr.bf16.mxu0 0
    %3372 = vmatpush1.bf16.msra.mxu0 0
    %3373 = vmatprep.mubr.bf16.mxu0 0
    %3374 = vmatmul.mubr.bf16.gmra.mrb[0].mxu0 %v3339
    %v3375 = vpop.f32.mrb[0].mxu0
    %v3376 = vadd.f32 0.0, %v3375
    %v3377 = vpop.f32.mrb[0].mxu0
    %v3378 = vpop.f32.mrb[0].mxu0
    %v3379 = vpop.f32.mrb[0].mxu0
    %3380 = vdwg.mxu0
    %v3381 = vadd.f32 %v1658, %v3376
    %v3382 = vxor.u32 %v3381, 2147483648
    %v3383 = vmul.f32 %v3382, 1.442695
    %v3384 = vpow.pop %v3383
    %v3385 = vadd.f32 %v3384, 1.0
    %v3386 = vrcp.pop %v3385
    %v3387 = vmul.f32 1.0, %v3386
    %v3388 = vtanh.pop %v3381
    %v3389 = vsel %vm270, %v3388, %v3387
    %v3390 = vmul.f32 %v3389, %v3168
    %3392 = vrot.lane.b32.xlu0 %v3389, 64
    %v3393 = vpop.permute.xlu0 %3392
    %v3395 = vmul.f32 %v3389, %v3393
    %3397 = vrot.lane.b32.xlu0 %v3395, 32
    %v3398 = vpop.permute.xlu0 %3397
    %v3400 = vadd.f32 %v3390, %v3398
    %v3401 = vtanh.pop %v3400
    %3403 = vrot.lane.b32.xlu0 %v3401, 64
    %v3404 = vpop.permute.xlu0 %3403
    %v3406 = vmul.f32 %v3389, %v3404
    %v3407 = vxor.u32 %v3406, 2147483648
    %v3408 = vmul.f32 %v3407, 1.442695
    %v3409 = vpow.pop %v3408
    %v3410 = vadd.f32 %v3409, 1.0
    %v3411 = vrcp.pop %v3410
    %v3412 = vmul.f32 1.0, %v3411
    %3414 = vrot.lane.b32.xlu0 %v3412, 32
    %v3415 = vpop.permute.xlu0 %3414
    %3417 = vrot.lane.b32.xlu0 %v3257, 64
    %v3418 = vpop.permute.xlu0 %3417
    %v3420 = vsel %vm284, %v3415, %v3418
    %v3421 = vpack.c.bf16 %v3420, %v3420
    %v3423 = vsel %vm396, %v3421, 0
    %3425 = vmatprep.subr.bf16.mxu0 0
    %3426 = vmatpush1.bf16.msra.mxu0 %v1790
    %3427 = vmatprep.subr.bf16.mxu0 0
    %3428 = vmatpush1.bf16.msra.mxu0 %v1791
    %3429 = vmatprep.subr.bf16.mxu0 0
    %3430 = vmatpush1.bf16.msra.mxu0 %v1792
    %3431 = vmatprep.subr.bf16.mxu0 0
    %3432 = vmatpush1.bf16.msra.mxu0 %v1793
    %3433 = vmatprep.subr.bf16.mxu0 0
    %3434 = vmatpush1.bf16.msra.mxu0 0
    %3435 = vmatprep.subr.bf16.mxu0 0
    %3436 = vmatpush1.bf16.msra.mxu0 0
    %3437 = vmatprep.subr.bf16.mxu0 0
    %3438 = vmatpush1.bf16.msra.mxu0 0
    %3439 = vmatprep.subr.bf16.mxu0 0
    %3440 = vmatpush1.bf16.msra.mxu0 0
    %3441 = vmatprep.subr.bf16.mxu0 0
    %3442 = vmatpush1.bf16.msra.mxu0 0
    %3443 = vmatprep.subr.bf16.mxu0 0
    %3444 = vmatpush1.bf16.msra.mxu0 0
    %3445 = vmatprep.subr.bf16.mxu0 0
    %3446 = vmatpush1.bf16.msra.mxu0 0
    %3447 = vmatprep.subr.bf16.mxu0 0
    %3448 = vmatpush1.bf16.msra.mxu0 0
    %3449 = vmatprep.subr.bf16.mxu0 0
    %3450 = vmatpush1.bf16.msra.mxu0 0
    %3451 = vmatprep.subr.bf16.mxu0 0
    %3452 = vmatpush1.bf16.msra.mxu0 0
    %3453 = vmatprep.subr.bf16.mxu0 0
    %3454 = vmatpush1.bf16.msra.mxu0 0
    %3455 = vmatprep.subr.bf16.mxu0 0
    %3456 = vmatpush1.bf16.msra.mxu0 0
    %3457 = vmatprep.mubr.bf16.mxu0 0
    %3458 = vmatmul.mubr.bf16.gmra.mrb[0].mxu0 %v3423
    %v3459 = vpop.f32.mrb[0].mxu0
    %v3460 = vadd.f32 %v1772, %v3459
    %v3461 = vpop.f32.mrb[0].mxu0
    %v3462 = vpop.f32.mrb[0].mxu0
    %v3463 = vpop.f32.mrb[0].mxu0
    %3464 = vdwg.mxu0
    %v3465 = vxor.u32 %v3460, 2147483648
    %v3466 = vmul.f32 %v3465, 1.442695
    %v3467 = vpow.pop %v3466
    %v3468 = vadd.f32 %v3467, 1.0
    %v3469 = vrcp.pop %v3468
    %v3470 = vmul.f32 1.0, %v3469
    %v3471 = vtanh.pop %v3460
    %v3472 = vsel %vm270, %v3471, %v3470
    %v3473 = vmul.f32 %v3472, %v3251
    %3475 = vrot.lane.b32.xlu0 %v3472, 64
    %v3476 = vpop.permute.xlu0 %3475
    %v3478 = vmul.f32 %v3472, %v3476
    %3480 = vrot.lane.b32.xlu0 %v3478, 32
    %v3481 = vpop.permute.xlu0 %3480
    %v3483 = vadd.f32 %v3473, %v3481
    %v3484 = vtanh.pop %v3483
    %3486 = vrot.lane.b32.xlu0 %v3484, 64
    %v3487 = vpop.permute.xlu0 %3486
    %v3489 = vmul.f32 %v3472, %v3487
    %3491 = vrot.lane.b32.xlu0 %v3489, 32
    %v3492 = vpop.permute.xlu0 %3491
    %v3493 = vsel %vm284, %v3492, 0
    %3495 = vmatprep.subr.mxu0 0.0
    %3496 = vmatpush1.msra.mxu0 %v1661
    %3497 = vmatprep.subr.mxu0 0.0
    %3498 = vmatpush1.msra.mxu0 %v1662
    %3499 = vmatprep.subr.mxu0 0.0
    %3500 = vmatpush1.msra.mxu0 %v1663
    %3501 = vmatprep.subr.mxu0 0.0
    %3502 = vmatpush1.msra.mxu0 %v1664
    %3503 = vmatprep.subr.mxu0 0.0
    %3504 = vmatpush1.msra.mxu0 0.0
    %3505 = vmatprep.subr.mxu0 0.0
    %3506 = vmatpush1.msra.mxu0 0.0
    %3507 = vmatprep.subr.mxu0 0.0
    %3508 = vmatpush1.msra.mxu0 0.0
    %3509 = vmatprep.subr.mxu0 0.0
    %3510 = vmatpush1.msra.mxu0 0.0
    %3511 = vmatprep.subr.mxu0 0.0
    %3512 = vmatpush1.msra.mxu0 0.0
    %3513 = vmatprep.subr.mxu0 0.0
    %3514 = vmatpush1.msra.mxu0 0.0
    %3515 = vmatprep.subr.mxu0 0.0
    %3516 = vmatpush1.msra.mxu0 0.0
    %3517 = vmatprep.subr.mxu0 0.0
    %3518 = vmatpush1.msra.mxu0 0.0
    %3519 = vmatprep.subr.mxu0 0.0
    %3520 = vmatpush1.msra.mxu0 0.0
    %3521 = vmatprep.subr.mxu0 0.0
    %3522 = vmatpush1.msra.mxu0 0.0
    %3523 = vmatprep.subr.mxu0 0.0
    %3524 = vmatpush1.msra.mxu0 0.0
    %3525 = vmatprep.subr.mxu0 0.0
    %3526 = vmatpush1.msra.mxu0 0.0
    %3527 = vmatprep.subr.mxu0 0.0
    %3528 = vmatpush1.msra.mxu0 0.0
    %3529 = vmatprep.subr.mxu0 0.0
    %3530 = vmatpush1.msra.mxu0 0.0
    %3531 = vmatprep.subr.mxu0 0.0
    %3532 = vmatpush1.msra.mxu0 0.0
    %3533 = vmatprep.subr.mxu0 0.0
    %3534 = vmatpush1.msra.mxu0 0.0
    %3535 = vmatprep.subr.mxu0 0.0
    %3536 = vmatpush1.msra.mxu0 0.0
    %3537 = vmatprep.subr.mxu0 0.0
    %3538 = vmatpush1.msra.mxu0 0.0
    %3539 = vmatprep.subr.mxu0 0.0
    %3540 = vmatpush1.msra.mxu0 0.0
    %3541 = vmatprep.subr.mxu0 0.0
    %3542 = vmatpush1.msra.mxu0 0.0
    %3543 = vmatprep.subr.mxu0 0.0
    %3544 = vmatpush1.msra.mxu0 0.0
    %3545 = vmatprep.subr.mxu0 0.0
    %3546 = vmatpush1.msra.mxu0 0.0
    %3547 = vmatprep.subr.mxu0 0.0
    %3548 = vmatpush1.msra.mxu0 0.0
    %3549 = vmatprep.subr.mxu0 0.0
    %3550 = vmatpush1.msra.mxu0 0.0
    %3551 = vmatprep.subr.mxu0 0.0
    %3552 = vmatpush1.msra.mxu0 0.0
    %3553 = vmatprep.subr.mxu0 0.0
    %3554 = vmatpush1.msra.mxu0 0.0
    %3555 = vmatprep.subr.mxu0 0.0
    %3556 = vmatpush1.msra.mxu0 0.0
    %3557 = vmatprep.subr.mxu0 0.0
    %3558 = vmatpush1.msra.mxu0 0.0
    %3559 = vmatprep.mubr.f32.mxu0 0.0
    %3560 = vmatmul.mubr.f32.gmra.mrb[0].mxu0 %v3493
    %v3561 = vpop.f32.mrb[0].mxu0
    %v3562 = vadd.f32 0.0, %v3561
    %v3563 = vpop.f32.mrb[0].mxu0
    %3564 = vdwg.mxu0
    %3565 = vst [vmem:[#allocation12 + $0x38] sm:$0xff] %v3562
    // Predicated region
    $region66: #{tpu_custom_call.1} parent=1 // pred_check
      _
    $region67: #{tpu_custom_call.1} parent=1 // pred_check_branch
      %3567 = sbr.rel (0) target = $region69
    $region68: #{tpu_custom_call.1} parent=1 // pred_region
      %s3569 = ssub.s32 128, 128
      %3570 = vsyncadd [#allocation5], %s3569
      %s3572 = sshll.u32 [#allocation11], 4
      %s3573 = int_to_ptr.vmem [resolvable:$true] %s3572
      %3575 = dma.vmem_to_hbm [thread:$0]  %s3573, 128, %s12, [#allocation5]
    $region69: #{tpu_custom_call.1} parent=1 // pred_fallthru
      _
    // Predicated region
    $region70: #{tpu_custom_call.1} parent=1 // pred_check
      _
    $region71: #{tpu_custom_call.1} parent=1 // pred_check_branch
      %3577 = sbr.rel (0) target = $region73
    $region72: #{tpu_custom_call.1} parent=1 // pred_region
      %s3579 = ssub.s32 1024, 1024
      %3580 = vsyncadd [#allocation13], %s3579
      %s3581 = sshll.u32 [#allocation12], 4
      %s3582 = int_to_ptr.vmem [resolvable:$true] %s3581
      %3587 = dma.vmem_to_hbm [thread:$0]  %s3582, 1024, %s13, [#allocation13], 128, 128, 8
    $region73: #{tpu_custom_call.1} parent=1 // pred_fallthru
      _
    // Predicated region
    $region74: #{tpu_custom_call.1} parent=1 // pred_check
      _
    $region75: #{tpu_custom_call.1} parent=1 // pred_check_branch
      %3589 = sbr.rel (0) target = $region77
    $region76: #{tpu_custom_call.1} parent=1 // pred_region
      %3590 = dma.done [#allocation5], 128
    $region77: #{tpu_custom_call.1} parent=1 // pred_fallthru
      _
    // Predicated region
    $region78: #{tpu_custom_call.1} parent=1 // pred_check
      _
    $region79: #{tpu_custom_call.1} parent=1 // pred_check_branch
      %3592 = sbr.rel (0) target = $region81
    $region80: #{tpu_custom_call.1} parent=1 // pred_region
      %3593 = dma.done [#allocation13], 1024
    $region81: #{tpu_custom_call.1} parent=1 // pred_fallthru
      _
    %3594 = vsyncpa [#allocation4], 1
    %3595 = vsyncpa [#allocation7], 1
    %3596 = vsyncpa [#allocation10], 1
    %3597 = vsyncpa [#allocation5], 1
    %3598 = vsyncpa [#allocation13], 1

</llo_original>
